<compile_context>
chip_gen: v6e
topology: v6e:2x2x1
jax: 0.10.0
libtpu: 0.0.40
codegen_flags: <defaults>
</compile_context>

<pallas_src>
import functools

import jax
import jax.numpy as jnp
from jax.experimental import pallas as pl
from jax.experimental.pallas import tpu as pltpu


def _make_conv_kernel(K, G, Ho, Wo, Cin, KKC, Kpad, compute_dtype):
    """Pass A: stride-2 conv + bias + LeakyReLU(0.1) + per-group BN partials."""

    def kernel(x_ref, w_ref, b_ref, y_ref, st_ref):
        # x_ref : (G, Hh, Wh, 4*Cin)  polyphase planes fused into the lane axis
        #                             (lane index = (2*(kh%2)+(kw%2))*Cin + ci)
        # w_ref : (Kpad, Cout)        fused-tap weights, row index = (kh, kw, ci)
        # b_ref : (1, Cout)           conv bias (f32)
        # y_ref : (G*Ho*Wo, Cout)     LeakyReLU(conv + bias), intermediate dtype
        # st_ref: (2, Cout)           rows: [sum, sum of squares] for this group
        R = G * Ho * Wo

        # Build the im2col LHS in VMEM: rows = (g, ho, wo), lanes = fused tap
        # index (kh, kw, ci), zero-padded to the full 128-deep contraction.
        cols = []
        for kh in range(K):
            for kw in range(K):
                ph = (kh % 2) * 2 + (kw % 2)
                r0, c0 = kh // 2, kw // 2
                rows = []
                for g in range(G):
                    for h in range(Ho):
                        rows.append(
                            x_ref[g, r0 + h, c0:c0 + Wo, ph * Cin:(ph + 1) * Cin])
                cols.append(rows[0] if len(rows) == 1
                            else jnp.concatenate(rows, axis=0))      # (R, Cin)
        if Kpad > KKC:
            cols.append(jnp.zeros((R, Kpad - KKC), compute_dtype))
        lhs = jnp.concatenate(cols, axis=1)                           # (R, Kpad)

        # One MXU matmul at full contraction depth; f32 accumulation.
        acc = jnp.dot(lhs, w_ref[...], preferred_element_type=jnp.float32)
        y = acc + b_ref[...]
        y = jnp.where(y >= 0.0, y, 0.1 * y)                # LeakyReLU(0.1)
        y_ref[...] = y.astype(y_ref.dtype)
        st_ref[0:1, :] = jnp.sum(y, axis=0, keepdims=True)
        st_ref[1:2, :] = jnp.sum(y * y, axis=0, keepdims=True)

    return kernel


def _bn_apply_kernel(y_ref, sc_ref, sh_ref, o_ref):
    """Pass B: folded BatchNorm affine; the FMA is done in f32."""
    o_ref[...] = y_ref[...].astype(jnp.float32) * sc_ref[...] + sh_ref[...]


def _pick_group(N, rows_per_img):
    """G images per conv grid step: target <=512-row matmuls, >=2 grid steps."""
    G = 1
    for g in range(N, 0, -1):
        if N % g == 0 and g * rows_per_img <= 512:
            G = g
            break
    if N // G < 2:                 # prefer pipeline depth / megacore balance
        for g in range(G - 1, 0, -1):
            if N % g == 0:
                G = g
                break
    return G


def _pick_bn_tile(M):
    upper = min(M, 1024)
    if M >= 16:
        upper = min(upper, M // 2)  # keep >= 2 grid steps when possible
    for t in range(upper, 7, -1):
        if M % t == 0 and t % 8 == 0:
            return t
    return M


@functools.partial(
    jax.jit, static_argnames=("stride", "padding", "compute_dtype", "y_dtype"))
def downscale_forward(x_nchw, weight, bias, gamma, beta, *, stride=2, padding=2,
                      compute_dtype=jnp.bfloat16, y_dtype=jnp.bfloat16):
    N, Cin, H, W = x_nchw.shape
    Cout, _, K, K2 = weight.shape
    assert K == K2 and stride == 2, "kernel is specialized for stride-2 conv"
    Ho = (H + 2 * padding - K) // stride + 1
    Wo = (W + 2 * padding - K) // stride + 1
    M = N * Ho * Wo
    KKC = K * K * Cin
    Kpad = max(128, ((KKC + 127) // 128) * 128)      # fused contraction depth
    eps = 1e-5

    # ---- layout glue (XLA, ~1x input bytes; no K*K im2col blow-up in HBM) --
    x = jnp.transpose(x_nchw, (0, 2, 3, 1))                           # NHWC
    Hp = max(H + 2 * padding, 2 * (Ho + (K - 1) // 2)); Hp += Hp % 2
    Wp = max(W + 2 * padding, 2 * (Wo + (K - 1) // 2)); Wp += Wp % 2
    xp = jnp.pad(x, ((0, 0), (padding, Hp - H - padding),
                     (padding, Wp - W - padding), (0, 0)))
    Hh, Wh = Hp // 2, Wp // 2
    # stride-2 polyphase planes fused into the channel/lane axis:
    # phases[n, h, w, (2*rp + cp)*Cin + ci] = xp[n, 2h+rp, 2w+cp, ci]
    phases = jnp.stack([xp[:, 0::2, 0::2, :], xp[:, 0::2, 1::2, :],
                        xp[:, 1::2, 0::2, :], xp[:, 1::2, 1::2, :]], axis=3)
    phases = phases.reshape(N, Hh, Wh, 4 * Cin).astype(compute_dtype)
    assert Ho + (K - 1) // 2 <= Hh and Wo + (K - 1) // 2 <= Wh

    # (Cout, Cin, kh, kw) -> (K*K*Cin, Cout), rows ordered (kh, kw, ci); the
    # zero-padding to the 128-deep contraction lives only in VMEM operands.
    w_mat = jnp.transpose(weight, (2, 3, 1, 0)).reshape(KKC, Cout)
    w_mat = jnp.pad(w_mat, ((0, Kpad - KKC), (0, 0))).astype(compute_dtype)
    b_row = bias.reshape(1, Cout).astype(jnp.float32)

    # ---- pass A: conv + LeakyReLU + per-group BN partial stats -------------
    rows_per_img = Ho * Wo
    assert rows_per_img % 8 == 0, "Ho*Wo must be sublane (8) aligned"
    G = _pick_group(N, rows_per_img)
    num_groups = N // G
    rows_step = G * rows_per_img
    itx = jnp.dtype(compute_dtype).itemsize
    ity = jnp.dtype(y_dtype).itemsize
    cost_a = pl.CostEstimate(
        flops=2 * M * Kpad * Cout, transcendentals=0,
        bytes_accessed=(phases.size * itx + w_mat.size * itx
                        + M * Cout * ity + num_groups * 2 * Cout * 4))
    conv_kernel = _make_conv_kernel(K, G, Ho, Wo, Cin, KKC, Kpad, compute_dtype)
    y_flat, stats = pl.pallas_call(
        conv_kernel,
        grid=(num_groups,),
        in_specs=[
            pl.BlockSpec((G, Hh, Wh, 4 * Cin), lambda b: (b, 0, 0, 0)),
            pl.BlockSpec((Kpad, Cout), lambda b: (0, 0)),
            pl.BlockSpec((1, Cout), lambda b: (0, 0)),
        ],
        out_specs=(
            pl.BlockSpec((rows_step, Cout), lambda b: (b, 0)),
            pl.BlockSpec((None, 2, Cout), lambda b: (b, 0, 0)),
        ),
        out_shape=(
            jax.ShapeDtypeStruct((M, Cout), y_dtype),
            jax.ShapeDtypeStruct((num_groups, 2, Cout), jnp.float32),
        ),
        compiler_params=pltpu.CompilerParams(
            dimension_semantics=("parallel",),
            vmem_limit_bytes=48 * 1024 * 1024),
        cost_estimate=cost_a,
    )(phases, w_mat, b_row)

    # ---- fold BN: batch stats -> per-channel scale/shift (f32, in XLA) -----
    # TODO(synk): E[x^2]-E[x]^2 is cancellation-prone for very large M; switch
    # to a centered / Welford-style merge if tighter accuracy is ever needed.
    tot = jnp.sum(stats, axis=0)                           # (2, Cout)
    mean = tot[0] / float(M)
    var = jnp.maximum(tot[1] / float(M) - mean * mean, 0.0)  # biased variance
    scale = gamma.astype(jnp.float32) * jax.lax.rsqrt(var + eps)
    shift = beta.astype(jnp.float32) - mean * scale

    # ---- pass B: out = y * scale + shift at true Cout width ----------------
    tm = _pick_bn_tile(M)
    cost_b = pl.CostEstimate(
        flops=2 * M * Cout, transcendentals=0,
        bytes_accessed=M * Cout * (ity + 4) + 2 * Cout * 4)
    out_flat = pl.pallas_call(
        _bn_apply_kernel,
        grid=(M // tm,),
        in_specs=[
            pl.BlockSpec((tm, Cout), lambda i: (i, 0)),
            pl.BlockSpec((1, Cout), lambda i: (0, 0)),
            pl.BlockSpec((1, Cout), lambda i: (0, 0)),
        ],
        out_specs=pl.BlockSpec((tm, Cout), lambda i: (i, 0)),
        out_shape=jax.ShapeDtypeStruct((M, Cout), jnp.float32),
        compiler_params=pltpu.CompilerParams(
            dimension_semantics=("parallel",),
            vmem_limit_bytes=48 * 1024 * 1024),
        cost_estimate=cost_b,
    )(y_flat, scale.reshape(1, Cout), shift.reshape(1, Cout))

    out = out_flat.reshape(N, Ho, Wo, Cout)
    return jnp.transpose(out, (0, 3, 1, 2))                # back to NCHW


def downscale_reference(x, weight, bias, gamma, beta, *, stride=2, padding=2):
    y = jax.lax.conv_general_dilated(
        x, weight, (stride, stride),
        [(padding, padding), (padding, padding)],
        dimension_numbers=("NCHW", "OIHW", "NCHW"))
    y = y + bias.reshape(1, -1, 1, 1)
    y = jnp.where(y >= 0, y, 0.1 * y)
    mean = jnp.mean(y, axis=(0, 2, 3), keepdims=True)
    var = jnp.mean(jnp.square(y - mean), axis=(0, 2, 3), keepdims=True)
    y = (y - mean) * jax.lax.rsqrt(var + 1e-5)
    return y * gamma.reshape(1, -1, 1, 1) + beta.reshape(1, -1, 1, 1)


if __name__ == "__main__":
    in_channels, out_channels, K = 4, 8, 5
    N, H, W = 2, 16, 16

    key = jax.random.PRNGKey(0)
    kx, kw_, kb, kg, kbe = jax.random.split(key, 5)
    x = jax.random.normal(kx, (N, in_channels, H, W), dtype=jnp.float32)
    weight = 0.1 * jax.random.normal(
        kw_, (out_channels, in_channels, K, K), dtype=jnp.float32)
    bias = 0.1 * jax.random.normal(kb, (out_channels,), dtype=jnp.float32)
    gamma = 1.0 + 0.1 * jax.random.normal(kg, (out_channels,), dtype=jnp.float32)
    beta = 0.1 * jax.random.normal(kbe, (out_channels,), dtype=jnp.float32)

    ref = downscale_reference(x, weight, bias, gamma, beta)

    # Fast path (default): bf16 MXU compute + bf16 intermediate, f32 BN math.
    out = downscale_forward(x, weight, bias, gamma, beta)
    out = jax.block_until_ready(out)
    assert out.shape == (N, out_channels, H // 2, W // 2), out.shape
    assert jnp.allclose(out, ref, atol=5e-2, rtol=5e-2), \
        float(jnp.max(jnp.abs(out - ref)))

    # Strict-numerics path: f32 compute + f32 intermediate, tight tolerance.
    out32 = downscale_forward(x, weight, bias, gamma, beta,
                              compute_dtype=jnp.float32, y_dtype=jnp.float32)
    out32 = jax.block_until_ready(out32)
    assert jnp.allclose(out32, ref, atol=1e-4, rtol=1e-4), \
        float(jnp.max(jnp.abs(out32 - ref)))

    print("KERNEL_OK")
</pallas_src>

<mosaic_0001>
module attributes {stable_mosaic.version = 11 : i64} {
  func.func @_bn_apply_kernel(%arg0: i32, %arg1: memref<64x8xbf16, #tpu.memory_space<vmem>>, %arg2: memref<1x8xf32, #tpu.memory_space<vmem>>, %arg3: memref<1x8xf32, #tpu.memory_space<vmem>>, %arg4: memref<64x8xf32, #tpu.memory_space<vmem>>) attributes {dimension_semantics = [#tpu.dimension_semantics<parallel>], iteration_bounds = array<i64: 2>, scalar_prefetch = 0 : i64, scratch_operands = 0 : i64, tpu.core_type = #tpu.core_type<tc>, window_params = [{transform_indices = @transform_0, window_bounds = array<i64: 64, 8>}, {pipeline_mode = #tpu.pipeline_mode<synchronous>, transform_indices = @transform_1, window_bounds = array<i64: 1, 8>}, {pipeline_mode = #tpu.pipeline_mode<synchronous>, transform_indices = @transform_2, window_bounds = array<i64: 1, 8>}, {transform_indices = @transform_3, window_bounds = array<i64: 64, 8>}]} {
    %c0 = arith.constant 0 : index
    %c0_0 = arith.constant 0 : index
    %0 = vector.load %arg1[%c0, %c0_0] : memref<64x8xbf16, #tpu.memory_space<vmem>>, vector<64x8xbf16>
    %1 = arith.extf %0 : vector<64x8xbf16> to vector<64x8xf32>
    %c0_1 = arith.constant 0 : index
    %c0_2 = arith.constant 0 : index
    %2 = vector.load %arg2[%c0_1, %c0_2] : memref<1x8xf32, #tpu.memory_space<vmem>>, vector<1x8xf32>
    %3 = vector.broadcast %2 : vector<1x8xf32> to vector<64x8xf32>
    %4 = arith.mulf %1, %3 : vector<64x8xf32>
    %c0_3 = arith.constant 0 : index
    %c0_4 = arith.constant 0 : index
    %5 = vector.load %arg3[%c0_3, %c0_4] : memref<1x8xf32, #tpu.memory_space<vmem>>, vector<1x8xf32>
    %6 = vector.broadcast %5 : vector<1x8xf32> to vector<64x8xf32>
    %7 = arith.addf %4, %6 : vector<64x8xf32>
    %c0_5 = arith.constant 0 : index
    %c0_6 = arith.constant 0 : index
    %8 = vector.load %arg4[%c0_5, %c0_6] : memref<64x8xf32, #tpu.memory_space<vmem>>, vector<64x8xf32>
    tpu.vector_store %arg4[%c0_5, %c0_6], %7 {strides = array<i32>} : memref<64x8xf32, #tpu.memory_space<vmem>>, vector<64x8xf32>,
    return
  }
  func.func @transform_0(%arg0: i32) -> (i32, i32) {
    %c0_i32 = arith.constant 0 : i32
    %c0_i32_0 = arith.constant 0 : i32
    return %arg0, %c0_i32 : i32, i32
  }
  func.func @transform_1(%arg0: i32) -> (i32, i32) {
    %c0_i32 = arith.constant 0 : i32
    %c0_i32_0 = arith.constant 0 : i32
    %c0_i32_1 = arith.constant 0 : i32
    return %c0_i32, %c0_i32_0 : i32, i32
  }
  func.func @transform_2(%arg0: i32) -> (i32, i32) {
    %c0_i32 = arith.constant 0 : i32
    %c0_i32_0 = arith.constant 0 : i32
    %c0_i32_1 = arith.constant 0 : i32
    return %c0_i32, %c0_i32_0 : i32, i32
  }
  func.func @transform_3(%arg0: i32) -> (i32, i32) {
    %c0_i32 = arith.constant 0 : i32
    %c0_i32_0 = arith.constant 0 : i32
    return %arg0, %c0_i32 : i32, i32
  }
}

module attributes {stable_mosaic.version = 11 : i64} {
  func.func @kernel(%arg0: i32, %arg1: memref<1x10x10x16xbf16, #tpu.memory_space<vmem>>, %arg2: memref<128x8xbf16, #tpu.memory_space<vmem>>, %arg3: memref<1x8xf32, #tpu.memory_space<vmem>>, %arg4: memref<64x8xbf16, #tpu.memory_space<vmem>>, %arg5: memref<1x2x8xf32, #tpu.memory_space<vmem>>) attributes {dimension_semantics = [#tpu.dimension_semantics<parallel>], iteration_bounds = array<i64: 2>, scalar_prefetch = 0 : i64, scratch_operands = 0 : i64, tpu.core_type = #tpu.core_type<tc>, window_params = [{transform_indices = @transform_0, window_bounds = array<i64: 1, 10, 10, 16>}, {pipeline_mode = #tpu.pipeline_mode<synchronous>, transform_indices = @transform_1, window_bounds = array<i64: 128, 8>}, {pipeline_mode = #tpu.pipeline_mode<synchronous>, transform_indices = @transform_2, window_bounds = array<i64: 1, 8>}, {transform_indices = @transform_3, window_bounds = array<i64: 64, 8>}, {transform_indices = @transform_4, window_bounds = array<i64: 1, 2, 8>}]} {
    %c0 = arith.constant 0 : index
    %c0_0 = arith.constant 0 : index
    %c0_1 = arith.constant 0 : index
    %c0_2 = arith.constant 0 : index
    %0 = vector.load %arg1[%c0, %c0_0, %c0_1, %c0_2] : memref<1x10x10x16xbf16, #tpu.memory_space<vmem>>, vector<1x1x8x4xbf16>
    %1 = vector.shape_cast %0 : vector<1x1x8x4xbf16> to vector<8x4xbf16>
    %c0_3 = arith.constant 0 : index
    %c1 = arith.constant 1 : index
    %c0_4 = arith.constant 0 : index
    %c0_5 = arith.constant 0 : index
    %2 = vector.load %arg1[%c0_3, %c1, %c0_4, %c0_5] : memref<1x10x10x16xbf16, #tpu.memory_space<vmem>>, vector<1x1x8x4xbf16>
    %3 = vector.shape_cast %2 : vector<1x1x8x4xbf16> to vector<8x4xbf16>
    %c0_6 = arith.constant 0 : index
    %c2 = arith.constant 2 : index
    %c0_7 = arith.constant 0 : index
    %c0_8 = arith.constant 0 : index
    %4 = vector.load %arg1[%c0_6, %c2, %c0_7, %c0_8] : memref<1x10x10x16xbf16, #tpu.memory_space<vmem>>, vector<1x1x8x4xbf16>
    %5 = vector.shape_cast %4 : vector<1x1x8x4xbf16> to vector<8x4xbf16>
    %c0_9 = arith.constant 0 : index
    %c3 = arith.constant 3 : index
    %c0_10 = arith.constant 0 : index
    %c0_11 = arith.constant 0 : index
    %6 = vector.load %arg1[%c0_9, %c3, %c0_10, %c0_11] : memref<1x10x10x16xbf16, #tpu.memory_space<vmem>>, vector<1x1x8x4xbf16>
    %7 = vector.shape_cast %6 : vector<1x1x8x4xbf16> to vector<8x4xbf16>
    %c0_12 = arith.constant 0 : index
    %c4 = arith.constant 4 : index
    %c0_13 = arith.constant 0 : index
    %c0_14 = arith.constant 0 : index
    %8 = vector.load %arg1[%c0_12, %c4, %c0_13, %c0_14] : memref<1x10x10x16xbf16, #tpu.memory_space<vmem>>, vector<1x1x8x4xbf16>
    %9 = vector.shape_cast %8 : vector<1x1x8x4xbf16> to vector<8x4xbf16>
    %c0_15 = arith.constant 0 : index
    %c5 = arith.constant 5 : index
    %c0_16 = arith.constant 0 : index
    %c0_17 = arith.constant 0 : index
    %10 = vector.load %arg1[%c0_15, %c5, %c0_16, %c0_17] : memref<1x10x10x16xbf16, #tpu.memory_space<vmem>>, vector<1x1x8x4xbf16>
    %11 = vector.shape_cast %10 : vector<1x1x8x4xbf16> to vector<8x4xbf16>
    %c0_18 = arith.constant 0 : index
    %c6 = arith.constant 6 : index
    %c0_19 = arith.constant 0 : index
    %c0_20 = arith.constant 0 : index
    %12 = vector.load %arg1[%c0_18, %c6, %c0_19, %c0_20] : memref<1x10x10x16xbf16, #tpu.memory_space<vmem>>, vector<1x1x8x4xbf16>
    %13 = vector.shape_cast %12 : vector<1x1x8x4xbf16> to vector<8x4xbf16>
    %c0_21 = arith.constant 0 : index
    %c7 = arith.constant 7 : index
    %c0_22 = arith.constant 0 : index
    %c0_23 = arith.constant 0 : index
    %14 = vector.load %arg1[%c0_21, %c7, %c0_22, %c0_23] : memref<1x10x10x16xbf16, #tpu.memory_space<vmem>>, vector<1x1x8x4xbf16>
    %15 = vector.shape_cast %14 : vector<1x1x8x4xbf16> to vector<8x4xbf16>
    %16 = tpu.concatenate %1, %3, %5, %7, %9, %11, %13, %15 in 0 : vector<8x4xbf16>, vector<8x4xbf16>, vector<8x4xbf16>, vector<8x4xbf16>, vector<8x4xbf16>, vector<8x4xbf16>, vector<8x4xbf16>, vector<8x4xbf16> -> vector<64x4xbf16>
    %c0_24 = arith.constant 0 : index
    %c0_25 = arith.constant 0 : index
    %c0_26 = arith.constant 0 : index
    %c4_27 = arith.constant 4 : index
    %17 = vector.load %arg1[%c0_24, %c0_25, %c0_26, %c4_27] : memref<1x10x10x16xbf16, #tpu.memory_space<vmem>>, vector<1x1x8x4xbf16>
    %18 = vector.shape_cast %17 : vector<1x1x8x4xbf16> to vector<8x4xbf16>
    %c0_28 = arith.constant 0 : index
    %c1_29 = arith.constant 1 : index
    %c0_30 = arith.constant 0 : index
    %c4_31 = arith.constant 4 : index
    %19 = vector.load %arg1[%c0_28, %c1_29, %c0_30, %c4_31] : memref<1x10x10x16xbf16, #tpu.memory_space<vmem>>, vector<1x1x8x4xbf16>
    %20 = vector.shape_cast %19 : vector<1x1x8x4xbf16> to vector<8x4xbf16>
    %c0_32 = arith.constant 0 : index
    %c2_33 = arith.constant 2 : index
    %c0_34 = arith.constant 0 : index
    %c4_35 = arith.constant 4 : index
    %21 = vector.load %arg1[%c0_32, %c2_33, %c0_34, %c4_35] : memref<1x10x10x16xbf16, #tpu.memory_space<vmem>>, vector<1x1x8x4xbf16>
    %22 = vector.shape_cast %21 : vector<1x1x8x4xbf16> to vector<8x4xbf16>
    %c0_36 = arith.constant 0 : index
    %c3_37 = arith.constant 3 : index
    %c0_38 = arith.constant 0 : index
    %c4_39 = arith.constant 4 : index
    %23 = vector.load %arg1[%c0_36, %c3_37, %c0_38, %c4_39] : memref<1x10x10x16xbf16, #tpu.memory_space<vmem>>, vector<1x1x8x4xbf16>
    %24 = vector.shape_cast %23 : vector<1x1x8x4xbf16> to vector<8x4xbf16>
    %c0_40 = arith.constant 0 : index
    %c4_41 = arith.constant 4 : index
    %c0_42 = arith.constant 0 : index
    %c4_43 = arith.constant 4 : index
    %25 = vector.load %arg1[%c0_40, %c4_41, %c0_42, %c4_43] : memref<1x10x10x16xbf16, #tpu.memory_space<vmem>>, vector<1x1x8x4xbf16>
    %26 = vector.shape_cast %25 : vector<1x1x8x4xbf16> to vector<8x4xbf16>
    %c0_44 = arith.constant 0 : index
    %c5_45 = arith.constant 5 : index
    %c0_46 = arith.constant 0 : index
    %c4_47 = arith.constant 4 : index
    %27 = vector.load %arg1[%c0_44, %c5_45, %c0_46, %c4_47] : memref<1x10x10x16xbf16, #tpu.memory_space<vmem>>, vector<1x1x8x4xbf16>
    %28 = vector.shape_cast %27 : vector<1x1x8x4xbf16> to vector<8x4xbf16>
    %c0_48 = arith.constant 0 : index
    %c6_49 = arith.constant 6 : index
    %c0_50 = arith.constant 0 : index
    %c4_51 = arith.constant 4 : index
    %29 = vector.load %arg1[%c0_48, %c6_49, %c0_50, %c4_51] : memref<1x10x10x16xbf16, #tpu.memory_space<vmem>>, vector<1x1x8x4xbf16>
    %30 = vector.shape_cast %29 : vector<1x1x8x4xbf16> to vector<8x4xbf16>
    %c0_52 = arith.constant 0 : index
    %c7_53 = arith.constant 7 : index
    %c0_54 = arith.constant 0 : index
    %c4_55 = arith.constant 4 : index
    %31 = vector.load %arg1[%c0_52, %c7_53, %c0_54, %c4_55] : memref<1x10x10x16xbf16, #tpu.memory_space<vmem>>, vector<1x1x8x4xbf16>
    %32 = vector.shape_cast %31 : vector<1x1x8x4xbf16> to vector<8x4xbf16>
    %33 = tpu.concatenate %18, %20, %22, %24, %26, %28, %30, %32 in 0 : vector<8x4xbf16>, vector<8x4xbf16>, vector<8x4xbf16>, vector<8x4xbf16>, vector<8x4xbf16>, vector<8x4xbf16>, vector<8x4xbf16>, vector<8x4xbf16> -> vector<64x4xbf16>
    %c0_56 = arith.constant 0 : index
    %c0_57 = arith.constant 0 : index
    %c1_58 = arith.constant 1 : index
    %c0_59 = arith.constant 0 : index
    %34 = vector.load %arg1[%c0_56, %c0_57, %c1_58, %c0_59] : memref<1x10x10x16xbf16, #tpu.memory_space<vmem>>, vector<1x1x8x4xbf16>
    %35 = vector.shape_cast %34 : vector<1x1x8x4xbf16> to vector<8x4xbf16>
    %c0_60 = arith.constant 0 : index
    %c1_61 = arith.constant 1 : index
    %c1_62 = arith.constant 1 : index
    %c0_63 = arith.constant 0 : index
    %36 = vector.load %arg1[%c0_60, %c1_61, %c1_62, %c0_63] : memref<1x10x10x16xbf16, #tpu.memory_space<vmem>>, vector<1x1x8x4xbf16>
    %37 = vector.shape_cast %36 : vector<1x1x8x4xbf16> to vector<8x4xbf16>
    %c0_64 = arith.constant 0 : index
    %c2_65 = arith.constant 2 : index
    %c1_66 = arith.constant 1 : index
    %c0_67 = arith.constant 0 : index
    %38 = vector.load %arg1[%c0_64, %c2_65, %c1_66, %c0_67] : memref<1x10x10x16xbf16, #tpu.memory_space<vmem>>, vector<1x1x8x4xbf16>
    %39 = vector.shape_cast %38 : vector<1x1x8x4xbf16> to vector<8x4xbf16>
    %c0_68 = arith.constant 0 : index
    %c3_69 = arith.constant 3 : index
    %c1_70 = arith.constant 1 : index
    %c0_71 = arith.constant 0 : index
    %40 = vector.load %arg1[%c0_68, %c3_69, %c1_70, %c0_71] : memref<1x10x10x16xbf16, #tpu.memory_space<vmem>>, vector<1x1x8x4xbf16>
    %41 = vector.shape_cast %40 : vector<1x1x8x4xbf16> to vector<8x4xbf16>
    %c0_72 = arith.constant 0 : index
    %c4_73 = arith.constant 4 : index
    %c1_74 = arith.constant 1 : index
    %c0_75 = arith.constant 0 : index
    %42 = vector.load %arg1[%c0_72, %c4_73, %c1_74, %c0_75] : memref<1x10x10x16xbf16, #tpu.memory_space<vmem>>, vector<1x1x8x4xbf16>
    %43 = vector.shape_cast %42 : vector<1x1x8x4xbf16> to vector<8x4xbf16>
    %c0_76 = arith.constant 0 : index
    %c5_77 = arith.constant 5 : index
    %c1_78 = arith.constant 1 : index
    %c0_79 = arith.constant 0 : index
    %44 = vector.load %arg1[%c0_76, %c5_77, %c1_78, %c0_79] : memref<1x10x10x16xbf16, #tpu.memory_space<vmem>>, vector<1x1x8x4xbf16>
    %45 = vector.shape_cast %44 : vector<1x1x8x4xbf16> to vector<8x4xbf16>
    %c0_80 = arith.constant 0 : index
    %c6_81 = arith.constant 6 : index
    %c1_82 = arith.constant 1 : index
    %c0_83 = arith.constant 0 : index
    %46 = vector.load %arg1[%c0_80, %c6_81, %c1_82, %c0_83] : memref<1x10x10x16xbf16, #tpu.memory_space<vmem>>, vector<1x1x8x4xbf16>
    %47 = vector.shape_cast %46 : vector<1x1x8x4xbf16> to vector<8x4xbf16>
    %c0_84 = arith.constant 0 : index
    %c7_85 = arith.constant 7 : index
    %c1_86 = arith.constant 1 : index
    %c0_87 = arith.constant 0 : index
    %48 = vector.load %arg1[%c0_84, %c7_85, %c1_86, %c0_87] : memref<1x10x10x16xbf16, #tpu.memory_space<vmem>>, vector<1x1x8x4xbf16>
    %49 = vector.shape_cast %48 : vector<1x1x8x4xbf16> to vector<8x4xbf16>
    %50 = tpu.concatenate %35, %37, %39, %41, %43, %45, %47, %49 in 0 : vector<8x4xbf16>, vector<8x4xbf16>, vector<8x4xbf16>, vector<8x4xbf16>, vector<8x4xbf16>, vector<8x4xbf16>, vector<8x4xbf16>, vector<8x4xbf16> -> vector<64x4xbf16>
    %c0_88 = arith.constant 0 : index
    %c0_89 = arith.constant 0 : index
    %c1_90 = arith.constant 1 : index
    %c4_91 = arith.constant 4 : index
    %51 = vector.load %arg1[%c0_88, %c0_89, %c1_90, %c4_91] : memref<1x10x10x16xbf16, #tpu.memory_space<vmem>>, vector<1x1x8x4xbf16>
    %52 = vector.shape_cast %51 : vector<1x1x8x4xbf16> to vector<8x4xbf16>
    %c0_92 = arith.constant 0 : index
    %c1_93 = arith.constant 1 : index
    %c1_94 = arith.constant 1 : index
    %c4_95 = arith.constant 4 : index
    %53 = vector.load %arg1[%c0_92, %c1_93, %c1_94, %c4_95] : memref<1x10x10x16xbf16, #tpu.memory_space<vmem>>, vector<1x1x8x4xbf16>
    %54 = vector.shape_cast %53 : vector<1x1x8x4xbf16> to vector<8x4xbf16>
    %c0_96 = arith.constant 0 : index
    %c2_97 = arith.constant 2 : index
    %c1_98 = arith.constant 1 : index
    %c4_99 = arith.constant 4 : index
    %55 = vector.load %arg1[%c0_96, %c2_97, %c1_98, %c4_99] : memref<1x10x10x16xbf16, #tpu.memory_space<vmem>>, vector<1x1x8x4xbf16>
    %56 = vector.shape_cast %55 : vector<1x1x8x4xbf16> to vector<8x4xbf16>
    %c0_100 = arith.constant 0 : index
    %c3_101 = arith.constant 3 : index
    %c1_102 = arith.constant 1 : index
    %c4_103 = arith.constant 4 : index
    %57 = vector.load %arg1[%c0_100, %c3_101, %c1_102, %c4_103] : memref<1x10x10x16xbf16, #tpu.memory_space<vmem>>, vector<1x1x8x4xbf16>
    %58 = vector.shape_cast %57 : vector<1x1x8x4xbf16> to vector<8x4xbf16>
    %c0_104 = arith.constant 0 : index
    %c4_105 = arith.constant 4 : index
    %c1_106 = arith.constant 1 : index
    %c4_107 = arith.constant 4 : index
    %59 = vector.load %arg1[%c0_104, %c4_105, %c1_106, %c4_107] : memref<1x10x10x16xbf16, #tpu.memory_space<vmem>>, vector<1x1x8x4xbf16>
    %60 = vector.shape_cast %59 : vector<1x1x8x4xbf16> to vector<8x4xbf16>
    %c0_108 = arith.constant 0 : index
    %c5_109 = arith.constant 5 : index
    %c1_110 = arith.constant 1 : index
    %c4_111 = arith.constant 4 : index
    %61 = vector.load %arg1[%c0_108, %c5_109, %c1_110, %c4_111] : memref<1x10x10x16xbf16, #tpu.memory_space<vmem>>, vector<1x1x8x4xbf16>
    %62 = vector.shape_cast %61 : vector<1x1x8x4xbf16> to vector<8x4xbf16>
    %c0_112 = arith.constant 0 : index
    %c6_113 = arith.constant 6 : index
    %c1_114 = arith.constant 1 : index
    %c4_115 = arith.constant 4 : index
    %63 = vector.load %arg1[%c0_112, %c6_113, %c1_114, %c4_115] : memref<1x10x10x16xbf16, #tpu.memory_space<vmem>>, vector<1x1x8x4xbf16>
    %64 = vector.shape_cast %63 : vector<1x1x8x4xbf16> to vector<8x4xbf16>
    %c0_116 = arith.constant 0 : index
    %c7_117 = arith.constant 7 : index
    %c1_118 = arith.constant 1 : index
    %c4_119 = arith.constant 4 : index
    %65 = vector.load %arg1[%c0_116, %c7_117, %c1_118, %c4_119] : memref<1x10x10x16xbf16, #tpu.memory_space<vmem>>, vector<1x1x8x4xbf16>
    %66 = vector.shape_cast %65 : vector<1x1x8x4xbf16> to vector<8x4xbf16>
    %67 = tpu.concatenate %52, %54, %56, %58, %60, %62, %64, %66 in 0 : vector<8x4xbf16>, vector<8x4xbf16>, vector<8x4xbf16>, vector<8x4xbf16>, vector<8x4xbf16>, vector<8x4xbf16>, vector<8x4xbf16>, vector<8x4xbf16> -> vector<64x4xbf16>
    %c0_120 = arith.constant 0 : index
    %c0_121 = arith.constant 0 : index
    %c2_122 = arith.constant 2 : index
    %c0_123 = arith.constant 0 : index
    %68 = vector.load %arg1[%c0_120, %c0_121, %c2_122, %c0_123] : memref<1x10x10x16xbf16, #tpu.memory_space<vmem>>, vector<1x1x8x4xbf16>
    %69 = vector.shape_cast %68 : vector<1x1x8x4xbf16> to vector<8x4xbf16>
    %c0_124 = arith.constant 0 : index
    %c1_125 = arith.constant 1 : index
    %c2_126 = arith.constant 2 : index
    %c0_127 = arith.constant 0 : index
    %70 = vector.load %arg1[%c0_124, %c1_125, %c2_126, %c0_127] : memref<1x10x10x16xbf16, #tpu.memory_space<vmem>>, vector<1x1x8x4xbf16>
    %71 = vector.shape_cast %70 : vector<1x1x8x4xbf16> to vector<8x4xbf16>
    %c0_128 = arith.constant 0 : index
    %c2_129 = arith.constant 2 : index
    %c2_130 = arith.constant 2 : index
    %c0_131 = arith.constant 0 : index
    %72 = vector.load %arg1[%c0_128, %c2_129, %c2_130, %c0_131] : memref<1x10x10x16xbf16, #tpu.memory_space<vmem>>, vector<1x1x8x4xbf16>
    %73 = vector.shape_cast %72 : vector<1x1x8x4xbf16> to vector<8x4xbf16>
    %c0_132 = arith.constant 0 : index
    %c3_133 = arith.constant 3 : index
    %c2_134 = arith.constant 2 : index
    %c0_135 = arith.constant 0 : index
    %74 = vector.load %arg1[%c0_132, %c3_133, %c2_134, %c0_135] : memref<1x10x10x16xbf16, #tpu.memory_space<vmem>>, vector<1x1x8x4xbf16>
    %75 = vector.shape_cast %74 : vector<1x1x8x4xbf16> to vector<8x4xbf16>
    %c0_136 = arith.constant 0 : index
    %c4_137 = arith.constant 4 : index
    %c2_138 = arith.constant 2 : index
    %c0_139 = arith.constant 0 : index
    %76 = vector.load %arg1[%c0_136, %c4_137, %c2_138, %c0_139] : memref<1x10x10x16xbf16, #tpu.memory_space<vmem>>, vector<1x1x8x4xbf16>
    %77 = vector.shape_cast %76 : vector<1x1x8x4xbf16> to vector<8x4xbf16>
    %c0_140 = arith.constant 0 : index
    %c5_141 = arith.constant 5 : index
    %c2_142 = arith.constant 2 : index
    %c0_143 = arith.constant 0 : index
    %78 = vector.load %arg1[%c0_140, %c5_141, %c2_142, %c0_143] : memref<1x10x10x16xbf16, #tpu.memory_space<vmem>>, vector<1x1x8x4xbf16>
    %79 = vector.shape_cast %78 : vector<1x1x8x4xbf16> to vector<8x4xbf16>
    %c0_144 = arith.constant 0 : index
    %c6_145 = arith.constant 6 : index
    %c2_146 = arith.constant 2 : index
    %c0_147 = arith.constant 0 : index
    %80 = vector.load %arg1[%c0_144, %c6_145, %c2_146, %c0_147] : memref<1x10x10x16xbf16, #tpu.memory_space<vmem>>, vector<1x1x8x4xbf16>
    %81 = vector.shape_cast %80 : vector<1x1x8x4xbf16> to vector<8x4xbf16>
    %c0_148 = arith.constant 0 : index
    %c7_149 = arith.constant 7 : index
    %c2_150 = arith.constant 2 : index
    %c0_151 = arith.constant 0 : index
    %82 = vector.load %arg1[%c0_148, %c7_149, %c2_150, %c0_151] : memref<1x10x10x16xbf16, #tpu.memory_space<vmem>>, vector<1x1x8x4xbf16>
    %83 = vector.shape_cast %82 : vector<1x1x8x4xbf16> to vector<8x4xbf16>
    %84 = tpu.concatenate %69, %71, %73, %75, %77, %79, %81, %83 in 0 : vector<8x4xbf16>, vector<8x4xbf16>, vector<8x4xbf16>, vector<8x4xbf16>, vector<8x4xbf16>, vector<8x4xbf16>, vector<8x4xbf16>, vector<8x4xbf16> -> vector<64x4xbf16>
    %c0_152 = arith.constant 0 : index
    %c0_153 = arith.constant 0 : index
    %c0_154 = arith.constant 0 : index
    %c8 = arith.constant 8 : index
    %85 = vector.load %arg1[%c0_152, %c0_153, %c0_154, %c8] : memref<1x10x10x16xbf16, #tpu.memory_space<vmem>>, vector<1x1x8x4xbf16>
    %86 = vector.shape_cast %85 : vector<1x1x8x4xbf16> to vector<8x4xbf16>
    %c0_155 = arith.constant 0 : index
    %c1_156 = arith.constant 1 : index
    %c0_157 = arith.constant 0 : index
    %c8_158 = arith.constant 8 : index
    %87 = vector.load %arg1[%c0_155, %c1_156, %c0_157, %c8_158] : memref<1x10x10x16xbf16, #tpu.memory_space<vmem>>, vector<1x1x8x4xbf16>
    %88 = vector.shape_cast %87 : vector<1x1x8x4xbf16> to vector<8x4xbf16>
    %c0_159 = arith.constant 0 : index
    %c2_160 = arith.constant 2 : index
    %c0_161 = arith.constant 0 : index
    %c8_162 = arith.constant 8 : index
    %89 = vector.load %arg1[%c0_159, %c2_160, %c0_161, %c8_162] : memref<1x10x10x16xbf16, #tpu.memory_space<vmem>>, vector<1x1x8x4xbf16>
    %90 = vector.shape_cast %89 : vector<1x1x8x4xbf16> to vector<8x4xbf16>
    %c0_163 = arith.constant 0 : index
    %c3_164 = arith.constant 3 : index
    %c0_165 = arith.constant 0 : index
    %c8_166 = arith.constant 8 : index
    %91 = vector.load %arg1[%c0_163, %c3_164, %c0_165, %c8_166] : memref<1x10x10x16xbf16, #tpu.memory_space<vmem>>, vector<1x1x8x4xbf16>
    %92 = vector.shape_cast %91 : vector<1x1x8x4xbf16> to vector<8x4xbf16>
    %c0_167 = arith.constant 0 : index
    %c4_168 = arith.constant 4 : index
    %c0_169 = arith.constant 0 : index
    %c8_170 = arith.constant 8 : index
    %93 = vector.load %arg1[%c0_167, %c4_168, %c0_169, %c8_170] : memref<1x10x10x16xbf16, #tpu.memory_space<vmem>>, vector<1x1x8x4xbf16>
    %94 = vector.shape_cast %93 : vector<1x1x8x4xbf16> to vector<8x4xbf16>
    %c0_171 = arith.constant 0 : index
    %c5_172 = arith.constant 5 : index
    %c0_173 = arith.constant 0 : index
    %c8_174 = arith.constant 8 : index
    %95 = vector.load %arg1[%c0_171, %c5_172, %c0_173, %c8_174] : memref<1x10x10x16xbf16, #tpu.memory_space<vmem>>, vector<1x1x8x4xbf16>
    %96 = vector.shape_cast %95 : vector<1x1x8x4xbf16> to vector<8x4xbf16>
    %c0_175 = arith.constant 0 : index
    %c6_176 = arith.constant 6 : index
    %c0_177 = arith.constant 0 : index
    %c8_178 = arith.constant 8 : index
    %97 = vector.load %arg1[%c0_175, %c6_176, %c0_177, %c8_178] : memref<1x10x10x16xbf16, #tpu.memory_space<vmem>>, vector<1x1x8x4xbf16>
    %98 = vector.shape_cast %97 : vector<1x1x8x4xbf16> to vector<8x4xbf16>
    %c0_179 = arith.constant 0 : index
    %c7_180 = arith.constant 7 : index
    %c0_181 = arith.constant 0 : index
    %c8_182 = arith.constant 8 : index
    %99 = vector.load %arg1[%c0_179, %c7_180, %c0_181, %c8_182] : memref<1x10x10x16xbf16, #tpu.memory_space<vmem>>, vector<1x1x8x4xbf16>
    %100 = vector.shape_cast %99 : vector<1x1x8x4xbf16> to vector<8x4xbf16>
    %101 = tpu.concatenate %86, %88, %90, %92, %94, %96, %98, %100 in 0 : vector<8x4xbf16>, vector<8x4xbf16>, vector<8x4xbf16>, vector<8x4xbf16>, vector<8x4xbf16>, vector<8x4xbf16>, vector<8x4xbf16>, vector<8x4xbf16> -> vector<64x4xbf16>
    %c0_183 = arith.constant 0 : index
    %c0_184 = arith.constant 0 : index
    %c0_185 = arith.constant 0 : index
    %c12 = arith.constant 12 : index
    %102 = vector.load %arg1[%c0_183, %c0_184, %c0_185, %c12] : memref<1x10x10x16xbf16, #tpu.memory_space<vmem>>, vector<1x1x8x4xbf16>
    %103 = vector.shape_cast %102 : vector<1x1x8x4xbf16> to vector<8x4xbf16>
    %c0_186 = arith.constant 0 : index
    %c1_187 = arith.constant 1 : index
    %c0_188 = arith.constant 0 : index
    %c12_189 = arith.constant 12 : index
    %104 = vector.load %arg1[%c0_186, %c1_187, %c0_188, %c12_189] : memref<1x10x10x16xbf16, #tpu.memory_space<vmem>>, vector<1x1x8x4xbf16>
    %105 = vector.shape_cast %104 : vector<1x1x8x4xbf16> to vector<8x4xbf16>
    %c0_190 = arith.constant 0 : index
    %c2_191 = arith.constant 2 : index
    %c0_192 = arith.constant 0 : index
    %c12_193 = arith.constant 12 : index
    %106 = vector.load %arg1[%c0_190, %c2_191, %c0_192, %c12_193] : memref<1x10x10x16xbf16, #tpu.memory_space<vmem>>, vector<1x1x8x4xbf16>
    %107 = vector.shape_cast %106 : vector<1x1x8x4xbf16> to vector<8x4xbf16>
    %c0_194 = arith.constant 0 : index
    %c3_195 = arith.constant 3 : index
    %c0_196 = arith.constant 0 : index
    %c12_197 = arith.constant 12 : index
    %108 = vector.load %arg1[%c0_194, %c3_195, %c0_196, %c12_197] : memref<1x10x10x16xbf16, #tpu.memory_space<vmem>>, vector<1x1x8x4xbf16>
    %109 = vector.shape_cast %108 : vector<1x1x8x4xbf16> to vector<8x4xbf16>
    %c0_198 = arith.constant 0 : index
    %c4_199 = arith.constant 4 : index
    %c0_200 = arith.constant 0 : index
    %c12_201 = arith.constant 12 : index
    %110 = vector.load %arg1[%c0_198, %c4_199, %c0_200, %c12_201] : memref<1x10x10x16xbf16, #tpu.memory_space<vmem>>, vector<1x1x8x4xbf16>
    %111 = vector.shape_cast %110 : vector<1x1x8x4xbf16> to vector<8x4xbf16>
    %c0_202 = arith.constant 0 : index
    %c5_203 = arith.constant 5 : index
    %c0_204 = arith.constant 0 : index
    %c12_205 = arith.constant 12 : index
    %112 = vector.load %arg1[%c0_202, %c5_203, %c0_204, %c12_205] : memref<1x10x10x16xbf16, #tpu.memory_space<vmem>>, vector<1x1x8x4xbf16>
    %113 = vector.shape_cast %112 : vector<1x1x8x4xbf16> to vector<8x4xbf16>
    %c0_206 = arith.constant 0 : index
    %c6_207 = arith.constant 6 : index
    %c0_208 = arith.constant 0 : index
    %c12_209 = arith.constant 12 : index
    %114 = vector.load %arg1[%c0_206, %c6_207, %c0_208, %c12_209] : memref<1x10x10x16xbf16, #tpu.memory_space<vmem>>, vector<1x1x8x4xbf16>
    %115 = vector.shape_cast %114 : vector<1x1x8x4xbf16> to vector<8x4xbf16>
    %c0_210 = arith.constant 0 : index
    %c7_211 = arith.constant 7 : index
    %c0_212 = arith.constant 0 : index
    %c12_213 = arith.constant 12 : index
    %116 = vector.load %arg1[%c0_210, %c7_211, %c0_212, %c12_213] : memref<1x10x10x16xbf16, #tpu.memory_space<vmem>>, vector<1x1x8x4xbf16>
    %117 = vector.shape_cast %116 : vector<1x1x8x4xbf16> to vector<8x4xbf16>
    %118 = tpu.concatenate %103, %105, %107, %109, %111, %113, %115, %117 in 0 : vector<8x4xbf16>, vector<8x4xbf16>, vector<8x4xbf16>, vector<8x4xbf16>, vector<8x4xbf16>, vector<8x4xbf16>, vector<8x4xbf16>, vector<8x4xbf16> -> vector<64x4xbf16>
    %c0_214 = arith.constant 0 : index
    %c0_215 = arith.constant 0 : index
    %c1_216 = arith.constant 1 : index
    %c8_217 = arith.constant 8 : index
    %119 = vector.load %arg1[%c0_214, %c0_215, %c1_216, %c8_217] : memref<1x10x10x16xbf16, #tpu.memory_space<vmem>>, vector<1x1x8x4xbf16>
    %120 = vector.shape_cast %119 : vector<1x1x8x4xbf16> to vector<8x4xbf16>
    %c0_218 = arith.constant 0 : index
    %c1_219 = arith.constant 1 : index
    %c1_220 = arith.constant 1 : index
    %c8_221 = arith.constant 8 : index
    %121 = vector.load %arg1[%c0_218, %c1_219, %c1_220, %c8_221] : memref<1x10x10x16xbf16, #tpu.memory_space<vmem>>, vector<1x1x8x4xbf16>
    %122 = vector.shape_cast %121 : vector<1x1x8x4xbf16> to vector<8x4xbf16>
    %c0_222 = arith.constant 0 : index
    %c2_223 = arith.constant 2 : index
    %c1_224 = arith.constant 1 : index
    %c8_225 = arith.constant 8 : index
    %123 = vector.load %arg1[%c0_222, %c2_223, %c1_224, %c8_225] : memref<1x10x10x16xbf16, #tpu.memory_space<vmem>>, vector<1x1x8x4xbf16>
    %124 = vector.shape_cast %123 : vector<1x1x8x4xbf16> to vector<8x4xbf16>
    %c0_226 = arith.constant 0 : index
    %c3_227 = arith.constant 3 : index
    %c1_228 = arith.constant 1 : index
    %c8_229 = arith.constant 8 : index
    %125 = vector.load %arg1[%c0_226, %c3_227, %c1_228, %c8_229] : memref<1x10x10x16xbf16, #tpu.memory_space<vmem>>, vector<1x1x8x4xbf16>
    %126 = vector.shape_cast %125 : vector<1x1x8x4xbf16> to vector<8x4xbf16>
    %c0_230 = arith.constant 0 : index
    %c4_231 = arith.constant 4 : index
    %c1_232 = arith.constant 1 : index
    %c8_233 = arith.constant 8 : index
    %127 = vector.load %arg1[%c0_230, %c4_231, %c1_232, %c8_233] : memref<1x10x10x16xbf16, #tpu.memory_space<vmem>>, vector<1x1x8x4xbf16>
    %128 = vector.shape_cast %127 : vector<1x1x8x4xbf16> to vector<8x4xbf16>
    %c0_234 = arith.constant 0 : index
    %c5_235 = arith.constant 5 : index
    %c1_236 = arith.constant 1 : index
    %c8_237 = arith.constant 8 : index
    %129 = vector.load %arg1[%c0_234, %c5_235, %c1_236, %c8_237] : memref<1x10x10x16xbf16, #tpu.memory_space<vmem>>, vector<1x1x8x4xbf16>
    %130 = vector.shape_cast %129 : vector<1x1x8x4xbf16> to vector<8x4xbf16>
    %c0_238 = arith.constant 0 : index
    %c6_239 = arith.constant 6 : index
    %c1_240 = arith.constant 1 : index
    %c8_241 = arith.constant 8 : index
    %131 = vector.load %arg1[%c0_238, %c6_239, %c1_240, %c8_241] : memref<1x10x10x16xbf16, #tpu.memory_space<vmem>>, vector<1x1x8x4xbf16>
    %132 = vector.shape_cast %131 : vector<1x1x8x4xbf16> to vector<8x4xbf16>
    %c0_242 = arith.constant 0 : index
    %c7_243 = arith.constant 7 : index
    %c1_244 = arith.constant 1 : index
    %c8_245 = arith.constant 8 : index
    %133 = vector.load %arg1[%c0_242, %c7_243, %c1_244, %c8_245] : memref<1x10x10x16xbf16, #tpu.memory_space<vmem>>, vector<1x1x8x4xbf16>
    %134 = vector.shape_cast %133 : vector<1x1x8x4xbf16> to vector<8x4xbf16>
    %135 = tpu.concatenate %120, %122, %124, %126, %128, %130, %132, %134 in 0 : vector<8x4xbf16>, vector<8x4xbf16>, vector<8x4xbf16>, vector<8x4xbf16>, vector<8x4xbf16>, vector<8x4xbf16>, vector<8x4xbf16>, vector<8x4xbf16> -> vector<64x4xbf16>
    %c0_246 = arith.constant 0 : index
    %c0_247 = arith.constant 0 : index
    %c1_248 = arith.constant 1 : index
    %c12_249 = arith.constant 12 : index
    %136 = vector.load %arg1[%c0_246, %c0_247, %c1_248, %c12_249] : memref<1x10x10x16xbf16, #tpu.memory_space<vmem>>, vector<1x1x8x4xbf16>
    %137 = vector.shape_cast %136 : vector<1x1x8x4xbf16> to vector<8x4xbf16>
    %c0_250 = arith.constant 0 : index
    %c1_251 = arith.constant 1 : index
    %c1_252 = arith.constant 1 : index
    %c12_253 = arith.constant 12 : index
    %138 = vector.load %arg1[%c0_250, %c1_251, %c1_252, %c12_253] : memref<1x10x10x16xbf16, #tpu.memory_space<vmem>>, vector<1x1x8x4xbf16>
    %139 = vector.shape_cast %138 : vector<1x1x8x4xbf16> to vector<8x4xbf16>
    %c0_254 = arith.constant 0 : index
    %c2_255 = arith.constant 2 : index
    %c1_256 = arith.constant 1 : index
    %c12_257 = arith.constant 12 : index
    %140 = vector.load %arg1[%c0_254, %c2_255, %c1_256, %c12_257] : memref<1x10x10x16xbf16, #tpu.memory_space<vmem>>, vector<1x1x8x4xbf16>
    %141 = vector.shape_cast %140 : vector<1x1x8x4xbf16> to vector<8x4xbf16>
    %c0_258 = arith.constant 0 : index
    %c3_259 = arith.constant 3 : index
    %c1_260 = arith.constant 1 : index
    %c12_261 = arith.constant 12 : index
    %142 = vector.load %arg1[%c0_258, %c3_259, %c1_260, %c12_261] : memref<1x10x10x16xbf16, #tpu.memory_space<vmem>>, vector<1x1x8x4xbf16>
    %143 = vector.shape_cast %142 : vector<1x1x8x4xbf16> to vector<8x4xbf16>
    %c0_262 = arith.constant 0 : index
    %c4_263 = arith.constant 4 : index
    %c1_264 = arith.constant 1 : index
    %c12_265 = arith.constant 12 : index
    %144 = vector.load %arg1[%c0_262, %c4_263, %c1_264, %c12_265] : memref<1x10x10x16xbf16, #tpu.memory_space<vmem>>, vector<1x1x8x4xbf16>
    %145 = vector.shape_cast %144 : vector<1x1x8x4xbf16> to vector<8x4xbf16>
    %c0_266 = arith.constant 0 : index
    %c5_267 = arith.constant 5 : index
    %c1_268 = arith.constant 1 : index
    %c12_269 = arith.constant 12 : index
    %146 = vector.load %arg1[%c0_266, %c5_267, %c1_268, %c12_269] : memref<1x10x10x16xbf16, #tpu.memory_space<vmem>>, vector<1x1x8x4xbf16>
    %147 = vector.shape_cast %146 : vector<1x1x8x4xbf16> to vector<8x4xbf16>
    %c0_270 = arith.constant 0 : index
    %c6_271 = arith.constant 6 : index
    %c1_272 = arith.constant 1 : index
    %c12_273 = arith.constant 12 : index
    %148 = vector.load %arg1[%c0_270, %c6_271, %c1_272, %c12_273] : memref<1x10x10x16xbf16, #tpu.memory_space<vmem>>, vector<1x1x8x4xbf16>
    %149 = vector.shape_cast %148 : vector<1x1x8x4xbf16> to vector<8x4xbf16>
    %c0_274 = arith.constant 0 : index
    %c7_275 = arith.constant 7 : index
    %c1_276 = arith.constant 1 : index
    %c12_277 = arith.constant 12 : index
    %150 = vector.load %arg1[%c0_274, %c7_275, %c1_276, %c12_277] : memref<1x10x10x16xbf16, #tpu.memory_space<vmem>>, vector<1x1x8x4xbf16>
    %151 = vector.shape_cast %150 : vector<1x1x8x4xbf16> to vector<8x4xbf16>
    %152 = tpu.concatenate %137, %139, %141, %143, %145, %147, %149, %151 in 0 : vector<8x4xbf16>, vector<8x4xbf16>, vector<8x4xbf16>, vector<8x4xbf16>, vector<8x4xbf16>, vector<8x4xbf16>, vector<8x4xbf16>, vector<8x4xbf16> -> vector<64x4xbf16>
    %c0_278 = arith.constant 0 : index
    %c0_279 = arith.constant 0 : index
    %c2_280 = arith.constant 2 : index
    %c8_281 = arith.constant 8 : index
    %153 = vector.load %arg1[%c0_278, %c0_279, %c2_280, %c8_281] : memref<1x10x10x16xbf16, #tpu.memory_space<vmem>>, vector<1x1x8x4xbf16>
    %154 = vector.shape_cast %153 : vector<1x1x8x4xbf16> to vector<8x4xbf16>
    %c0_282 = arith.constant 0 : index
    %c1_283 = arith.constant 1 : index
    %c2_284 = arith.constant 2 : index
    %c8_285 = arith.constant 8 : index
    %155 = vector.load %arg1[%c0_282, %c1_283, %c2_284, %c8_285] : memref<1x10x10x16xbf16, #tpu.memory_space<vmem>>, vector<1x1x8x4xbf16>
    %156 = vector.shape_cast %155 : vector<1x1x8x4xbf16> to vector<8x4xbf16>
    %c0_286 = arith.constant 0 : index
    %c2_287 = arith.constant 2 : index
    %c2_288 = arith.constant 2 : index
    %c8_289 = arith.constant 8 : index
    %157 = vector.load %arg1[%c0_286, %c2_287, %c2_288, %c8_289] : memref<1x10x10x16xbf16, #tpu.memory_space<vmem>>, vector<1x1x8x4xbf16>
    %158 = vector.shape_cast %157 : vector<1x1x8x4xbf16> to vector<8x4xbf16>
    %c0_290 = arith.constant 0 : index
    %c3_291 = arith.constant 3 : index
    %c2_292 = arith.constant 2 : index
    %c8_293 = arith.constant 8 : index
    %159 = vector.load %arg1[%c0_290, %c3_291, %c2_292, %c8_293] : memref<1x10x10x16xbf16, #tpu.memory_space<vmem>>, vector<1x1x8x4xbf16>
    %160 = vector.shape_cast %159 : vector<1x1x8x4xbf16> to vector<8x4xbf16>
    %c0_294 = arith.constant 0 : index
    %c4_295 = arith.constant 4 : index
    %c2_296 = arith.constant 2 : index
    %c8_297 = arith.constant 8 : index
    %161 = vector.load %arg1[%c0_294, %c4_295, %c2_296, %c8_297] : memref<1x10x10x16xbf16, #tpu.memory_space<vmem>>, vector<1x1x8x4xbf16>
    %162 = vector.shape_cast %161 : vector<1x1x8x4xbf16> to vector<8x4xbf16>
    %c0_298 = arith.constant 0 : index
    %c5_299 = arith.constant 5 : index
    %c2_300 = arith.constant 2 : index
    %c8_301 = arith.constant 8 : index
    %163 = vector.load %arg1[%c0_298, %c5_299, %c2_300, %c8_301] : memref<1x10x10x16xbf16, #tpu.memory_space<vmem>>, vector<1x1x8x4xbf16>
    %164 = vector.shape_cast %163 : vector<1x1x8x4xbf16> to vector<8x4xbf16>
    %c0_302 = arith.constant 0 : index
    %c6_303 = arith.constant 6 : index
    %c2_304 = arith.constant 2 : index
    %c8_305 = arith.constant 8 : index
    %165 = vector.load %arg1[%c0_302, %c6_303, %c2_304, %c8_305] : memref<1x10x10x16xbf16, #tpu.memory_space<vmem>>, vector<1x1x8x4xbf16>
    %166 = vector.shape_cast %165 : vector<1x1x8x4xbf16> to vector<8x4xbf16>
    %c0_306 = arith.constant 0 : index
    %c7_307 = arith.constant 7 : index
    %c2_308 = arith.constant 2 : index
    %c8_309 = arith.constant 8 : index
    %167 = vector.load %arg1[%c0_306, %c7_307, %c2_308, %c8_309] : memref<1x10x10x16xbf16, #tpu.memory_space<vmem>>, vector<1x1x8x4xbf16>
    %168 = vector.shape_cast %167 : vector<1x1x8x4xbf16> to vector<8x4xbf16>
    %169 = tpu.concatenate %154, %156, %158, %160, %162, %164, %166, %168 in 0 : vector<8x4xbf16>, vector<8x4xbf16>, vector<8x4xbf16>, vector<8x4xbf16>, vector<8x4xbf16>, vector<8x4xbf16>, vector<8x4xbf16>, vector<8x4xbf16> -> vector<64x4xbf16>
    %c0_310 = arith.constant 0 : index
    %c1_311 = arith.constant 1 : index
    %c0_312 = arith.constant 0 : index
    %c0_313 = arith.constant 0 : index
    %170 = vector.load %arg1[%c0_310, %c1_311, %c0_312, %c0_313] : memref<1x10x10x16xbf16, #tpu.memory_space<vmem>>, vector<1x1x8x4xbf16>
    %171 = vector.shape_cast %170 : vector<1x1x8x4xbf16> to vector<8x4xbf16>
    %c0_314 = arith.constant 0 : index
    %c2_315 = arith.constant 2 : index
    %c0_316 = arith.constant 0 : index
    %c0_317 = arith.constant 0 : index
    %172 = vector.load %arg1[%c0_314, %c2_315, %c0_316, %c0_317] : memref<1x10x10x16xbf16, #tpu.memory_space<vmem>>, vector<1x1x8x4xbf16>
    %173 = vector.shape_cast %172 : vector<1x1x8x4xbf16> to vector<8x4xbf16>
    %c0_318 = arith.constant 0 : index
    %c3_319 = arith.constant 3 : index
    %c0_320 = arith.constant 0 : index
    %c0_321 = arith.constant 0 : index
    %174 = vector.load %arg1[%c0_318, %c3_319, %c0_320, %c0_321] : memref<1x10x10x16xbf16, #tpu.memory_space<vmem>>, vector<1x1x8x4xbf16>
    %175 = vector.shape_cast %174 : vector<1x1x8x4xbf16> to vector<8x4xbf16>
    %c0_322 = arith.constant 0 : index
    %c4_323 = arith.constant 4 : index
    %c0_324 = arith.constant 0 : index
    %c0_325 = arith.constant 0 : index
    %176 = vector.load %arg1[%c0_322, %c4_323, %c0_324, %c0_325] : memref<1x10x10x16xbf16, #tpu.memory_space<vmem>>, vector<1x1x8x4xbf16>
    %177 = vector.shape_cast %176 : vector<1x1x8x4xbf16> to vector<8x4xbf16>
    %c0_326 = arith.constant 0 : index
    %c5_327 = arith.constant 5 : index
    %c0_328 = arith.constant 0 : index
    %c0_329 = arith.constant 0 : index
    %178 = vector.load %arg1[%c0_326, %c5_327, %c0_328, %c0_329] : memref<1x10x10x16xbf16, #tpu.memory_space<vmem>>, vector<1x1x8x4xbf16>
    %179 = vector.shape_cast %178 : vector<1x1x8x4xbf16> to vector<8x4xbf16>
    %c0_330 = arith.constant 0 : index
    %c6_331 = arith.constant 6 : index
    %c0_332 = arith.constant 0 : index
    %c0_333 = arith.constant 0 : index
    %180 = vector.load %arg1[%c0_330, %c6_331, %c0_332, %c0_333] : memref<1x10x10x16xbf16, #tpu.memory_space<vmem>>, vector<1x1x8x4xbf16>
    %181 = vector.shape_cast %180 : vector<1x1x8x4xbf16> to vector<8x4xbf16>
    %c0_334 = arith.constant 0 : index
    %c7_335 = arith.constant 7 : index
    %c0_336 = arith.constant 0 : index
    %c0_337 = arith.constant 0 : index
    %182 = vector.load %arg1[%c0_334, %c7_335, %c0_336, %c0_337] : memref<1x10x10x16xbf16, #tpu.memory_space<vmem>>, vector<1x1x8x4xbf16>
    %183 = vector.shape_cast %182 : vector<1x1x8x4xbf16> to vector<8x4xbf16>
    %c0_338 = arith.constant 0 : index
    %c8_339 = arith.constant 8 : index
    %c0_340 = arith.constant 0 : index
    %c0_341 = arith.constant 0 : index
    %184 = vector.load %arg1[%c0_338, %c8_339, %c0_340, %c0_341] : memref<1x10x10x16xbf16, #tpu.memory_space<vmem>>, vector<1x1x8x4xbf16>
    %185 = vector.shape_cast %184 : vector<1x1x8x4xbf16> to vector<8x4xbf16>
    %186 = tpu.concatenate %171, %173, %175, %177, %179, %181, %183, %185 in 0 : vector<8x4xbf16>, vector<8x4xbf16>, vector<8x4xbf16>, vector<8x4xbf16>, vector<8x4xbf16>, vector<8x4xbf16>, vector<8x4xbf16>, vector<8x4xbf16> -> vector<64x4xbf16>
    %c0_342 = arith.constant 0 : index
    %c1_343 = arith.constant 1 : index
    %c0_344 = arith.constant 0 : index
    %c4_345 = arith.constant 4 : index
    %187 = vector.load %arg1[%c0_342, %c1_343, %c0_344, %c4_345] : memref<1x10x10x16xbf16, #tpu.memory_space<vmem>>, vector<1x1x8x4xbf16>
    %188 = vector.shape_cast %187 : vector<1x1x8x4xbf16> to vector<8x4xbf16>
    %c0_346 = arith.constant 0 : index
    %c2_347 = arith.constant 2 : index
    %c0_348 = arith.constant 0 : index
    %c4_349 = arith.constant 4 : index
    %189 = vector.load %arg1[%c0_346, %c2_347, %c0_348, %c4_349] : memref<1x10x10x16xbf16, #tpu.memory_space<vmem>>, vector<1x1x8x4xbf16>
    %190 = vector.shape_cast %189 : vector<1x1x8x4xbf16> to vector<8x4xbf16>
    %c0_350 = arith.constant 0 : index
    %c3_351 = arith.constant 3 : index
    %c0_352 = arith.constant 0 : index
    %c4_353 = arith.constant 4 : index
    %191 = vector.load %arg1[%c0_350, %c3_351, %c0_352, %c4_353] : memref<1x10x10x16xbf16, #tpu.memory_space<vmem>>, vector<1x1x8x4xbf16>
    %192 = vector.shape_cast %191 : vector<1x1x8x4xbf16> to vector<8x4xbf16>
    %c0_354 = arith.constant 0 : index
    %c4_355 = arith.constant 4 : index
    %c0_356 = arith.constant 0 : index
    %c4_357 = arith.constant 4 : index
    %193 = vector.load %arg1[%c0_354, %c4_355, %c0_356, %c4_357] : memref<1x10x10x16xbf16, #tpu.memory_space<vmem>>, vector<1x1x8x4xbf16>
    %194 = vector.shape_cast %193 : vector<1x1x8x4xbf16> to vector<8x4xbf16>
    %c0_358 = arith.constant 0 : index
    %c5_359 = arith.constant 5 : index
    %c0_360 = arith.constant 0 : index
    %c4_361 = arith.constant 4 : index
    %195 = vector.load %arg1[%c0_358, %c5_359, %c0_360, %c4_361] : memref<1x10x10x16xbf16, #tpu.memory_space<vmem>>, vector<1x1x8x4xbf16>
    %196 = vector.shape_cast %195 : vector<1x1x8x4xbf16> to vector<8x4xbf16>
    %c0_362 = arith.constant 0 : index
    %c6_363 = arith.constant 6 : index
    %c0_364 = arith.constant 0 : index
    %c4_365 = arith.constant 4 : index
    %197 = vector.load %arg1[%c0_362, %c6_363, %c0_364, %c4_365] : memref<1x10x10x16xbf16, #tpu.memory_space<vmem>>, vector<1x1x8x4xbf16>
    %198 = vector.shape_cast %197 : vector<1x1x8x4xbf16> to vector<8x4xbf16>
    %c0_366 = arith.constant 0 : index
    %c7_367 = arith.constant 7 : index
    %c0_368 = arith.constant 0 : index
    %c4_369 = arith.constant 4 : index
    %199 = vector.load %arg1[%c0_366, %c7_367, %c0_368, %c4_369] : memref<1x10x10x16xbf16, #tpu.memory_space<vmem>>, vector<1x1x8x4xbf16>
    %200 = vector.shape_cast %199 : vector<1x1x8x4xbf16> to vector<8x4xbf16>
    %c0_370 = arith.constant 0 : index
    %c8_371 = arith.constant 8 : index
    %c0_372 = arith.constant 0 : index
    %c4_373 = arith.constant 4 : index
    %201 = vector.load %arg1[%c0_370, %c8_371, %c0_372, %c4_373] : memref<1x10x10x16xbf16, #tpu.memory_space<vmem>>, vector<1x1x8x4xbf16>
    %202 = vector.shape_cast %201 : vector<1x1x8x4xbf16> to vector<8x4xbf16>
    %203 = tpu.concatenate %188, %190, %192, %194, %196, %198, %200, %202 in 0 : vector<8x4xbf16>, vector<8x4xbf16>, vector<8x4xbf16>, vector<8x4xbf16>, vector<8x4xbf16>, vector<8x4xbf16>, vector<8x4xbf16>, vector<8x4xbf16> -> vector<64x4xbf16>
    %c0_374 = arith.constant 0 : index
    %c1_375 = arith.constant 1 : index
    %c1_376 = arith.constant 1 : index
    %c0_377 = arith.constant 0 : index
    %204 = vector.load %arg1[%c0_374, %c1_375, %c1_376, %c0_377] : memref<1x10x10x16xbf16, #tpu.memory_space<vmem>>, vector<1x1x8x4xbf16>
    %205 = vector.shape_cast %204 : vector<1x1x8x4xbf16> to vector<8x4xbf16>
    %c0_378 = arith.constant 0 : index
    %c2_379 = arith.constant 2 : index
    %c1_380 = arith.constant 1 : index
    %c0_381 = arith.constant 0 : index
    %206 = vector.load %arg1[%c0_378, %c2_379, %c1_380, %c0_381] : memref<1x10x10x16xbf16, #tpu.memory_space<vmem>>, vector<1x1x8x4xbf16>
    %207 = vector.shape_cast %206 : vector<1x1x8x4xbf16> to vector<8x4xbf16>
    %c0_382 = arith.constant 0 : index
    %c3_383 = arith.constant 3 : index
    %c1_384 = arith.constant 1 : index
    %c0_385 = arith.constant 0 : index
    %208 = vector.load %arg1[%c0_382, %c3_383, %c1_384, %c0_385] : memref<1x10x10x16xbf16, #tpu.memory_space<vmem>>, vector<1x1x8x4xbf16>
    %209 = vector.shape_cast %208 : vector<1x1x8x4xbf16> to vector<8x4xbf16>
    %c0_386 = arith.constant 0 : index
    %c4_387 = arith.constant 4 : index
    %c1_388 = arith.constant 1 : index
    %c0_389 = arith.constant 0 : index
    %210 = vector.load %arg1[%c0_386, %c4_387, %c1_388, %c0_389] : memref<1x10x10x16xbf16, #tpu.memory_space<vmem>>, vector<1x1x8x4xbf16>
    %211 = vector.shape_cast %210 : vector<1x1x8x4xbf16> to vector<8x4xbf16>
    %c0_390 = arith.constant 0 : index
    %c5_391 = arith.constant 5 : index
    %c1_392 = arith.constant 1 : index
    %c0_393 = arith.constant 0 : index
    %212 = vector.load %arg1[%c0_390, %c5_391, %c1_392, %c0_393] : memref<1x10x10x16xbf16, #tpu.memory_space<vmem>>, vector<1x1x8x4xbf16>
    %213 = vector.shape_cast %212 : vector<1x1x8x4xbf16> to vector<8x4xbf16>
    %c0_394 = arith.constant 0 : index
    %c6_395 = arith.constant 6 : index
    %c1_396 = arith.constant 1 : index
    %c0_397 = arith.constant 0 : index
    %214 = vector.load %arg1[%c0_394, %c6_395, %c1_396, %c0_397] : memref<1x10x10x16xbf16, #tpu.memory_space<vmem>>, vector<1x1x8x4xbf16>
    %215 = vector.shape_cast %214 : vector<1x1x8x4xbf16> to vector<8x4xbf16>
    %c0_398 = arith.constant 0 : index
    %c7_399 = arith.constant 7 : index
    %c1_400 = arith.constant 1 : index
    %c0_401 = arith.constant 0 : index
    %216 = vector.load %arg1[%c0_398, %c7_399, %c1_400, %c0_401] : memref<1x10x10x16xbf16, #tpu.memory_space<vmem>>, vector<1x1x8x4xbf16>
    %217 = vector.shape_cast %216 : vector<1x1x8x4xbf16> to vector<8x4xbf16>
    %c0_402 = arith.constant 0 : index
    %c8_403 = arith.constant 8 : index
    %c1_404 = arith.constant 1 : index
    %c0_405 = arith.constant 0 : index
    %218 = vector.load %arg1[%c0_402, %c8_403, %c1_404, %c0_405] : memref<1x10x10x16xbf16, #tpu.memory_space<vmem>>, vector<1x1x8x4xbf16>
    %219 = vector.shape_cast %218 : vector<1x1x8x4xbf16> to vector<8x4xbf16>
    %220 = tpu.concatenate %205, %207, %209, %211, %213, %215, %217, %219 in 0 : vector<8x4xbf16>, vector<8x4xbf16>, vector<8x4xbf16>, vector<8x4xbf16>, vector<8x4xbf16>, vector<8x4xbf16>, vector<8x4xbf16>, vector<8x4xbf16> -> vector<64x4xbf16>
    %c0_406 = arith.constant 0 : index
    %c1_407 = arith.constant 1 : index
    %c1_408 = arith.constant 1 : index
    %c4_409 = arith.constant 4 : index
    %221 = vector.load %arg1[%c0_406, %c1_407, %c1_408, %c4_409] : memref<1x10x10x16xbf16, #tpu.memory_space<vmem>>, vector<1x1x8x4xbf16>
    %222 = vector.shape_cast %221 : vector<1x1x8x4xbf16> to vector<8x4xbf16>
    %c0_410 = arith.constant 0 : index
    %c2_411 = arith.constant 2 : index
    %c1_412 = arith.constant 1 : index
    %c4_413 = arith.constant 4 : index
    %223 = vector.load %arg1[%c0_410, %c2_411, %c1_412, %c4_413] : memref<1x10x10x16xbf16, #tpu.memory_space<vmem>>, vector<1x1x8x4xbf16>
    %224 = vector.shape_cast %223 : vector<1x1x8x4xbf16> to vector<8x4xbf16>
    %c0_414 = arith.constant 0 : index
    %c3_415 = arith.constant 3 : index
    %c1_416 = arith.constant 1 : index
    %c4_417 = arith.constant 4 : index
    %225 = vector.load %arg1[%c0_414, %c3_415, %c1_416, %c4_417] : memref<1x10x10x16xbf16, #tpu.memory_space<vmem>>, vector<1x1x8x4xbf16>
    %226 = vector.shape_cast %225 : vector<1x1x8x4xbf16> to vector<8x4xbf16>
    %c0_418 = arith.constant 0 : index
    %c4_419 = arith.constant 4 : index
    %c1_420 = arith.constant 1 : index
    %c4_421 = arith.constant 4 : index
    %227 = vector.load %arg1[%c0_418, %c4_419, %c1_420, %c4_421] : memref<1x10x10x16xbf16, #tpu.memory_space<vmem>>, vector<1x1x8x4xbf16>
    %228 = vector.shape_cast %227 : vector<1x1x8x4xbf16> to vector<8x4xbf16>
    %c0_422 = arith.constant 0 : index
    %c5_423 = arith.constant 5 : index
    %c1_424 = arith.constant 1 : index
    %c4_425 = arith.constant 4 : index
    %229 = vector.load %arg1[%c0_422, %c5_423, %c1_424, %c4_425] : memref<1x10x10x16xbf16, #tpu.memory_space<vmem>>, vector<1x1x8x4xbf16>
    %230 = vector.shape_cast %229 : vector<1x1x8x4xbf16> to vector<8x4xbf16>
    %c0_426 = arith.constant 0 : index
    %c6_427 = arith.constant 6 : index
    %c1_428 = arith.constant 1 : index
    %c4_429 = arith.constant 4 : index
    %231 = vector.load %arg1[%c0_426, %c6_427, %c1_428, %c4_429] : memref<1x10x10x16xbf16, #tpu.memory_space<vmem>>, vector<1x1x8x4xbf16>
    %232 = vector.shape_cast %231 : vector<1x1x8x4xbf16> to vector<8x4xbf16>
    %c0_430 = arith.constant 0 : index
    %c7_431 = arith.constant 7 : index
    %c1_432 = arith.constant 1 : index
    %c4_433 = arith.constant 4 : index
    %233 = vector.load %arg1[%c0_430, %c7_431, %c1_432, %c4_433] : memref<1x10x10x16xbf16, #tpu.memory_space<vmem>>, vector<1x1x8x4xbf16>
    %234 = vector.shape_cast %233 : vector<1x1x8x4xbf16> to vector<8x4xbf16>
    %c0_434 = arith.constant 0 : index
    %c8_435 = arith.constant 8 : index
    %c1_436 = arith.constant 1 : index
    %c4_437 = arith.constant 4 : index
    %235 = vector.load %arg1[%c0_434, %c8_435, %c1_436, %c4_437] : memref<1x10x10x16xbf16, #tpu.memory_space<vmem>>, vector<1x1x8x4xbf16>
    %236 = vector.shape_cast %235 : vector<1x1x8x4xbf16> to vector<8x4xbf16>
    %237 = tpu.concatenate %222, %224, %226, %228, %230, %232, %234, %236 in 0 : vector<8x4xbf16>, vector<8x4xbf16>, vector<8x4xbf16>, vector<8x4xbf16>, vector<8x4xbf16>, vector<8x4xbf16>, vector<8x4xbf16>, vector<8x4xbf16> -> vector<64x4xbf16>
    %c0_438 = arith.constant 0 : index
    %c1_439 = arith.constant 1 : index
    %c2_440 = arith.constant 2 : index
    %c0_441 = arith.constant 0 : index
    %238 = vector.load %arg1[%c0_438, %c1_439, %c2_440, %c0_441] : memref<1x10x10x16xbf16, #tpu.memory_space<vmem>>, vector<1x1x8x4xbf16>
    %239 = vector.shape_cast %238 : vector<1x1x8x4xbf16> to vector<8x4xbf16>
    %c0_442 = arith.constant 0 : index
    %c2_443 = arith.constant 2 : index
    %c2_444 = arith.constant 2 : index
    %c0_445 = arith.constant 0 : index
    %240 = vector.load %arg1[%c0_442, %c2_443, %c2_444, %c0_445] : memref<1x10x10x16xbf16, #tpu.memory_space<vmem>>, vector<1x1x8x4xbf16>
    %241 = vector.shape_cast %240 : vector<1x1x8x4xbf16> to vector<8x4xbf16>
    %c0_446 = arith.constant 0 : index
    %c3_447 = arith.constant 3 : index
    %c2_448 = arith.constant 2 : index
    %c0_449 = arith.constant 0 : index
    %242 = vector.load %arg1[%c0_446, %c3_447, %c2_448, %c0_449] : memref<1x10x10x16xbf16, #tpu.memory_space<vmem>>, vector<1x1x8x4xbf16>
    %243 = vector.shape_cast %242 : vector<1x1x8x4xbf16> to vector<8x4xbf16>
    %c0_450 = arith.constant 0 : index
    %c4_451 = arith.constant 4 : index
    %c2_452 = arith.constant 2 : index
    %c0_453 = arith.constant 0 : index
    %244 = vector.load %arg1[%c0_450, %c4_451, %c2_452, %c0_453] : memref<1x10x10x16xbf16, #tpu.memory_space<vmem>>, vector<1x1x8x4xbf16>
    %245 = vector.shape_cast %244 : vector<1x1x8x4xbf16> to vector<8x4xbf16>
    %c0_454 = arith.constant 0 : index
    %c5_455 = arith.constant 5 : index
    %c2_456 = arith.constant 2 : index
    %c0_457 = arith.constant 0 : index
    %246 = vector.load %arg1[%c0_454, %c5_455, %c2_456, %c0_457] : memref<1x10x10x16xbf16, #tpu.memory_space<vmem>>, vector<1x1x8x4xbf16>
    %247 = vector.shape_cast %246 : vector<1x1x8x4xbf16> to vector<8x4xbf16>
    %c0_458 = arith.constant 0 : index
    %c6_459 = arith.constant 6 : index
    %c2_460 = arith.constant 2 : index
    %c0_461 = arith.constant 0 : index
    %248 = vector.load %arg1[%c0_458, %c6_459, %c2_460, %c0_461] : memref<1x10x10x16xbf16, #tpu.memory_space<vmem>>, vector<1x1x8x4xbf16>
    %249 = vector.shape_cast %248 : vector<1x1x8x4xbf16> to vector<8x4xbf16>
    %c0_462 = arith.constant 0 : index
    %c7_463 = arith.constant 7 : index
    %c2_464 = arith.constant 2 : index
    %c0_465 = arith.constant 0 : index
    %250 = vector.load %arg1[%c0_462, %c7_463, %c2_464, %c0_465] : memref<1x10x10x16xbf16, #tpu.memory_space<vmem>>, vector<1x1x8x4xbf16>
    %251 = vector.shape_cast %250 : vector<1x1x8x4xbf16> to vector<8x4xbf16>
    %c0_466 = arith.constant 0 : index
    %c8_467 = arith.constant 8 : index
    %c2_468 = arith.constant 2 : index
    %c0_469 = arith.constant 0 : index
    %252 = vector.load %arg1[%c0_466, %c8_467, %c2_468, %c0_469] : memref<1x10x10x16xbf16, #tpu.memory_space<vmem>>, vector<1x1x8x4xbf16>
    %253 = vector.shape_cast %252 : vector<1x1x8x4xbf16> to vector<8x4xbf16>
    %254 = tpu.concatenate %239, %241, %243, %245, %247, %249, %251, %253 in 0 : vector<8x4xbf16>, vector<8x4xbf16>, vector<8x4xbf16>, vector<8x4xbf16>, vector<8x4xbf16>, vector<8x4xbf16>, vector<8x4xbf16>, vector<8x4xbf16> -> vector<64x4xbf16>
    %c0_470 = arith.constant 0 : index
    %c1_471 = arith.constant 1 : index
    %c0_472 = arith.constant 0 : index
    %c8_473 = arith.constant 8 : index
    %255 = vector.load %arg1[%c0_470, %c1_471, %c0_472, %c8_473] : memref<1x10x10x16xbf16, #tpu.memory_space<vmem>>, vector<1x1x8x4xbf16>
    %256 = vector.shape_cast %255 : vector<1x1x8x4xbf16> to vector<8x4xbf16>
    %c0_474 = arith.constant 0 : index
    %c2_475 = arith.constant 2 : index
    %c0_476 = arith.constant 0 : index
    %c8_477 = arith.constant 8 : index
    %257 = vector.load %arg1[%c0_474, %c2_475, %c0_476, %c8_477] : memref<1x10x10x16xbf16, #tpu.memory_space<vmem>>, vector<1x1x8x4xbf16>
    %258 = vector.shape_cast %257 : vector<1x1x8x4xbf16> to vector<8x4xbf16>
    %c0_478 = arith.constant 0 : index
    %c3_479 = arith.constant 3 : index
    %c0_480 = arith.constant 0 : index
    %c8_481 = arith.constant 8 : index
    %259 = vector.load %arg1[%c0_478, %c3_479, %c0_480, %c8_481] : memref<1x10x10x16xbf16, #tpu.memory_space<vmem>>, vector<1x1x8x4xbf16>
    %260 = vector.shape_cast %259 : vector<1x1x8x4xbf16> to vector<8x4xbf16>
    %c0_482 = arith.constant 0 : index
    %c4_483 = arith.constant 4 : index
    %c0_484 = arith.constant 0 : index
    %c8_485 = arith.constant 8 : index
    %261 = vector.load %arg1[%c0_482, %c4_483, %c0_484, %c8_485] : memref<1x10x10x16xbf16, #tpu.memory_space<vmem>>, vector<1x1x8x4xbf16>
    %262 = vector.shape_cast %261 : vector<1x1x8x4xbf16> to vector<8x4xbf16>
    %c0_486 = arith.constant 0 : index
    %c5_487 = arith.constant 5 : index
    %c0_488 = arith.constant 0 : index
    %c8_489 = arith.constant 8 : index
    %263 = vector.load %arg1[%c0_486, %c5_487, %c0_488, %c8_489] : memref<1x10x10x16xbf16, #tpu.memory_space<vmem>>, vector<1x1x8x4xbf16>
    %264 = vector.shape_cast %263 : vector<1x1x8x4xbf16> to vector<8x4xbf16>
    %c0_490 = arith.constant 0 : index
    %c6_491 = arith.constant 6 : index
    %c0_492 = arith.constant 0 : index
    %c8_493 = arith.constant 8 : index
    %265 = vector.load %arg1[%c0_490, %c6_491, %c0_492, %c8_493] : memref<1x10x10x16xbf16, #tpu.memory_space<vmem>>, vector<1x1x8x4xbf16>
    %266 = vector.shape_cast %265 : vector<1x1x8x4xbf16> to vector<8x4xbf16>
    %c0_494 = arith.constant 0 : index
    %c7_495 = arith.constant 7 : index
    %c0_496 = arith.constant 0 : index
    %c8_497 = arith.constant 8 : index
    %267 = vector.load %arg1[%c0_494, %c7_495, %c0_496, %c8_497] : memref<1x10x10x16xbf16, #tpu.memory_space<vmem>>, vector<1x1x8x4xbf16>
    %268 = vector.shape_cast %267 : vector<1x1x8x4xbf16> to vector<8x4xbf16>
    %c0_498 = arith.constant 0 : index
    %c8_499 = arith.constant 8 : index
    %c0_500 = arith.constant 0 : index
    %c8_501 = arith.constant 8 : index
    %269 = vector.load %arg1[%c0_498, %c8_499, %c0_500, %c8_501] : memref<1x10x10x16xbf16, #tpu.memory_space<vmem>>, vector<1x1x8x4xbf16>
    %270 = vector.shape_cast %269 : vector<1x1x8x4xbf16> to vector<8x4xbf16>
    %271 = tpu.concatenate %256, %258, %260, %262, %264, %266, %268, %270 in 0 : vector<8x4xbf16>, vector<8x4xbf16>, vector<8x4xbf16>, vector<8x4xbf16>, vector<8x4xbf16>, vector<8x4xbf16>, vector<8x4xbf16>, vector<8x4xbf16> -> vector<64x4xbf16>
    %c0_502 = arith.constant 0 : index
    %c1_503 = arith.constant 1 : index
    %c0_504 = arith.constant 0 : index
    %c12_505 = arith.constant 12 : index
    %272 = vector.load %arg1[%c0_502, %c1_503, %c0_504, %c12_505] : memref<1x10x10x16xbf16, #tpu.memory_space<vmem>>, vector<1x1x8x4xbf16>
    %273 = vector.shape_cast %272 : vector<1x1x8x4xbf16> to vector<8x4xbf16>
    %c0_506 = arith.constant 0 : index
    %c2_507 = arith.constant 2 : index
    %c0_508 = arith.constant 0 : index
    %c12_509 = arith.constant 12 : index
    %274 = vector.load %arg1[%c0_506, %c2_507, %c0_508, %c12_509] : memref<1x10x10x16xbf16, #tpu.memory_space<vmem>>, vector<1x1x8x4xbf16>
    %275 = vector.shape_cast %274 : vector<1x1x8x4xbf16> to vector<8x4xbf16>
    %c0_510 = arith.constant 0 : index
    %c3_511 = arith.constant 3 : index
    %c0_512 = arith.constant 0 : index
    %c12_513 = arith.constant 12 : index
    %276 = vector.load %arg1[%c0_510, %c3_511, %c0_512, %c12_513] : memref<1x10x10x16xbf16, #tpu.memory_space<vmem>>, vector<1x1x8x4xbf16>
    %277 = vector.shape_cast %276 : vector<1x1x8x4xbf16> to vector<8x4xbf16>
    %c0_514 = arith.constant 0 : index
    %c4_515 = arith.constant 4 : index
    %c0_516 = arith.constant 0 : index
    %c12_517 = arith.constant 12 : index
    %278 = vector.load %arg1[%c0_514, %c4_515, %c0_516, %c12_517] : memref<1x10x10x16xbf16, #tpu.memory_space<vmem>>, vector<1x1x8x4xbf16>
    %279 = vector.shape_cast %278 : vector<1x1x8x4xbf16> to vector<8x4xbf16>
    %c0_518 = arith.constant 0 : index
    %c5_519 = arith.constant 5 : index
    %c0_520 = arith.constant 0 : index
    %c12_521 = arith.constant 12 : index
    %280 = vector.load %arg1[%c0_518, %c5_519, %c0_520, %c12_521] : memref<1x10x10x16xbf16, #tpu.memory_space<vmem>>, vector<1x1x8x4xbf16>
    %281 = vector.shape_cast %280 : vector<1x1x8x4xbf16> to vector<8x4xbf16>
    %c0_522 = arith.constant 0 : index
    %c6_523 = arith.constant 6 : index
    %c0_524 = arith.constant 0 : index
    %c12_525 = arith.constant 12 : index
    %282 = vector.load %arg1[%c0_522, %c6_523, %c0_524, %c12_525] : memref<1x10x10x16xbf16, #tpu.memory_space<vmem>>, vector<1x1x8x4xbf16>
    %283 = vector.shape_cast %282 : vector<1x1x8x4xbf16> to vector<8x4xbf16>
    %c0_526 = arith.constant 0 : index
    %c7_527 = arith.constant 7 : index
    %c0_528 = arith.constant 0 : index
    %c12_529 = arith.constant 12 : index
    %284 = vector.load %arg1[%c0_526, %c7_527, %c0_528, %c12_529] : memref<1x10x10x16xbf16, #tpu.memory_space<vmem>>, vector<1x1x8x4xbf16>
    %285 = vector.shape_cast %284 : vector<1x1x8x4xbf16> to vector<8x4xbf16>
    %c0_530 = arith.constant 0 : index
    %c8_531 = arith.constant 8 : index
    %c0_532 = arith.constant 0 : index
    %c12_533 = arith.constant 12 : index
    %286 = vector.load %arg1[%c0_530, %c8_531, %c0_532, %c12_533] : memref<1x10x10x16xbf16, #tpu.memory_space<vmem>>, vector<1x1x8x4xbf16>
    %287 = vector.shape_cast %286 : vector<1x1x8x4xbf16> to vector<8x4xbf16>
    %288 = tpu.concatenate %273, %275, %277, %279, %281, %283, %285, %287 in 0 : vector<8x4xbf16>, vector<8x4xbf16>, vector<8x4xbf16>, vector<8x4xbf16>, vector<8x4xbf16>, vector<8x4xbf16>, vector<8x4xbf16>, vector<8x4xbf16> -> vector<64x4xbf16>
    %c0_534 = arith.constant 0 : index
    %c1_535 = arith.constant 1 : index
    %c1_536 = arith.constant 1 : index
    %c8_537 = arith.constant 8 : index
    %289 = vector.load %arg1[%c0_534, %c1_535, %c1_536, %c8_537] : memref<1x10x10x16xbf16, #tpu.memory_space<vmem>>, vector<1x1x8x4xbf16>
    %290 = vector.shape_cast %289 : vector<1x1x8x4xbf16> to vector<8x4xbf16>
    %c0_538 = arith.constant 0 : index
    %c2_539 = arith.constant 2 : index
    %c1_540 = arith.constant 1 : index
    %c8_541 = arith.constant 8 : index
    %291 = vector.load %arg1[%c0_538, %c2_539, %c1_540, %c8_541] : memref<1x10x10x16xbf16, #tpu.memory_space<vmem>>, vector<1x1x8x4xbf16>
    %292 = vector.shape_cast %291 : vector<1x1x8x4xbf16> to vector<8x4xbf16>
    %c0_542 = arith.constant 0 : index
    %c3_543 = arith.constant 3 : index
    %c1_544 = arith.constant 1 : index
    %c8_545 = arith.constant 8 : index
    %293 = vector.load %arg1[%c0_542, %c3_543, %c1_544, %c8_545] : memref<1x10x10x16xbf16, #tpu.memory_space<vmem>>, vector<1x1x8x4xbf16>
    %294 = vector.shape_cast %293 : vector<1x1x8x4xbf16> to vector<8x4xbf16>
    %c0_546 = arith.constant 0 : index
    %c4_547 = arith.constant 4 : index
    %c1_548 = arith.constant 1 : index
    %c8_549 = arith.constant 8 : index
    %295 = vector.load %arg1[%c0_546, %c4_547, %c1_548, %c8_549] : memref<1x10x10x16xbf16, #tpu.memory_space<vmem>>, vector<1x1x8x4xbf16>
    %296 = vector.shape_cast %295 : vector<1x1x8x4xbf16> to vector<8x4xbf16>
    %c0_550 = arith.constant 0 : index
    %c5_551 = arith.constant 5 : index
    %c1_552 = arith.constant 1 : index
    %c8_553 = arith.constant 8 : index
    %297 = vector.load %arg1[%c0_550, %c5_551, %c1_552, %c8_553] : memref<1x10x10x16xbf16, #tpu.memory_space<vmem>>, vector<1x1x8x4xbf16>
    %298 = vector.shape_cast %297 : vector<1x1x8x4xbf16> to vector<8x4xbf16>
    %c0_554 = arith.constant 0 : index
    %c6_555 = arith.constant 6 : index
    %c1_556 = arith.constant 1 : index
    %c8_557 = arith.constant 8 : index
    %299 = vector.load %arg1[%c0_554, %c6_555, %c1_556, %c8_557] : memref<1x10x10x16xbf16, #tpu.memory_space<vmem>>, vector<1x1x8x4xbf16>
    %300 = vector.shape_cast %299 : vector<1x1x8x4xbf16> to vector<8x4xbf16>
    %c0_558 = arith.constant 0 : index
    %c7_559 = arith.constant 7 : index
    %c1_560 = arith.constant 1 : index
    %c8_561 = arith.constant 8 : index
    %301 = vector.load %arg1[%c0_558, %c7_559, %c1_560, %c8_561] : memref<1x10x10x16xbf16, #tpu.memory_space<vmem>>, vector<1x1x8x4xbf16>
    %302 = vector.shape_cast %301 : vector<1x1x8x4xbf16> to vector<8x4xbf16>
    %c0_562 = arith.constant 0 : index
    %c8_563 = arith.constant 8 : index
    %c1_564 = arith.constant 1 : index
    %c8_565 = arith.constant 8 : index
    %303 = vector.load %arg1[%c0_562, %c8_563, %c1_564, %c8_565] : memref<1x10x10x16xbf16, #tpu.memory_space<vmem>>, vector<1x1x8x4xbf16>
    %304 = vector.shape_cast %303 : vector<1x1x8x4xbf16> to vector<8x4xbf16>
    %305 = tpu.concatenate %290, %292, %294, %296, %298, %300, %302, %304 in 0 : vector<8x4xbf16>, vector<8x4xbf16>, vector<8x4xbf16>, vector<8x4xbf16>, vector<8x4xbf16>, vector<8x4xbf16>, vector<8x4xbf16>, vector<8x4xbf16> -> vector<64x4xbf16>
    %c0_566 = arith.constant 0 : index
    %c1_567 = arith.constant 1 : index
    %c1_568 = arith.constant 1 : index
    %c12_569 = arith.constant 12 : index
    %306 = vector.load %arg1[%c0_566, %c1_567, %c1_568, %c12_569] : memref<1x10x10x16xbf16, #tpu.memory_space<vmem>>, vector<1x1x8x4xbf16>
    %307 = vector.shape_cast %306 : vector<1x1x8x4xbf16> to vector<8x4xbf16>
    %c0_570 = arith.constant 0 : index
    %c2_571 = arith.constant 2 : index
    %c1_572 = arith.constant 1 : index
    %c12_573 = arith.constant 12 : index
    %308 = vector.load %arg1[%c0_570, %c2_571, %c1_572, %c12_573] : memref<1x10x10x16xbf16, #tpu.memory_space<vmem>>, vector<1x1x8x4xbf16>
    %309 = vector.shape_cast %308 : vector<1x1x8x4xbf16> to vector<8x4xbf16>
    %c0_574 = arith.constant 0 : index
    %c3_575 = arith.constant 3 : index
    %c1_576 = arith.constant 1 : index
    %c12_577 = arith.constant 12 : index
    %310 = vector.load %arg1[%c0_574, %c3_575, %c1_576, %c12_577] : memref<1x10x10x16xbf16, #tpu.memory_space<vmem>>, vector<1x1x8x4xbf16>
    %311 = vector.shape_cast %310 : vector<1x1x8x4xbf16> to vector<8x4xbf16>
    %c0_578 = arith.constant 0 : index
    %c4_579 = arith.constant 4 : index
    %c1_580 = arith.constant 1 : index
    %c12_581 = arith.constant 12 : index
    %312 = vector.load %arg1[%c0_578, %c4_579, %c1_580, %c12_581] : memref<1x10x10x16xbf16, #tpu.memory_space<vmem>>, vector<1x1x8x4xbf16>
    %313 = vector.shape_cast %312 : vector<1x1x8x4xbf16> to vector<8x4xbf16>
    %c0_582 = arith.constant 0 : index
    %c5_583 = arith.constant 5 : index
    %c1_584 = arith.constant 1 : index
    %c12_585 = arith.constant 12 : index
    %314 = vector.load %arg1[%c0_582, %c5_583, %c1_584, %c12_585] : memref<1x10x10x16xbf16, #tpu.memory_space<vmem>>, vector<1x1x8x4xbf16>
    %315 = vector.shape_cast %314 : vector<1x1x8x4xbf16> to vector<8x4xbf16>
    %c0_586 = arith.constant 0 : index
    %c6_587 = arith.constant 6 : index
    %c1_588 = arith.constant 1 : index
    %c12_589 = arith.constant 12 : index
    %316 = vector.load %arg1[%c0_586, %c6_587, %c1_588, %c12_589] : memref<1x10x10x16xbf16, #tpu.memory_space<vmem>>, vector<1x1x8x4xbf16>
    %317 = vector.shape_cast %316 : vector<1x1x8x4xbf16> to vector<8x4xbf16>
    %c0_590 = arith.constant 0 : index
    %c7_591 = arith.constant 7 : index
    %c1_592 = arith.constant 1 : index
    %c12_593 = arith.constant 12 : index
    %318 = vector.load %arg1[%c0_590, %c7_591, %c1_592, %c12_593] : memref<1x10x10x16xbf16, #tpu.memory_space<vmem>>, vector<1x1x8x4xbf16>
    %319 = vector.shape_cast %318 : vector<1x1x8x4xbf16> to vector<8x4xbf16>
    %c0_594 = arith.constant 0 : index
    %c8_595 = arith.constant 8 : index
    %c1_596 = arith.constant 1 : index
    %c12_597 = arith.constant 12 : index
    %320 = vector.load %arg1[%c0_594, %c8_595, %c1_596, %c12_597] : memref<1x10x10x16xbf16, #tpu.memory_space<vmem>>, vector<1x1x8x4xbf16>
    %321 = vector.shape_cast %320 : vector<1x1x8x4xbf16> to vector<8x4xbf16>
    %322 = tpu.concatenate %307, %309, %311, %313, %315, %317, %319, %321 in 0 : vector<8x4xbf16>, vector<8x4xbf16>, vector<8x4xbf16>, vector<8x4xbf16>, vector<8x4xbf16>, vector<8x4xbf16>, vector<8x4xbf16>, vector<8x4xbf16> -> vector<64x4xbf16>
    %c0_598 = arith.constant 0 : index
    %c1_599 = arith.constant 1 : index
    %c2_600 = arith.constant 2 : index
    %c8_601 = arith.constant 8 : index
    %323 = vector.load %arg1[%c0_598, %c1_599, %c2_600, %c8_601] : memref<1x10x10x16xbf16, #tpu.memory_space<vmem>>, vector<1x1x8x4xbf16>
    %324 = vector.shape_cast %323 : vector<1x1x8x4xbf16> to vector<8x4xbf16>
    %c0_602 = arith.constant 0 : index
    %c2_603 = arith.constant 2 : index
    %c2_604 = arith.constant 2 : index
    %c8_605 = arith.constant 8 : index
    %325 = vector.load %arg1[%c0_602, %c2_603, %c2_604, %c8_605] : memref<1x10x10x16xbf16, #tpu.memory_space<vmem>>, vector<1x1x8x4xbf16>
    %326 = vector.shape_cast %325 : vector<1x1x8x4xbf16> to vector<8x4xbf16>
    %c0_606 = arith.constant 0 : index
    %c3_607 = arith.constant 3 : index
    %c2_608 = arith.constant 2 : index
    %c8_609 = arith.constant 8 : index
    %327 = vector.load %arg1[%c0_606, %c3_607, %c2_608, %c8_609] : memref<1x10x10x16xbf16, #tpu.memory_space<vmem>>, vector<1x1x8x4xbf16>
    %328 = vector.shape_cast %327 : vector<1x1x8x4xbf16> to vector<8x4xbf16>
    %c0_610 = arith.constant 0 : index
    %c4_611 = arith.constant 4 : index
    %c2_612 = arith.constant 2 : index
    %c8_613 = arith.constant 8 : index
    %329 = vector.load %arg1[%c0_610, %c4_611, %c2_612, %c8_613] : memref<1x10x10x16xbf16, #tpu.memory_space<vmem>>, vector<1x1x8x4xbf16>
    %330 = vector.shape_cast %329 : vector<1x1x8x4xbf16> to vector<8x4xbf16>
    %c0_614 = arith.constant 0 : index
    %c5_615 = arith.constant 5 : index
    %c2_616 = arith.constant 2 : index
    %c8_617 = arith.constant 8 : index
    %331 = vector.load %arg1[%c0_614, %c5_615, %c2_616, %c8_617] : memref<1x10x10x16xbf16, #tpu.memory_space<vmem>>, vector<1x1x8x4xbf16>
    %332 = vector.shape_cast %331 : vector<1x1x8x4xbf16> to vector<8x4xbf16>
    %c0_618 = arith.constant 0 : index
    %c6_619 = arith.constant 6 : index
    %c2_620 = arith.constant 2 : index
    %c8_621 = arith.constant 8 : index
    %333 = vector.load %arg1[%c0_618, %c6_619, %c2_620, %c8_621] : memref<1x10x10x16xbf16, #tpu.memory_space<vmem>>, vector<1x1x8x4xbf16>
    %334 = vector.shape_cast %333 : vector<1x1x8x4xbf16> to vector<8x4xbf16>
    %c0_622 = arith.constant 0 : index
    %c7_623 = arith.constant 7 : index
    %c2_624 = arith.constant 2 : index
    %c8_625 = arith.constant 8 : index
    %335 = vector.load %arg1[%c0_622, %c7_623, %c2_624, %c8_625] : memref<1x10x10x16xbf16, #tpu.memory_space<vmem>>, vector<1x1x8x4xbf16>
    %336 = vector.shape_cast %335 : vector<1x1x8x4xbf16> to vector<8x4xbf16>
    %c0_626 = arith.constant 0 : index
    %c8_627 = arith.constant 8 : index
    %c2_628 = arith.constant 2 : index
    %c8_629 = arith.constant 8 : index
    %337 = vector.load %arg1[%c0_626, %c8_627, %c2_628, %c8_629] : memref<1x10x10x16xbf16, #tpu.memory_space<vmem>>, vector<1x1x8x4xbf16>
    %338 = vector.shape_cast %337 : vector<1x1x8x4xbf16> to vector<8x4xbf16>
    %339 = tpu.concatenate %324, %326, %328, %330, %332, %334, %336, %338 in 0 : vector<8x4xbf16>, vector<8x4xbf16>, vector<8x4xbf16>, vector<8x4xbf16>, vector<8x4xbf16>, vector<8x4xbf16>, vector<8x4xbf16>, vector<8x4xbf16> -> vector<64x4xbf16>
    %c0_630 = arith.constant 0 : index
    %c2_631 = arith.constant 2 : index
    %c0_632 = arith.constant 0 : index
    %c0_633 = arith.constant 0 : index
    %340 = vector.load %arg1[%c0_630, %c2_631, %c0_632, %c0_633] : memref<1x10x10x16xbf16, #tpu.memory_space<vmem>>, vector<1x1x8x4xbf16>
    %341 = vector.shape_cast %340 : vector<1x1x8x4xbf16> to vector<8x4xbf16>
    %c0_634 = arith.constant 0 : index
    %c3_635 = arith.constant 3 : index
    %c0_636 = arith.constant 0 : index
    %c0_637 = arith.constant 0 : index
    %342 = vector.load %arg1[%c0_634, %c3_635, %c0_636, %c0_637] : memref<1x10x10x16xbf16, #tpu.memory_space<vmem>>, vector<1x1x8x4xbf16>
    %343 = vector.shape_cast %342 : vector<1x1x8x4xbf16> to vector<8x4xbf16>
    %c0_638 = arith.constant 0 : index
    %c4_639 = arith.constant 4 : index
    %c0_640 = arith.constant 0 : index
    %c0_641 = arith.constant 0 : index
    %344 = vector.load %arg1[%c0_638, %c4_639, %c0_640, %c0_641] : memref<1x10x10x16xbf16, #tpu.memory_space<vmem>>, vector<1x1x8x4xbf16>
    %345 = vector.shape_cast %344 : vector<1x1x8x4xbf16> to vector<8x4xbf16>
    %c0_642 = arith.constant 0 : index
    %c5_643 = arith.constant 5 : index
    %c0_644 = arith.constant 0 : index
    %c0_645 = arith.constant 0 : index
    %346 = vector.load %arg1[%c0_642, %c5_643, %c0_644, %c0_645] : memref<1x10x10x16xbf16, #tpu.memory_space<vmem>>, vector<1x1x8x4xbf16>
    %347 = vector.shape_cast %346 : vector<1x1x8x4xbf16> to vector<8x4xbf16>
    %c0_646 = arith.constant 0 : index
    %c6_647 = arith.constant 6 : index
    %c0_648 = arith.constant 0 : index
    %c0_649 = arith.constant 0 : index
    %348 = vector.load %arg1[%c0_646, %c6_647, %c0_648, %c0_649] : memref<1x10x10x16xbf16, #tpu.memory_space<vmem>>, vector<1x1x8x4xbf16>
    %349 = vector.shape_cast %348 : vector<1x1x8x4xbf16> to vector<8x4xbf16>
    %c0_650 = arith.constant 0 : index
    %c7_651 = arith.constant 7 : index
    %c0_652 = arith.constant 0 : index
    %c0_653 = arith.constant 0 : index
    %350 = vector.load %arg1[%c0_650, %c7_651, %c0_652, %c0_653] : memref<1x10x10x16xbf16, #tpu.memory_space<vmem>>, vector<1x1x8x4xbf16>
    %351 = vector.shape_cast %350 : vector<1x1x8x4xbf16> to vector<8x4xbf16>
    %c0_654 = arith.constant 0 : index
    %c8_655 = arith.constant 8 : index
    %c0_656 = arith.constant 0 : index
    %c0_657 = arith.constant 0 : index
    %352 = vector.load %arg1[%c0_654, %c8_655, %c0_656, %c0_657] : memref<1x10x10x16xbf16, #tpu.memory_space<vmem>>, vector<1x1x8x4xbf16>
    %353 = vector.shape_cast %352 : vector<1x1x8x4xbf16> to vector<8x4xbf16>
    %c0_658 = arith.constant 0 : index
    %c9 = arith.constant 9 : index
    %c0_659 = arith.constant 0 : index
    %c0_660 = arith.constant 0 : index
    %354 = vector.load %arg1[%c0_658, %c9, %c0_659, %c0_660] : memref<1x10x10x16xbf16, #tpu.memory_space<vmem>>, vector<1x1x8x4xbf16>
    %355 = vector.shape_cast %354 : vector<1x1x8x4xbf16> to vector<8x4xbf16>
    %356 = tpu.concatenate %341, %343, %345, %347, %349, %351, %353, %355 in 0 : vector<8x4xbf16>, vector<8x4xbf16>, vector<8x4xbf16>, vector<8x4xbf16>, vector<8x4xbf16>, vector<8x4xbf16>, vector<8x4xbf16>, vector<8x4xbf16> -> vector<64x4xbf16>
    %c0_661 = arith.constant 0 : index
    %c2_662 = arith.constant 2 : index
    %c0_663 = arith.constant 0 : index
    %c4_664 = arith.constant 4 : index
    %357 = vector.load %arg1[%c0_661, %c2_662, %c0_663, %c4_664] : memref<1x10x10x16xbf16, #tpu.memory_space<vmem>>, vector<1x1x8x4xbf16>
    %358 = vector.shape_cast %357 : vector<1x1x8x4xbf16> to vector<8x4xbf16>
    %c0_665 = arith.constant 0 : index
    %c3_666 = arith.constant 3 : index
    %c0_667 = arith.constant 0 : index
    %c4_668 = arith.constant 4 : index
    %359 = vector.load %arg1[%c0_665, %c3_666, %c0_667, %c4_668] : memref<1x10x10x16xbf16, #tpu.memory_space<vmem>>, vector<1x1x8x4xbf16>
    %360 = vector.shape_cast %359 : vector<1x1x8x4xbf16> to vector<8x4xbf16>
    %c0_669 = arith.constant 0 : index
    %c4_670 = arith.constant 4 : index
    %c0_671 = arith.constant 0 : index
    %c4_672 = arith.constant 4 : index
    %361 = vector.load %arg1[%c0_669, %c4_670, %c0_671, %c4_672] : memref<1x10x10x16xbf16, #tpu.memory_space<vmem>>, vector<1x1x8x4xbf16>
    %362 = vector.shape_cast %361 : vector<1x1x8x4xbf16> to vector<8x4xbf16>
    %c0_673 = arith.constant 0 : index
    %c5_674 = arith.constant 5 : index
    %c0_675 = arith.constant 0 : index
    %c4_676 = arith.constant 4 : index
    %363 = vector.load %arg1[%c0_673, %c5_674, %c0_675, %c4_676] : memref<1x10x10x16xbf16, #tpu.memory_space<vmem>>, vector<1x1x8x4xbf16>
    %364 = vector.shape_cast %363 : vector<1x1x8x4xbf16> to vector<8x4xbf16>
    %c0_677 = arith.constant 0 : index
    %c6_678 = arith.constant 6 : index
    %c0_679 = arith.constant 0 : index
    %c4_680 = arith.constant 4 : index
    %365 = vector.load %arg1[%c0_677, %c6_678, %c0_679, %c4_680] : memref<1x10x10x16xbf16, #tpu.memory_space<vmem>>, vector<1x1x8x4xbf16>
    %366 = vector.shape_cast %365 : vector<1x1x8x4xbf16> to vector<8x4xbf16>
    %c0_681 = arith.constant 0 : index
    %c7_682 = arith.constant 7 : index
    %c0_683 = arith.constant 0 : index
    %c4_684 = arith.constant 4 : index
    %367 = vector.load %arg1[%c0_681, %c7_682, %c0_683, %c4_684] : memref<1x10x10x16xbf16, #tpu.memory_space<vmem>>, vector<1x1x8x4xbf16>
    %368 = vector.shape_cast %367 : vector<1x1x8x4xbf16> to vector<8x4xbf16>
    %c0_685 = arith.constant 0 : index
    %c8_686 = arith.constant 8 : index
    %c0_687 = arith.constant 0 : index
    %c4_688 = arith.constant 4 : index
    %369 = vector.load %arg1[%c0_685, %c8_686, %c0_687, %c4_688] : memref<1x10x10x16xbf16, #tpu.memory_space<vmem>>, vector<1x1x8x4xbf16>
    %370 = vector.shape_cast %369 : vector<1x1x8x4xbf16> to vector<8x4xbf16>
    %c0_689 = arith.constant 0 : index
    %c9_690 = arith.constant 9 : index
    %c0_691 = arith.constant 0 : index
    %c4_692 = arith.constant 4 : index
    %371 = vector.load %arg1[%c0_689, %c9_690, %c0_691, %c4_692] : memref<1x10x10x16xbf16, #tpu.memory_space<vmem>>, vector<1x1x8x4xbf16>
    %372 = vector.shape_cast %371 : vector<1x1x8x4xbf16> to vector<8x4xbf16>
    %373 = tpu.concatenate %358, %360, %362, %364, %366, %368, %370, %372 in 0 : vector<8x4xbf16>, vector<8x4xbf16>, vector<8x4xbf16>, vector<8x4xbf16>, vector<8x4xbf16>, vector<8x4xbf16>, vector<8x4xbf16>, vector<8x4xbf16> -> vector<64x4xbf16>
    %c0_693 = arith.constant 0 : index
    %c2_694 = arith.constant 2 : index
    %c1_695 = arith.constant 1 : index
    %c0_696 = arith.constant 0 : index
    %374 = vector.load %arg1[%c0_693, %c2_694, %c1_695, %c0_696] : memref<1x10x10x16xbf16, #tpu.memory_space<vmem>>, vector<1x1x8x4xbf16>
    %375 = vector.shape_cast %374 : vector<1x1x8x4xbf16> to vector<8x4xbf16>
    %c0_697 = arith.constant 0 : index
    %c3_698 = arith.constant 3 : index
    %c1_699 = arith.constant 1 : index
    %c0_700 = arith.constant 0 : index
    %376 = vector.load %arg1[%c0_697, %c3_698, %c1_699, %c0_700] : memref<1x10x10x16xbf16, #tpu.memory_space<vmem>>, vector<1x1x8x4xbf16>
    %377 = vector.shape_cast %376 : vector<1x1x8x4xbf16> to vector<8x4xbf16>
    %c0_701 = arith.constant 0 : index
    %c4_702 = arith.constant 4 : index
    %c1_703 = arith.constant 1 : index
    %c0_704 = arith.constant 0 : index
    %378 = vector.load %arg1[%c0_701, %c4_702, %c1_703, %c0_704] : memref<1x10x10x16xbf16, #tpu.memory_space<vmem>>, vector<1x1x8x4xbf16>
    %379 = vector.shape_cast %378 : vector<1x1x8x4xbf16> to vector<8x4xbf16>
    %c0_705 = arith.constant 0 : index
    %c5_706 = arith.constant 5 : index
    %c1_707 = arith.constant 1 : index
    %c0_708 = arith.constant 0 : index
    %380 = vector.load %arg1[%c0_705, %c5_706, %c1_707, %c0_708] : memref<1x10x10x16xbf16, #tpu.memory_space<vmem>>, vector<1x1x8x4xbf16>
    %381 = vector.shape_cast %380 : vector<1x1x8x4xbf16> to vector<8x4xbf16>
    %c0_709 = arith.constant 0 : index
    %c6_710 = arith.constant 6 : index
    %c1_711 = arith.constant 1 : index
    %c0_712 = arith.constant 0 : index
    %382 = vector.load %arg1[%c0_709, %c6_710, %c1_711, %c0_712] : memref<1x10x10x16xbf16, #tpu.memory_space<vmem>>, vector<1x1x8x4xbf16>
    %383 = vector.shape_cast %382 : vector<1x1x8x4xbf16> to vector<8x4xbf16>
    %c0_713 = arith.constant 0 : index
    %c7_714 = arith.constant 7 : index
    %c1_715 = arith.constant 1 : index
    %c0_716 = arith.constant 0 : index
    %384 = vector.load %arg1[%c0_713, %c7_714, %c1_715, %c0_716] : memref<1x10x10x16xbf16, #tpu.memory_space<vmem>>, vector<1x1x8x4xbf16>
    %385 = vector.shape_cast %384 : vector<1x1x8x4xbf16> to vector<8x4xbf16>
    %c0_717 = arith.constant 0 : index
    %c8_718 = arith.constant 8 : index
    %c1_719 = arith.constant 1 : index
    %c0_720 = arith.constant 0 : index
    %386 = vector.load %arg1[%c0_717, %c8_718, %c1_719, %c0_720] : memref<1x10x10x16xbf16, #tpu.memory_space<vmem>>, vector<1x1x8x4xbf16>
    %387 = vector.shape_cast %386 : vector<1x1x8x4xbf16> to vector<8x4xbf16>
    %c0_721 = arith.constant 0 : index
    %c9_722 = arith.constant 9 : index
    %c1_723 = arith.constant 1 : index
    %c0_724 = arith.constant 0 : index
    %388 = vector.load %arg1[%c0_721, %c9_722, %c1_723, %c0_724] : memref<1x10x10x16xbf16, #tpu.memory_space<vmem>>, vector<1x1x8x4xbf16>
    %389 = vector.shape_cast %388 : vector<1x1x8x4xbf16> to vector<8x4xbf16>
    %390 = tpu.concatenate %375, %377, %379, %381, %383, %385, %387, %389 in 0 : vector<8x4xbf16>, vector<8x4xbf16>, vector<8x4xbf16>, vector<8x4xbf16>, vector<8x4xbf16>, vector<8x4xbf16>, vector<8x4xbf16>, vector<8x4xbf16> -> vector<64x4xbf16>
    %c0_725 = arith.constant 0 : index
    %c2_726 = arith.constant 2 : index
    %c1_727 = arith.constant 1 : index
    %c4_728 = arith.constant 4 : index
    %391 = vector.load %arg1[%c0_725, %c2_726, %c1_727, %c4_728] : memref<1x10x10x16xbf16, #tpu.memory_space<vmem>>, vector<1x1x8x4xbf16>
    %392 = vector.shape_cast %391 : vector<1x1x8x4xbf16> to vector<8x4xbf16>
    %c0_729 = arith.constant 0 : index
    %c3_730 = arith.constant 3 : index
    %c1_731 = arith.constant 1 : index
    %c4_732 = arith.constant 4 : index
    %393 = vector.load %arg1[%c0_729, %c3_730, %c1_731, %c4_732] : memref<1x10x10x16xbf16, #tpu.memory_space<vmem>>, vector<1x1x8x4xbf16>
    %394 = vector.shape_cast %393 : vector<1x1x8x4xbf16> to vector<8x4xbf16>
    %c0_733 = arith.constant 0 : index
    %c4_734 = arith.constant 4 : index
    %c1_735 = arith.constant 1 : index
    %c4_736 = arith.constant 4 : index
    %395 = vector.load %arg1[%c0_733, %c4_734, %c1_735, %c4_736] : memref<1x10x10x16xbf16, #tpu.memory_space<vmem>>, vector<1x1x8x4xbf16>
    %396 = vector.shape_cast %395 : vector<1x1x8x4xbf16> to vector<8x4xbf16>
    %c0_737 = arith.constant 0 : index
    %c5_738 = arith.constant 5 : index
    %c1_739 = arith.constant 1 : index
    %c4_740 = arith.constant 4 : index
    %397 = vector.load %arg1[%c0_737, %c5_738, %c1_739, %c4_740] : memref<1x10x10x16xbf16, #tpu.memory_space<vmem>>, vector<1x1x8x4xbf16>
    %398 = vector.shape_cast %397 : vector<1x1x8x4xbf16> to vector<8x4xbf16>
    %c0_741 = arith.constant 0 : index
    %c6_742 = arith.constant 6 : index
    %c1_743 = arith.constant 1 : index
    %c4_744 = arith.constant 4 : index
    %399 = vector.load %arg1[%c0_741, %c6_742, %c1_743, %c4_744] : memref<1x10x10x16xbf16, #tpu.memory_space<vmem>>, vector<1x1x8x4xbf16>
    %400 = vector.shape_cast %399 : vector<1x1x8x4xbf16> to vector<8x4xbf16>
    %c0_745 = arith.constant 0 : index
    %c7_746 = arith.constant 7 : index
    %c1_747 = arith.constant 1 : index
    %c4_748 = arith.constant 4 : index
    %401 = vector.load %arg1[%c0_745, %c7_746, %c1_747, %c4_748] : memref<1x10x10x16xbf16, #tpu.memory_space<vmem>>, vector<1x1x8x4xbf16>
    %402 = vector.shape_cast %401 : vector<1x1x8x4xbf16> to vector<8x4xbf16>
    %c0_749 = arith.constant 0 : index
    %c8_750 = arith.constant 8 : index
    %c1_751 = arith.constant 1 : index
    %c4_752 = arith.constant 4 : index
    %403 = vector.load %arg1[%c0_749, %c8_750, %c1_751, %c4_752] : memref<1x10x10x16xbf16, #tpu.memory_space<vmem>>, vector<1x1x8x4xbf16>
    %404 = vector.shape_cast %403 : vector<1x1x8x4xbf16> to vector<8x4xbf16>
    %c0_753 = arith.constant 0 : index
    %c9_754 = arith.constant 9 : index
    %c1_755 = arith.constant 1 : index
    %c4_756 = arith.constant 4 : index
    %405 = vector.load %arg1[%c0_753, %c9_754, %c1_755, %c4_756] : memref<1x10x10x16xbf16, #tpu.memory_space<vmem>>, vector<1x1x8x4xbf16>
    %406 = vector.shape_cast %405 : vector<1x1x8x4xbf16> to vector<8x4xbf16>
    %407 = tpu.concatenate %392, %394, %396, %398, %400, %402, %404, %406 in 0 : vector<8x4xbf16>, vector<8x4xbf16>, vector<8x4xbf16>, vector<8x4xbf16>, vector<8x4xbf16>, vector<8x4xbf16>, vector<8x4xbf16>, vector<8x4xbf16> -> vector<64x4xbf16>
    %c0_757 = arith.constant 0 : index
    %c2_758 = arith.constant 2 : index
    %c2_759 = arith.constant 2 : index
    %c0_760 = arith.constant 0 : index
    %408 = vector.load %arg1[%c0_757, %c2_758, %c2_759, %c0_760] : memref<1x10x10x16xbf16, #tpu.memory_space<vmem>>, vector<1x1x8x4xbf16>
    %409 = vector.shape_cast %408 : vector<1x1x8x4xbf16> to vector<8x4xbf16>
    %c0_761 = arith.constant 0 : index
    %c3_762 = arith.constant 3 : index
    %c2_763 = arith.constant 2 : index
    %c0_764 = arith.constant 0 : index
    %410 = vector.load %arg1[%c0_761, %c3_762, %c2_763, %c0_764] : memref<1x10x10x16xbf16, #tpu.memory_space<vmem>>, vector<1x1x8x4xbf16>
    %411 = vector.shape_cast %410 : vector<1x1x8x4xbf16> to vector<8x4xbf16>
    %c0_765 = arith.constant 0 : index
    %c4_766 = arith.constant 4 : index
    %c2_767 = arith.constant 2 : index
    %c0_768 = arith.constant 0 : index
    %412 = vector.load %arg1[%c0_765, %c4_766, %c2_767, %c0_768] : memref<1x10x10x16xbf16, #tpu.memory_space<vmem>>, vector<1x1x8x4xbf16>
    %413 = vector.shape_cast %412 : vector<1x1x8x4xbf16> to vector<8x4xbf16>
    %c0_769 = arith.constant 0 : index
    %c5_770 = arith.constant 5 : index
    %c2_771 = arith.constant 2 : index
    %c0_772 = arith.constant 0 : index
    %414 = vector.load %arg1[%c0_769, %c5_770, %c2_771, %c0_772] : memref<1x10x10x16xbf16, #tpu.memory_space<vmem>>, vector<1x1x8x4xbf16>
    %415 = vector.shape_cast %414 : vector<1x1x8x4xbf16> to vector<8x4xbf16>
    %c0_773 = arith.constant 0 : index
    %c6_774 = arith.constant 6 : index
    %c2_775 = arith.constant 2 : index
    %c0_776 = arith.constant 0 : index
    %416 = vector.load %arg1[%c0_773, %c6_774, %c2_775, %c0_776] : memref<1x10x10x16xbf16, #tpu.memory_space<vmem>>, vector<1x1x8x4xbf16>
    %417 = vector.shape_cast %416 : vector<1x1x8x4xbf16> to vector<8x4xbf16>
    %c0_777 = arith.constant 0 : index
    %c7_778 = arith.constant 7 : index
    %c2_779 = arith.constant 2 : index
    %c0_780 = arith.constant 0 : index
    %418 = vector.load %arg1[%c0_777, %c7_778, %c2_779, %c0_780] : memref<1x10x10x16xbf16, #tpu.memory_space<vmem>>, vector<1x1x8x4xbf16>
    %419 = vector.shape_cast %418 : vector<1x1x8x4xbf16> to vector<8x4xbf16>
    %c0_781 = arith.constant 0 : index
    %c8_782 = arith.constant 8 : index
    %c2_783 = arith.constant 2 : index
    %c0_784 = arith.constant 0 : index
    %420 = vector.load %arg1[%c0_781, %c8_782, %c2_783, %c0_784] : memref<1x10x10x16xbf16, #tpu.memory_space<vmem>>, vector<1x1x8x4xbf16>
    %421 = vector.shape_cast %420 : vector<1x1x8x4xbf16> to vector<8x4xbf16>
    %c0_785 = arith.constant 0 : index
    %c9_786 = arith.constant 9 : index
    %c2_787 = arith.constant 2 : index
    %c0_788 = arith.constant 0 : index
    %422 = vector.load %arg1[%c0_785, %c9_786, %c2_787, %c0_788] : memref<1x10x10x16xbf16, #tpu.memory_space<vmem>>, vector<1x1x8x4xbf16>
    %423 = vector.shape_cast %422 : vector<1x1x8x4xbf16> to vector<8x4xbf16>
    %424 = tpu.concatenate %409, %411, %413, %415, %417, %419, %421, %423 in 0 : vector<8x4xbf16>, vector<8x4xbf16>, vector<8x4xbf16>, vector<8x4xbf16>, vector<8x4xbf16>, vector<8x4xbf16>, vector<8x4xbf16>, vector<8x4xbf16> -> vector<64x4xbf16>
    %cst = arith.constant 0.000000e+00 : bf16
    %425 = vector.broadcast %cst : bf16 to vector<64x28xbf16>
    %426 = tpu.concatenate %16, %33, %50, %67, %84, %101, %118, %135, %152, %169, %186, %203, %220, %237, %254, %271 in 1 : vector<64x4xbf16>, vector<64x4xbf16>, vector<64x4xbf16>, vector<64x4xbf16>, vector<64x4xbf16>, vector<64x4xbf16>, vector<64x4xbf16>, vector<64x4xbf16>, vector<64x4xbf16>, vector<64x4xbf16>, vector<64x4xbf16>, vector<64x4xbf16>, vector<64x4xbf16>, vector<64x4xbf16>, vector<64x4xbf16>, vector<64x4xbf16> -> vector<64x64xbf16>
    %427 = tpu.concatenate %288, %305, %322, %339, %356, %373, %390, %407, %424, %425 in 1 : vector<64x4xbf16>, vector<64x4xbf16>, vector<64x4xbf16>, vector<64x4xbf16>, vector<64x4xbf16>, vector<64x4xbf16>, vector<64x4xbf16>, vector<64x4xbf16>, vector<64x4xbf16>, vector<64x28xbf16> -> vector<64x64xbf16>
    %428 = tpu.concatenate %426, %427 in 1 : vector<64x64xbf16>, vector<64x64xbf16> -> vector<64x128xbf16>
    %c0_789 = arith.constant 0 : index
    %c0_790 = arith.constant 0 : index
    %429 = vector.load %arg2[%c0_789, %c0_790] : memref<128x8xbf16, #tpu.memory_space<vmem>>, vector<128x8xbf16>
    %cst_791 = arith.constant dense<0.000000e+00> : vector<64x8xf32>
    %430 = tpu.matmul %428, %429, %cst_791 {dimension_numbers = #tpu.dot_dimension_numbers<[1], [0], [0], [1], [0, 0, 1, 1], [], []>} : vector<64x128xbf16>, vector<128x8xbf16>, vector<64x8xf32> -> vector<64x8xf32>
    %c0_792 = arith.constant 0 : index
    %c0_793 = arith.constant 0 : index
    %431 = vector.load %arg3[%c0_792, %c0_793] : memref<1x8xf32, #tpu.memory_space<vmem>>, vector<1x8xf32>
    %432 = vector.broadcast %431 : vector<1x8xf32> to vector<64x8xf32>
    %433 = arith.addf %430, %432 : vector<64x8xf32>
    %cst_794 = arith.constant 0.000000e+00 : f32
    %434 = vector.broadcast %cst_794 : f32 to vector<64x8xf32>
    %435 = arith.cmpf oge, %433, %434 : vector<64x8xf32>
    %cst_795 = arith.constant 1.000000e-01 : f32
    %436 = vector.broadcast %cst_795 : f32 to vector<64x8xf32>
    %437 = arith.mulf %436, %433 : vector<64x8xf32>
    %438 = arith.select %435, %433, %437 : vector<64x8xi1>, vector<64x8xf32>
    %439 = arith.truncf %438 : vector<64x8xf32> to vector<64x8xbf16>
    %c0_796 = arith.constant 0 : index
    %c0_797 = arith.constant 0 : index
    %440 = vector.load %arg4[%c0_796, %c0_797] : memref<64x8xbf16, #tpu.memory_space<vmem>>, vector<64x8xbf16>
    tpu.vector_store %arg4[%c0_796, %c0_797], %439 {strides = array<i32>} : memref<64x8xbf16, #tpu.memory_space<vmem>>, vector<64x8xbf16>,
    %cst_798 = arith.constant dense<0.000000e+00> : vector<8xf32>
    %441 = vector.multi_reduction <add>, %438, %cst_798 [0] : vector<64x8xf32> to vector<8xf32>
    %442 = vector.shape_cast %441 : vector<8xf32> to vector<1x8xf32>
    %c0_799 = arith.constant 0 : index
    %c0_800 = arith.constant 0 : index
    %c0_801 = arith.constant 0 : index
    %443 = vector.load %arg5[%c0_799, %c0_800, %c0_801] : memref<1x2x8xf32, #tpu.memory_space<vmem>>, vector<1x1x8xf32>
    %444 = vector.shape_cast %443 : vector<1x1x8xf32> to vector<1x8xf32>
    %445 = vector.shape_cast %442 : vector<1x8xf32> to vector<1x1x8xf32>
    tpu.vector_store %arg5[%c0_799, %c0_800, %c0_801], %445 {strides = array<i32>} : memref<1x2x8xf32, #tpu.memory_space<vmem>>, vector<1x1x8xf32>,
    %446 = arith.mulf %438, %438 : vector<64x8xf32>
    %cst_802 = arith.constant dense<0.000000e+00> : vector<8xf32>
    %447 = vector.multi_reduction <add>, %446, %cst_802 [0] : vector<64x8xf32> to vector<8xf32>
    %448 = vector.shape_cast %447 : vector<8xf32> to vector<1x8xf32>
    %c0_803 = arith.constant 0 : index
    %c1_804 = arith.constant 1 : index
    %c0_805 = arith.constant 0 : index
    %449 = vector.load %arg5[%c0_803, %c1_804, %c0_805] : memref<1x2x8xf32, #tpu.memory_space<vmem>>, vector<1x1x8xf32>
    %450 = vector.shape_cast %449 : vector<1x1x8xf32> to vector<1x8xf32>
    %451 = vector.shape_cast %448 : vector<1x8xf32> to vector<1x1x8xf32>
    tpu.vector_store %arg5[%c0_803, %c1_804, %c0_805], %451 {strides = array<i32>} : memref<1x2x8xf32, #tpu.memory_space<vmem>>, vector<1x1x8xf32>,
    return
  }
  func.func @transform_0(%arg0: i32) -> (i32, i32, i32, i32) {
    %c0_i32 = arith.constant 0 : i32
    %c0_i32_0 = arith.constant 0 : i32
    %c0_i32_1 = arith.constant 0 : i32
    %c0_i32_2 = arith.constant 0 : i32
    return %arg0, %c0_i32, %c0_i32_0, %c0_i32_1 : i32, i32, i32, i32
  }
  func.func @transform_1(%arg0: i32) -> (i32, i32) {
    %c0_i32 = arith.constant 0 : i32
    %c0_i32_0 = arith.constant 0 : i32
    %c0_i32_1 = arith.constant 0 : i32
    return %c0_i32, %c0_i32_0 : i32, i32
  }
  func.func @transform_2(%arg0: i32) -> (i32, i32) {
    %c0_i32 = arith.constant 0 : i32
    %c0_i32_0 = arith.constant 0 : i32
    %c0_i32_1 = arith.constant 0 : i32
    return %c0_i32, %c0_i32_0 : i32, i32
  }
  func.func @transform_3(%arg0: i32) -> (i32, i32) {
    %c0_i32 = arith.constant 0 : i32
    %c0_i32_0 = arith.constant 0 : i32
    return %arg0, %c0_i32 : i32, i32
  }
  func.func @transform_4(%arg0: i32) -> (i32, i32, i32) {
    %c0_i32 = arith.constant 0 : i32
    %c0_i32_0 = arith.constant 0 : i32
    %c0_i32_1 = arith.constant 0 : i32
    return %arg0, %c0_i32, %c0_i32_0 : i32, i32, i32
  }
}

</mosaic_0001>

<llo_original>
// kernel: downscale_forward.3
$region0: #{downscale_forward.3}
  #allocation0 [shape = 'u32[]', space=smem, size = 0x4, offset = 0x4, fixed_abs, tag = 'smem constant byte address 0x4 - core index']
  #allocation1 [shape = 'u32[144,128]{1,0:T(1,128)}', space=vmem, size = 0x12000, scoped, tag = 'internal scratch']
  %s0 = inlined_call_operand.vmem [shape: bf16[128,8], index: 0, kind: input, shape index: {}]
  %s1 = inlined_call_operand.vmem [shape: f32[1,8], index: 1, kind: input, shape index: {}]
  %s2 = inlined_call_operand.vmem [shape: f32[1,8], index: 2, kind: input, shape index: {}]
  %s3 = inlined_call_operand.vmem [shape: f32[128,8], index: 3, kind: output, shape index: {}]
  %s4 = sld [smem:[#allocation0]]
  $region45: #{downscale_forward.3} parent=0
    _
  %s6 = ssub.s32 1, %s4
  %s7 = scalar_select 0, %s6, %s4
  loop: start=0, step=1, limit=4
  $region2: #{downscale_forward.3} parent=0 // loop_pre_header
    _
  $region3: #{downscale_forward.3} parent=0 // loop_header
    %s9 = sphi 0, %s13
    %p10 = scmp.ge.s32.totalorder %s9, 4
    %s19 = sphi 0, %s21
    %s22 = sphi 0, %s19
    %s23 = sphi 0, %s22
    %s39 = sphi 0, %s23
    %s43 = sphi 0, %s43
    %s45 = sphi 0, %s43
    %s46 = sphi 0, %s45
    %s60 = sphi 0, %s46
    %s64 = sphi 0, %s64
    %s66 = sphi 0, %s64
    %s67 = sphi 0, %s66
    %s81 = sphi 0, %s67
    %s87 = sphi 0, %s89
    %s90 = sphi 0, %s87
    %s91 = sphi 0, %s90
    %s107 = sphi 0, %s91
  $region4: #{downscale_forward.3} parent=0 // loop_header_branch
    %12 = sbr.rel (%p10) target = $region8
  $region5: #{downscale_forward.3} parent=0 // loop_body
    %s14 = ssub.s32 %s9, 1
    %s15 = ssub.s32 %s9, 2
    %s16 = sadd.s32 %s9, 1
    %s17 = ssub.s32 %s9, %s16
    %p18 = scmp.eq.s32.totalorder %s17, 0
    %s20 = sadd.s32 %s19, 1
    %s21 = scalar_select %p18, %s19, %s20
    %p24 = pneg %p18
    %p25 = scmp.eq.s32.totalorder %s9, 1
    %p26 = por %p24, %p25
    %p27 = scmp.ne.s32.totalorder %s19, %s22
    %p28 = scmp.eq.s32.totalorder %s9, 0
    %p29 = por %p27, %p28
    %p30 = scmp.ne.s32.totalorder %s19, %s22
    %p31 = scmp.eq.s32.totalorder %s14, 1
    %p32 = por %p30, %p31
    %p33 = scmp.ne.s32.totalorder %s22, %s23
    %p34 = scmp.eq.s32.totalorder %s14, 0
    %p35 = por %p33, %p34
    %p36 = scmp.ne.s32.totalorder %s22, %s23
    %p37 = scmp.eq.s32.totalorder %s15, 1
    %p38 = por %p36, %p37
    %p40 = scmp.ne.s32.totalorder %s23, %s39
    %p41 = scmp.eq.s32.totalorder %s15, 0
    %p42 = por %p40, %p41
    %s44 = sadd.s32 %s43, 1
    %p47 = scmp.eq.s32.totalorder %s9, 1
    %p48 = scmp.ne.s32.totalorder %s43, %s45
    %p49 = scmp.eq.s32.totalorder %s9, 0
    %p50 = por %p48, %p49
    %p51 = scmp.ne.s32.totalorder %s43, %s45
    %p52 = scmp.eq.s32.totalorder %s14, 1
    %p53 = por %p51, %p52
    %p54 = scmp.ne.s32.totalorder %s45, %s46
    %p55 = scmp.eq.s32.totalorder %s14, 0
    %p56 = por %p54, %p55
    %p57 = scmp.ne.s32.totalorder %s45, %s46
    %p58 = scmp.eq.s32.totalorder %s15, 1
    %p59 = por %p57, %p58
    %p61 = scmp.ne.s32.totalorder %s46, %s60
    %p62 = scmp.eq.s32.totalorder %s15, 0
    %p63 = por %p61, %p62
    %s65 = sadd.s32 %s64, 1
    %p68 = scmp.eq.s32.totalorder %s9, 1
    %p69 = scmp.ne.s32.totalorder %s64, %s66
    %p70 = scmp.eq.s32.totalorder %s9, 0
    %p71 = por %p69, %p70
    %p72 = scmp.ne.s32.totalorder %s64, %s66
    %p73 = scmp.eq.s32.totalorder %s14, 1
    %p74 = por %p72, %p73
    %p75 = scmp.ne.s32.totalorder %s66, %s67
    %p76 = scmp.eq.s32.totalorder %s14, 0
    %p77 = por %p75, %p76
    %p78 = scmp.ne.s32.totalorder %s66, %s67
    %p79 = scmp.eq.s32.totalorder %s15, 1
    %p80 = por %p78, %p79
    %p82 = scmp.ne.s32.totalorder %s67, %s81
    %p83 = scmp.eq.s32.totalorder %s15, 0
    %p84 = por %p82, %p83
    %s85 = ssub.s32 %s9, %s16
    %p86 = scmp.eq.s32.totalorder %s85, 0
    %s88 = sadd.s32 %s87, 1
    %s89 = scalar_select %p86, %s87, %s88
    %p92 = pneg %p86
    %p93 = scmp.eq.s32.totalorder %s9, 1
    %p94 = por %p92, %p93
    %p95 = scmp.ne.s32.totalorder %s87, %s90
    %p96 = scmp.eq.s32.totalorder %s9, 0
    %p97 = por %p95, %p96
    %p98 = scmp.ne.s32.totalorder %s87, %s90
    %p99 = scmp.eq.s32.totalorder %s14, 1
    %p100 = por %p98, %p99
    %p101 = scmp.ne.s32.totalorder %s90, %s91
    %p102 = scmp.eq.s32.totalorder %s14, 0
    %p103 = por %p101, %p102
    %p104 = scmp.ne.s32.totalorder %s90, %s91
    %p105 = scmp.eq.s32.totalorder %s15, 1
    %p106 = por %p104, %p105
    %p108 = scmp.ne.s32.totalorder %s91, %s107
    %p109 = scmp.eq.s32.totalorder %s15, 0
    %p110 = por %p108, %p109
    %p111 = scmp.le.s32.totalorder 1, %s9
    %p112 = scmp.lt.s32.totalorder %s9, 3
    %p113 = pnand %p111, %p112
    %p114 = pneg %p113
    // Predicated region
    $region9: #{downscale_forward.3} parent=5 // pred_check
      _
    $region10: #{downscale_forward.3} parent=5 // pred_check_branch
      %116 = sbr.rel (%p113) target = $region12
    $region11: #{downscale_forward.3} parent=5 // pred_region
      %s117 = ssub.s32 %s9, 1
      // Predicated region
      $region13: #{downscale_forward.3} parent=11 // pred_check
        %p118 = pneg %p56
      $region14: #{downscale_forward.3} parent=11 // pred_check_branch
        %120 = sbr.rel (%p118) target = $region16
      $region15: #{downscale_forward.3} parent=11 // pred_region
        _
      $region16: #{downscale_forward.3} parent=11 // pred_fallthru
        _
      // Predicated region
      $region17: #{downscale_forward.3} parent=11 // pred_check
        %p121 = pneg %p77
      $region18: #{downscale_forward.3} parent=11 // pred_check_branch
        %123 = sbr.rel (%p121) target = $region20
      $region19: #{downscale_forward.3} parent=11 // pred_region
        _
      $region20: #{downscale_forward.3} parent=11 // pred_fallthru
        _
    $region12: #{downscale_forward.3} parent=5 // pred_fallthru
      _
    %p124 = scmp.lt.s32.totalorder %s9, 2
    // Predicated region
    $region21: #{downscale_forward.3} parent=5 // pred_check
      %p125 = pneg %p124
    $region22: #{downscale_forward.3} parent=5 // pred_check_branch
      %127 = sbr.rel (%p125) target = $region24
    $region23: #{downscale_forward.3} parent=5 // pred_region
      // Predicated region
      $region25: #{downscale_forward.3} parent=23 // pred_check
        %p128 = pneg %p29
      $region26: #{downscale_forward.3} parent=23 // pred_check_branch
        %130 = sbr.rel (%p128) target = $region28
      $region27: #{downscale_forward.3} parent=23 // pred_region
        %s131 = smul.u32 8, %s9
        %p132 = scmp.lt.s32.totalorder %s131, 15
        %s133 = scalar_select %p132, %s131, 15
        %s134 = smul.addr %s133, 4
        %s135 = scalar_lea.vmem %s0, %s134
        %s136 = smul.u32 8, %s9
      $region28: #{downscale_forward.3} parent=23 // pred_fallthru
        _
    $region24: #{downscale_forward.3} parent=5 // pred_fallthru
      _
    %p137 = scmp.le.s32.totalorder 1, %s9
    %p138 = scmp.lt.s32.totalorder %s9, 3
    %p139 = pnand %p137, %p138
    %p140 = pneg %p139
    // Predicated region
    $region29: #{downscale_forward.3} parent=5 // pred_check
      _
    $region30: #{downscale_forward.3} parent=5 // pred_check_branch
      %142 = sbr.rel (%p139) target = $region32
    $region31: #{downscale_forward.3} parent=5 // pred_region
      %s143 = ssub.s32 %s9, 1
      %s144 = smul.u32 8, %s14
      %p145 = scmp.lt.s32.totalorder %s144, 15
      %s146 = scalar_select %p145, %s144, 15
      %s147 = smul.addr %s146, 4
      %s148 = scalar_lea.vmem %s0, %s147
      %p149 = pneg %p35
      %p150 = pneg %p32
      %p151 = pneg %p56
      %p152 = pneg %p53
      %p153 = pneg %p77
      %p154 = pneg %p74
      %p155 = pneg %p103
      %p156 = pneg %p100
      %s157 = smul.u32 8, %s14
      %p158 = scmp.lt.s32.totalorder %s157, 15
      %s159 = scalar_select %p158, %s157, 15
      %s160 = smul.addr %s159, 8
      %s161 = scalar_lea.vmem %s3, %s160
      %s162 = smul.u32 8, %s14
      %p163 = scmp.lt.s32.totalorder %s162, 15
      %s164 = scalar_select %p163, %s162, 15
      %s165 = smul.addr %s164, 4
      %s166 = scalar_lea.vmem %s0, %s165
      %s167 = smul.u32 8, %s14
      %s168 = smul.u32 8, %s14
      %p169 = scmp.lt.s32.totalorder %s168, 15
      %s170 = scalar_select %p169, %s168, 15
      %s171 = smul.addr %s170, 8
      %s172 = scalar_lea.vmem %s3, %s171
      %s173 = smul.u32 8, %s14
      %v174 = vld [vmem:[%s166] sm:$0xf]
      %v175 = vld [vmem:[%s166 + $0x4] sm:$0xf]
      %v176 = vld [vmem:[%s166 + $0x8] sm:$0xf]
      %v177 = vld [vmem:[%s166 + $0xc] sm:$0xf]
      %v178 = vld [vmem:[%s166 + $0x10] sm:$0xf]
      %v179 = vld [vmem:[%s166 + $0x14] sm:$0xf]
      %v180 = vld [vmem:[%s166 + $0x18] sm:$0xf]
      %v181 = vld [vmem:[%s166 + $0x1c] sm:$0xf]
      %v182 = vunpack.c.l.bf16 %v174
      %v183 = vunpack.c.l.bf16 %v175
      %v184 = vunpack.c.l.bf16 %v176
      %v185 = vunpack.c.l.bf16 %v177
      %v186 = vunpack.c.l.bf16 %v178
      %v187 = vunpack.c.l.bf16 %v179
      %v188 = vunpack.c.l.bf16 %v180
      %v189 = vunpack.c.l.bf16 %v181
      %v190 = vld [vmem:[%s1] sm:$0x1]
      %v192 = vlaneseq
      %v193 = vshrl.u32 %v192, 7
      %v194 = vsub.s32 0, %v193
      %v195 = vrot.slane %v190, %v194
      %v197 = vmul.f32 %v182, %v195
      %v198 = vmul.f32 %v183, %v195
      %v199 = vmul.f32 %v184, %v195
      %v200 = vmul.f32 %v185, %v195
      %v201 = vmul.f32 %v186, %v195
      %v202 = vmul.f32 %v187, %v195
      %v203 = vmul.f32 %v188, %v195
      %v204 = vmul.f32 %v189, %v195
      %v205 = vld [vmem:[%s2] sm:$0x1]
      %v207 = vlaneseq
      %v208 = vshrl.u32 %v207, 7
      %v209 = vsub.s32 0, %v208
      %v210 = vrot.slane %v205, %v209
      %v212 = vadd.f32 %v197, %v210
      %v213 = vadd.f32 %v198, %v210
      %v214 = vadd.f32 %v199, %v210
      %v215 = vadd.f32 %v200, %v210
      %v216 = vadd.f32 %v201, %v210
      %v217 = vadd.f32 %v202, %v210
      %v218 = vadd.f32 %v203, %v210
      %v219 = vadd.f32 %v204, %v210
      %vm220 = vcmask 64512
      %221 = vst.msk [vmem:[%s172] sm:$0xff] %vm220, %v212
      %222 = vst.msk [vmem:[%s172 + $0x8] sm:$0xff] %vm220, %v213
      %223 = vst.msk [vmem:[%s172 + $0x10] sm:$0xff] %vm220, %v214
      %224 = vst.msk [vmem:[%s172 + $0x18] sm:$0xff] %vm220, %v215
      %225 = vst.msk [vmem:[%s172 + $0x20] sm:$0xff] %vm220, %v216
      %226 = vst.msk [vmem:[%s172 + $0x28] sm:$0xff] %vm220, %v217
      %227 = vst.msk [vmem:[%s172 + $0x30] sm:$0xff] %vm220, %v218
      %228 = vst.msk [vmem:[%s172 + $0x38] sm:$0xff] %vm220, %v219
      %s229 = smul.u32 8, %s14
      %p230 = scmp.lt.s32.totalorder %s229, 15
      %s231 = scalar_select %p230, %s229, 15
      %s232 = smul.addr %s231, 8
      %s233 = scalar_lea.vmem %s3, %s232
      // Predicated region
      $region33: #{downscale_forward.3} parent=31 // pred_check
        %p234 = pneg %p100
      $region34: #{downscale_forward.3} parent=31 // pred_check_branch
        %236 = sbr.rel (%p234) target = $region36
      $region35: #{downscale_forward.3} parent=31 // pred_region
        %s237 = smul.u32 8, %s14
      $region36: #{downscale_forward.3} parent=31 // pred_fallthru
        _
    $region32: #{downscale_forward.3} parent=5 // pred_fallthru
      _
    %p238 = scmp.le.s32.totalorder 2, %s9
    // Predicated region
    $region37: #{downscale_forward.3} parent=5 // pred_check
      %p239 = pneg %p238
    $region38: #{downscale_forward.3} parent=5 // pred_check_branch
      %241 = sbr.rel (%p239) target = $region40
    $region39: #{downscale_forward.3} parent=5 // pred_region
      %s242 = ssub.s32 %s9, 2
      // Predicated region
      $region41: #{downscale_forward.3} parent=39 // pred_check
        %p243 = pneg %p106
      $region42: #{downscale_forward.3} parent=39 // pred_check_branch
        %245 = sbr.rel (%p243) target = $region44
      $region43: #{downscale_forward.3} parent=39 // pred_region
        %s246 = smul.u32 8, %s15
        %p247 = scmp.lt.s32.totalorder %s246, 15
        %s248 = scalar_select %p247, %s246, 15
        %s249 = smul.addr %s248, 8
        %s250 = scalar_lea.vmem %s3, %s249
      $region44: #{downscale_forward.3} parent=39 // pred_fallthru
        _
    $region40: #{downscale_forward.3} parent=5 // pred_fallthru
      _
  $region6: #{downscale_forward.3} parent=0 // loop_footer
    %s13 = sadd.s32 1, %s9
  $region7: #{downscale_forward.3} parent=0 // loop_footer_branch
    %8 = sbr.rel target = $region3
  $region8: #{downscale_forward.3} parent=0 // loop_exit
    _

// kernel: downscale_forward.2
$region0: #{downscale_forward.2}
  #allocation0 [shape = 'u32[]', space=smem, size = 0x4, offset = 0x4, fixed_abs, tag = 'smem constant byte address 0x4 - core index']
  #allocation1 [shape = 'u32[144,128]{1,0:T(1,128)}', space=vmem, size = 0x12000, scoped, tag = 'internal scratch']
  %s0 = inlined_call_operand.vmem [shape: bf16[2,10,10,16], index: 0, kind: input, shape index: {}]
  %s1 = inlined_call_operand.vmem [shape: bf16[128,8], index: 1, kind: input, shape index: {}]
  %s2 = inlined_call_operand.vmem [shape: f32[1,8], index: 2, kind: input, shape index: {}]
  %s3 = inlined_call_operand.vmem [shape: bf16[128,8], index: 3, kind: output, shape index: {0}]
  %s4 = inlined_call_operand.vmem [shape: f32[2,2,8], index: 4, kind: output, shape index: {1}]
  %5 = xla_tuple %s3, %s4
  %s6 = sld [smem:[#allocation0]]
  $region53: #{downscale_forward.2} parent=0
    _
  %s8 = ssub.s32 1, %s6
  %s9 = scalar_select 0, %s8, %s6
  loop: start=0, step=1, limit=4
  $region2: #{downscale_forward.2} parent=0 // loop_pre_header
    _
  $region3: #{downscale_forward.2} parent=0 // loop_header
    %s11 = sphi 0, %s15
    %p12 = scmp.ge.s32.totalorder %s11, 4
    %s21 = sphi 0, %s23
    %s24 = sphi 0, %s21
    %s25 = sphi 0, %s24
    %s41 = sphi 0, %s25
    %s45 = sphi 0, %s45
    %s47 = sphi 0, %s45
    %s48 = sphi 0, %s47
    %s62 = sphi 0, %s48
    %s66 = sphi 0, %s66
    %s68 = sphi 0, %s66
    %s69 = sphi 0, %s68
    %s83 = sphi 0, %s69
    %s89 = sphi 0, %s91
    %s92 = sphi 0, %s89
    %s93 = sphi 0, %s92
    %s109 = sphi 0, %s93
    %s115 = sphi 0, %s117
    %s118 = sphi 0, %s115
    %s119 = sphi 0, %s118
    %s135 = sphi 0, %s119
  $region4: #{downscale_forward.2} parent=0 // loop_header_branch
    %14 = sbr.rel (%p12) target = $region8
  $region5: #{downscale_forward.2} parent=0 // loop_body
    %s16 = ssub.s32 %s11, 1
    %s17 = ssub.s32 %s11, 2
    %s18 = sadd.s32 %s11, 1
    %s19 = ssub.s32 %s11, %s18
    %p20 = scmp.eq.s32.totalorder %s19, 0
    %s22 = sadd.s32 %s21, 1
    %s23 = scalar_select %p20, %s21, %s22
    %p26 = pneg %p20
    %p27 = scmp.eq.s32.totalorder %s11, 1
    %p28 = por %p26, %p27
    %p29 = scmp.ne.s32.totalorder %s21, %s24
    %p30 = scmp.eq.s32.totalorder %s11, 0
    %p31 = por %p29, %p30
    %p32 = scmp.ne.s32.totalorder %s21, %s24
    %p33 = scmp.eq.s32.totalorder %s16, 1
    %p34 = por %p32, %p33
    %p35 = scmp.ne.s32.totalorder %s24, %s25
    %p36 = scmp.eq.s32.totalorder %s16, 0
    %p37 = por %p35, %p36
    %p38 = scmp.ne.s32.totalorder %s24, %s25
    %p39 = scmp.eq.s32.totalorder %s17, 1
    %p40 = por %p38, %p39
    %p42 = scmp.ne.s32.totalorder %s25, %s41
    %p43 = scmp.eq.s32.totalorder %s17, 0
    %p44 = por %p42, %p43
    %s46 = sadd.s32 %s45, 1
    %p49 = scmp.eq.s32.totalorder %s11, 1
    %p50 = scmp.ne.s32.totalorder %s45, %s47
    %p51 = scmp.eq.s32.totalorder %s11, 0
    %p52 = por %p50, %p51
    %p53 = scmp.ne.s32.totalorder %s45, %s47
    %p54 = scmp.eq.s32.totalorder %s16, 1
    %p55 = por %p53, %p54
    %p56 = scmp.ne.s32.totalorder %s47, %s48
    %p57 = scmp.eq.s32.totalorder %s16, 0
    %p58 = por %p56, %p57
    %p59 = scmp.ne.s32.totalorder %s47, %s48
    %p60 = scmp.eq.s32.totalorder %s17, 1
    %p61 = por %p59, %p60
    %p63 = scmp.ne.s32.totalorder %s48, %s62
    %p64 = scmp.eq.s32.totalorder %s17, 0
    %p65 = por %p63, %p64
    %s67 = sadd.s32 %s66, 1
    %p70 = scmp.eq.s32.totalorder %s11, 1
    %p71 = scmp.ne.s32.totalorder %s66, %s68
    %p72 = scmp.eq.s32.totalorder %s11, 0
    %p73 = por %p71, %p72
    %p74 = scmp.ne.s32.totalorder %s66, %s68
    %p75 = scmp.eq.s32.totalorder %s16, 1
    %p76 = por %p74, %p75
    %p77 = scmp.ne.s32.totalorder %s68, %s69
    %p78 = scmp.eq.s32.totalorder %s16, 0
    %p79 = por %p77, %p78
    %p80 = scmp.ne.s32.totalorder %s68, %s69
    %p81 = scmp.eq.s32.totalorder %s17, 1
    %p82 = por %p80, %p81
    %p84 = scmp.ne.s32.totalorder %s69, %s83
    %p85 = scmp.eq.s32.totalorder %s17, 0
    %p86 = por %p84, %p85
    %s87 = ssub.s32 %s11, %s18
    %p88 = scmp.eq.s32.totalorder %s87, 0
    %s90 = sadd.s32 %s89, 1
    %s91 = scalar_select %p88, %s89, %s90
    %p94 = pneg %p88
    %p95 = scmp.eq.s32.totalorder %s11, 1
    %p96 = por %p94, %p95
    %p97 = scmp.ne.s32.totalorder %s89, %s92
    %p98 = scmp.eq.s32.totalorder %s11, 0
    %p99 = por %p97, %p98
    %p100 = scmp.ne.s32.totalorder %s89, %s92
    %p101 = scmp.eq.s32.totalorder %s16, 1
    %p102 = por %p100, %p101
    %p103 = scmp.ne.s32.totalorder %s92, %s93
    %p104 = scmp.eq.s32.totalorder %s16, 0
    %p105 = por %p103, %p104
    %p106 = scmp.ne.s32.totalorder %s92, %s93
    %p107 = scmp.eq.s32.totalorder %s17, 1
    %p108 = por %p106, %p107
    %p110 = scmp.ne.s32.totalorder %s93, %s109
    %p111 = scmp.eq.s32.totalorder %s17, 0
    %p112 = por %p110, %p111
    %s113 = ssub.s32 %s11, %s18
    %p114 = scmp.eq.s32.totalorder %s113, 0
    %s116 = sadd.s32 %s115, 1
    %s117 = scalar_select %p114, %s115, %s116
    %p120 = pneg %p114
    %p121 = scmp.eq.s32.totalorder %s11, 1
    %p122 = por %p120, %p121
    %p123 = scmp.ne.s32.totalorder %s115, %s118
    %p124 = scmp.eq.s32.totalorder %s11, 0
    %p125 = por %p123, %p124
    %p126 = scmp.ne.s32.totalorder %s115, %s118
    %p127 = scmp.eq.s32.totalorder %s16, 1
    %p128 = por %p126, %p127
    %p129 = scmp.ne.s32.totalorder %s118, %s119
    %p130 = scmp.eq.s32.totalorder %s16, 0
    %p131 = por %p129, %p130
    %p132 = scmp.ne.s32.totalorder %s118, %s119
    %p133 = scmp.eq.s32.totalorder %s17, 1
    %p134 = por %p132, %p133
    %p136 = scmp.ne.s32.totalorder %s119, %s135
    %p137 = scmp.eq.s32.totalorder %s17, 0
    %p138 = por %p136, %p137
    %p139 = scmp.le.s32.totalorder 1, %s11
    %p140 = scmp.lt.s32.totalorder %s11, 3
    %p141 = pnand %p139, %p140
    %p142 = pneg %p141
    // Predicated region
    $region9: #{downscale_forward.2} parent=5 // pred_check
      _
    $region10: #{downscale_forward.2} parent=5 // pred_check_branch
      %144 = sbr.rel (%p141) target = $region12
    $region11: #{downscale_forward.2} parent=5 // pred_region
      %s145 = ssub.s32 %s11, 1
      // Predicated region
      $region13: #{downscale_forward.2} parent=11 // pred_check
        %p146 = pneg %p58
      $region14: #{downscale_forward.2} parent=11 // pred_check_branch
        %148 = sbr.rel (%p146) target = $region16
      $region15: #{downscale_forward.2} parent=11 // pred_region
        _
      $region16: #{downscale_forward.2} parent=11 // pred_fallthru
        _
      // Predicated region
      $region17: #{downscale_forward.2} parent=11 // pred_check
        %p149 = pneg %p79
      $region18: #{downscale_forward.2} parent=11 // pred_check_branch
        %151 = sbr.rel (%p149) target = $region20
      $region19: #{downscale_forward.2} parent=11 // pred_region
        _
      $region20: #{downscale_forward.2} parent=11 // pred_fallthru
        _
    $region12: #{downscale_forward.2} parent=5 // pred_fallthru
      _
    %p152 = scmp.lt.s32.totalorder %s11, 2
    // Predicated region
    $region21: #{downscale_forward.2} parent=5 // pred_check
      %p153 = pneg %p152
    $region22: #{downscale_forward.2} parent=5 // pred_check_branch
      %155 = sbr.rel (%p153) target = $region24
    $region23: #{downscale_forward.2} parent=5 // pred_region
      // Predicated region
      $region25: #{downscale_forward.2} parent=23 // pred_check
        %p156 = pneg %p31
      $region26: #{downscale_forward.2} parent=23 // pred_check_branch
        %158 = sbr.rel (%p156) target = $region28
      $region27: #{downscale_forward.2} parent=23 // pred_region
        %p159 = scmp.lt.s32.totalorder %s11, 1
        %s160 = scalar_select %p159, %s11, 1
        %s161 = smul.addr %s160, 20
        %s162 = smul.addr %s161, 4
        %s163 = scalar_lea.vmem %s0, %s162
      $region28: #{downscale_forward.2} parent=23 // pred_fallthru
        _
    $region24: #{downscale_forward.2} parent=5 // pred_fallthru
      _
    %p164 = scmp.le.s32.totalorder 1, %s11
    %p165 = scmp.lt.s32.totalorder %s11, 3
    %p166 = pnand %p164, %p165
    %p167 = pneg %p166
    // Predicated region
    $region29: #{downscale_forward.2} parent=5 // pred_check
      _
    $region30: #{downscale_forward.2} parent=5 // pred_check_branch
      %169 = sbr.rel (%p166) target = $region32
    $region31: #{downscale_forward.2} parent=5 // pred_region
      %s170 = ssub.s32 %s11, 1
      %p171 = scmp.lt.s32.totalorder %s16, 1
      %s172 = scalar_select %p171, %s16, 1
      %s173 = smul.addr %s172, 20
      %s174 = smul.addr %s173, 4
      %s175 = scalar_lea.vmem %s0, %s174
      %p176 = pneg %p37
      %p177 = pneg %p34
      %p178 = pneg %p58
      %p179 = pneg %p55
      %p180 = pneg %p79
      %p181 = pneg %p76
      %p182 = pneg %p105
      %p183 = pneg %p102
      %s184 = smul.u32 8, %s16
      %p185 = scmp.lt.s32.totalorder %s184, 15
      %s186 = scalar_select %p185, %s184, 15
      %s187 = smul.addr %s186, 4
      %s188 = scalar_lea.vmem %s3, %s187
      %p189 = pneg %p131
      %p190 = pneg %p128
      %p191 = scmp.lt.s32.totalorder %s16, 1
      %s192 = scalar_select %p191, %s16, 1
      %s193 = smul.addr %s192, 2
      %s194 = scalar_lea.vmem %s4, %s193
      %p195 = scmp.lt.s32.totalorder %s16, 1
      %s196 = scalar_select %p195, %s16, 1
      %s197 = smul.addr %s196, 20
      %s198 = smul.addr %s197, 4
      %s199 = scalar_lea.vmem %s0, %s198
      %s200 = smul.u32 8, %s16
      %p201 = scmp.lt.s32.totalorder %s200, 15
      %s202 = scalar_select %p201, %s200, 15
      %s203 = smul.addr %s202, 4
      %s204 = scalar_lea.vmem %s3, %s203
      %s205 = smul.u32 8, %s16
      %p206 = scmp.lt.s32.totalorder %s16, 1
      %s207 = scalar_select %p206, %s16, 1
      %s208 = smul.addr %s207, 2
      %s209 = scalar_lea.vmem %s4, %s208
      %v211 = vld [vmem:[%s199] sm:$0xf]
      %s212 = scalar_lea.vmem %s199, 8
      %v213 = vld [vmem:[%s212] sm:$0xf]
      %s214 = scalar_lea.vmem %s199, 16
      %v215 = vld [vmem:[%s214] sm:$0xf]
      %s216 = scalar_lea.vmem %s199, 24
      %v217 = vld [vmem:[%s216] sm:$0xf]
      %s218 = scalar_lea.vmem %s199, 32
      %v219 = vld [vmem:[%s218] sm:$0xf]
      %s220 = scalar_lea.vmem %s199, 40
      %v221 = vld [vmem:[%s220] sm:$0xf]
      %s222 = scalar_lea.vmem %s199, 48
      %v223 = vld [vmem:[%s222] sm:$0xf]
      %s224 = scalar_lea.vmem %s199, 56
      %v225 = vld [vmem:[%s224] sm:$0xf]
      %v227 = vunpack.c.l.b16 %v213
      %v228 = vpack.c.b16 %v227, %v227
      %v230 = vunpack.c.l.b16 %v217
      %v231 = vpack.c.b16 %v230, %v230
      %v233 = vunpack.c.l.b16 %v221
      %v234 = vpack.c.b16 %v233, %v233
      %v236 = vunpack.c.l.b16 %v225
      %v237 = vpack.c.b16 %v236, %v236
      %vm238 = vcmask 1043456
      %v241 = vsel %vm238, %v211, %v228
      %v244 = vsel %vm238, %v215, %v231
      %v247 = vsel %vm238, %v219, %v234
      %v250 = vsel %vm238, %v223, %v237
      %v251 = vld [vmem:[%s199 + $0x4] sm:$0x1]
      %v252 = vld [vmem:[%s212 + $0x4] sm:$0x1]
      %v253 = vld [vmem:[%s214 + $0x4] sm:$0x1]
      %v254 = vld [vmem:[%s216 + $0x4] sm:$0x1]
      %v255 = vld [vmem:[%s218 + $0x4] sm:$0x1]
      %v256 = vld [vmem:[%s220 + $0x4] sm:$0x1]
      %v257 = vld [vmem:[%s222 + $0x4] sm:$0x1]
      %v258 = vld [vmem:[%s224 + $0x4] sm:$0x1]
      %v261 = vunpack.c.l.b16 %v211
      %v262 = vunpack.c.l.b16 %v251
      %v263 = vpack.c.b16 %v262, %v261
      %v265 = vshrl.u32 %v263, 16
      %v267 = vshll.u32 %v263, 16
      %v269 = vrot.slane %v267, 1
      %v270 = vor.u32 %v265, %v269
      %v272 = vunpack.c.l.b16 %v252
      %v273 = vpack.c.b16 %v272, %v227
      %v275 = vshrl.u32 %v273, 16
      %v277 = vrot.slane %v275, 4
      %v278 = vshll.u32 %v273, 16
      %v280 = vrot.slane %v278, 5
      %v281 = vor.u32 %v277, %v280
      %v284 = vunpack.c.l.b16 %v215
      %v285 = vunpack.c.l.b16 %v253
      %v286 = vpack.c.b16 %v285, %v284
      %v288 = vshrl.u32 %v286, 16
      %v290 = vshll.u32 %v286, 16
      %v292 = vrot.slane %v290, 1
      %v293 = vor.u32 %v288, %v292
      %v295 = vunpack.c.l.b16 %v254
      %v296 = vpack.c.b16 %v295, %v230
      %v298 = vshrl.u32 %v296, 16
      %v300 = vrot.slane %v298, 4
      %v301 = vshll.u32 %v296, 16
      %v303 = vrot.slane %v301, 5
      %v304 = vor.u32 %v300, %v303
      %v307 = vunpack.c.l.b16 %v219
      %v308 = vunpack.c.l.b16 %v255
      %v309 = vpack.c.b16 %v308, %v307
      %v311 = vshrl.u32 %v309, 16
      %v313 = vshll.u32 %v309, 16
      %v315 = vrot.slane %v313, 1
      %v316 = vor.u32 %v311, %v315
      %v318 = vunpack.c.l.b16 %v256
      %v319 = vpack.c.b16 %v318, %v233
      %v321 = vshrl.u32 %v319, 16
      %v323 = vrot.slane %v321, 4
      %v324 = vshll.u32 %v319, 16
      %v326 = vrot.slane %v324, 5
      %v327 = vor.u32 %v323, %v326
      %v330 = vunpack.c.l.b16 %v223
      %v331 = vunpack.c.l.b16 %v257
      %v332 = vpack.c.b16 %v331, %v330
      %v334 = vshrl.u32 %v332, 16
      %v336 = vshll.u32 %v332, 16
      %v338 = vrot.slane %v336, 1
      %v339 = vor.u32 %v334, %v338
      %v341 = vunpack.c.l.b16 %v258
      %v342 = vpack.c.b16 %v341, %v236
      %v344 = vshrl.u32 %v342, 16
      %v346 = vrot.slane %v344, 4
      %v347 = vshll.u32 %v342, 16
      %v349 = vrot.slane %v347, 5
      %v350 = vor.u32 %v346, %v349
      %v353 = vsel %vm238, %v270, %v281
      %v356 = vsel %vm238, %v293, %v304
      %v359 = vsel %vm238, %v316, %v327
      %v362 = vsel %vm238, %v339, %v350
      %v363 = vld [vmem:[%s199] sm:$0xe]
      %v364 = vld [vmem:[%s212] sm:$0xe]
      %v365 = vld [vmem:[%s214] sm:$0xe]
      %v366 = vld [vmem:[%s216] sm:$0xe]
      %v367 = vld [vmem:[%s218] sm:$0xe]
      %v368 = vld [vmem:[%s220] sm:$0xe]
      %v369 = vld [vmem:[%s222] sm:$0xe]
      %v370 = vld [vmem:[%s224] sm:$0xe]
      %v372 = vunpack.c.l.b16 %v363
      %v373 = vpack.c.b16 %v262, %v372
      %v374 = vrot.slane %v373, 1
      %v376 = vunpack.c.l.b16 %v364
      %v377 = vpack.c.b16 %v272, %v376
      %v378 = vrot.slane %v377, 5
      %v380 = vunpack.c.l.b16 %v365
      %v381 = vpack.c.b16 %v285, %v380
      %v382 = vrot.slane %v381, 1
      %v384 = vunpack.c.l.b16 %v366
      %v385 = vpack.c.b16 %v295, %v384
      %v386 = vrot.slane %v385, 5
      %v388 = vunpack.c.l.b16 %v367
      %v389 = vpack.c.b16 %v308, %v388
      %v390 = vrot.slane %v389, 1
      %v392 = vunpack.c.l.b16 %v368
      %v393 = vpack.c.b16 %v318, %v392
      %v394 = vrot.slane %v393, 5
      %v396 = vunpack.c.l.b16 %v369
      %v397 = vpack.c.b16 %v331, %v396
      %v398 = vrot.slane %v397, 1
      %v400 = vunpack.c.l.b16 %v370
      %v401 = vpack.c.b16 %v341, %v400
      %v402 = vrot.slane %v401, 5
      %v405 = vsel %vm238, %v374, %v378
      %v408 = vsel %vm238, %v382, %v386
      %v411 = vsel %vm238, %v390, %v394
      %v414 = vsel %vm238, %v398, %v402
      %s415 = scalar_lea.vmem %s199, 64
      %v416 = vld [vmem:[%s415] sm:$0xf]
      %v417 = vpack.c.b16 %v284, %v284
      %v418 = vpack.c.b16 %v307, %v307
      %v419 = vpack.c.b16 %v330, %v330
      %v421 = vunpack.c.l.b16 %v416
      %v422 = vpack.c.b16 %v421, %v421
      %v425 = vsel %vm238, %v213, %v417
      %v428 = vsel %vm238, %v217, %v418
      %v431 = vsel %vm238, %v221, %v419
      %v434 = vsel %vm238, %v225, %v422
      %v435 = vld [vmem:[%s415 + $0x4] sm:$0x1]
      %v436 = vrot.slane %v278, 1
      %v437 = vor.u32 %v275, %v436
      %v438 = vrot.slane %v288, 4
      %v439 = vrot.slane %v290, 5
      %v440 = vor.u32 %v438, %v439
      %v441 = vrot.slane %v301, 1
      %v442 = vor.u32 %v298, %v441
      %v443 = vrot.slane %v311, 4
      %v444 = vrot.slane %v313, 5
      %v445 = vor.u32 %v443, %v444
      %v446 = vrot.slane %v324, 1
      %v447 = vor.u32 %v321, %v446
      %v448 = vrot.slane %v334, 4
      %v449 = vrot.slane %v336, 5
      %v450 = vor.u32 %v448, %v449
      %v451 = vrot.slane %v347, 1
      %v452 = vor.u32 %v344, %v451
      %v454 = vunpack.c.l.b16 %v435
      %v455 = vpack.c.b16 %v454, %v421
      %v457 = vshrl.u32 %v455, 16
      %v459 = vrot.slane %v457, 4
      %v460 = vshll.u32 %v455, 16
      %v462 = vrot.slane %v460, 5
      %v463 = vor.u32 %v459, %v462
      %v466 = vsel %vm238, %v437, %v440
      %v469 = vsel %vm238, %v442, %v445
      %v472 = vsel %vm238, %v447, %v450
      %v475 = vsel %vm238, %v452, %v463
      %v476 = vld [vmem:[%s415] sm:$0xe]
      %v477 = vrot.slane %v377, 1
      %v478 = vrot.slane %v381, 5
      %v479 = vrot.slane %v385, 1
      %v480 = vrot.slane %v389, 5
      %v481 = vrot.slane %v393, 1
      %v482 = vrot.slane %v397, 5
      %v483 = vrot.slane %v401, 1
      %v485 = vunpack.c.l.b16 %v476
      %v486 = vpack.c.b16 %v454, %v485
      %v487 = vrot.slane %v486, 5
      %v490 = vsel %vm238, %v477, %v478
      %v493 = vsel %vm238, %v479, %v480
      %v496 = vsel %vm238, %v481, %v482
      %v499 = vsel %vm238, %v483, %v487
      %s500 = scalar_lea.vmem %s199, 72
      %v501 = vld [vmem:[%s500] sm:$0xf]
      %v503 = vunpack.c.l.b16 %v501
      %v504 = vpack.c.b16 %v503, %v503
      %v507 = vsel %vm238, %v416, %v504
      %v508 = vld [vmem:[%s500 + $0x4] sm:$0x1]
      %v509 = vrot.slane %v460, 1
      %v510 = vor.u32 %v457, %v509
      %v512 = vunpack.c.l.b16 %v508
      %v513 = vpack.c.b16 %v512, %v503
      %v515 = vshrl.u32 %v513, 16
      %v517 = vrot.slane %v515, 4
      %v518 = vshll.u32 %v513, 16
      %v520 = vrot.slane %v518, 5
      %v521 = vor.u32 %v517, %v520
      %v524 = vsel %vm238, %v510, %v521
      %v525 = vld [vmem:[%s500] sm:$0xe]
      %v526 = vrot.slane %v486, 1
      %v528 = vunpack.c.l.b16 %v525
      %v529 = vpack.c.b16 %v512, %v528
      %v530 = vrot.slane %v529, 5
      %v533 = vsel %vm238, %v526, %v530
      %538 = vrot.lane.b32.xlu0 %v353, 8
      %v539 = vpop.permute.xlu0 %538
      %540 = vrot.lane.b32.xlu0 %v356, 8
      %v541 = vpop.permute.xlu0 %540
      %542 = vrot.lane.b32.xlu0 %v359, 8
      %v543 = vpop.permute.xlu0 %542
      %544 = vrot.lane.b32.xlu0 %v362, 8
      %v545 = vpop.permute.xlu0 %544
      %550 = vrot.lane.b32.xlu0 %v405, 16
      %v551 = vpop.permute.xlu0 %550
      %552 = vrot.lane.b32.xlu0 %v408, 16
      %v553 = vpop.permute.xlu0 %552
      %554 = vrot.lane.b32.xlu0 %v411, 16
      %v555 = vpop.permute.xlu0 %554
      %556 = vrot.lane.b32.xlu0 %v414, 16
      %v557 = vpop.permute.xlu0 %556
      %562 = vrot.lane.b32.xlu0 %v241, 12
      %v563 = vpop.permute.xlu0 %562
      %564 = vrot.lane.b32.xlu0 %v244, 12
      %v565 = vpop.permute.xlu0 %564
      %566 = vrot.lane.b32.xlu0 %v247, 12
      %v567 = vpop.permute.xlu0 %566
      %568 = vrot.lane.b32.xlu0 %v250, 12
      %v569 = vpop.permute.xlu0 %568
      %570 = vrot.lane.b32.xlu0 %v353, 20
      %v571 = vpop.permute.xlu0 %570
      %572 = vrot.lane.b32.xlu0 %v356, 20
      %v573 = vpop.permute.xlu0 %572
      %574 = vrot.lane.b32.xlu0 %v359, 20
      %v575 = vpop.permute.xlu0 %574
      %576 = vrot.lane.b32.xlu0 %v362, 20
      %v577 = vpop.permute.xlu0 %576
      %578 = vrot.lane.b32.xlu0 %v405, 28
      %v579 = vpop.permute.xlu0 %578
      %580 = vrot.lane.b32.xlu0 %v408, 28
      %v581 = vpop.permute.xlu0 %580
      %582 = vrot.lane.b32.xlu0 %v411, 28
      %v583 = vpop.permute.xlu0 %582
      %584 = vrot.lane.b32.xlu0 %v414, 28
      %v585 = vpop.permute.xlu0 %584
      %590 = vrot.lane.b32.xlu0 %v425, 40
      %v591 = vpop.permute.xlu0 %590
      %592 = vrot.lane.b32.xlu0 %v428, 40
      %v593 = vpop.permute.xlu0 %592
      %594 = vrot.lane.b32.xlu0 %v431, 40
      %v595 = vpop.permute.xlu0 %594
      %596 = vrot.lane.b32.xlu0 %v434, 40
      %v597 = vpop.permute.xlu0 %596
      %602 = vrot.lane.b32.xlu0 %v466, 48
      %v603 = vpop.permute.xlu0 %602
      %604 = vrot.lane.b32.xlu0 %v469, 48
      %v605 = vpop.permute.xlu0 %604
      %606 = vrot.lane.b32.xlu0 %v472, 48
      %v607 = vpop.permute.xlu0 %606
      %608 = vrot.lane.b32.xlu0 %v475, 48
      %v609 = vpop.permute.xlu0 %608
      %614 = vrot.lane.b32.xlu0 %v490, 56
      %v615 = vpop.permute.xlu0 %614
      %616 = vrot.lane.b32.xlu0 %v493, 56
      %v617 = vpop.permute.xlu0 %616
      %618 = vrot.lane.b32.xlu0 %v496, 56
      %v619 = vpop.permute.xlu0 %618
      %620 = vrot.lane.b32.xlu0 %v499, 56
      %v621 = vpop.permute.xlu0 %620
      %622 = vrot.lane.b32.xlu0 %v425, 52
      %v623 = vpop.permute.xlu0 %622
      %624 = vrot.lane.b32.xlu0 %v428, 52
      %v625 = vpop.permute.xlu0 %624
      %626 = vrot.lane.b32.xlu0 %v431, 52
      %v627 = vpop.permute.xlu0 %626
      %628 = vrot.lane.b32.xlu0 %v434, 52
      %v629 = vpop.permute.xlu0 %628
      %vm630 = vcmask 31744
      %vm631 = vcmask 64512
      %v633 = vsel %vm631, %v241, %v539
      %v635 = vsel %vm631, %v244, %v541
      %v637 = vsel %vm631, %v247, %v543
      %v639 = vsel %vm631, %v250, %v545
      %vm640 = vcmask 97280
      %v641 = vsel %vm640, %v633, %v539
      %v642 = vsel %vm640, %v635, %v541
      %v643 = vsel %vm640, %v637, %v543
      %v644 = vsel %vm640, %v639, %v545
      %vm645 = vcmask 130048
      %v647 = vsel %vm645, %v641, %v551
      %v649 = vsel %vm645, %v642, %v553
      %v651 = vsel %vm645, %v643, %v555
      %v653 = vsel %vm645, %v644, %v557
      %vm654 = vcmask 162816
      %v656 = vsel %vm654, %v647, %v563
      %v658 = vsel %vm654, %v649, %v565
      %v660 = vsel %vm654, %v651, %v567
      %v662 = vsel %vm654, %v653, %v569
      %vm663 = vcmask 195584
      %v664 = vsel %vm663, %v656, %v563
      %v665 = vsel %vm663, %v658, %v565
      %v666 = vsel %vm663, %v660, %v567
      %v667 = vsel %vm663, %v662, %v569
      %vm668 = vcmask 228352
      %v670 = vsel %vm668, %v664, %v571
      %v672 = vsel %vm668, %v665, %v573
      %v674 = vsel %vm668, %v666, %v575
      %v676 = vsel %vm668, %v667, %v577
      %vm677 = vcmask 261120
      %v678 = vsel %vm677, %v670, %v571
      %v679 = vsel %vm677, %v672, %v573
      %v680 = vsel %vm677, %v674, %v575
      %v681 = vsel %vm677, %v676, %v577
      %vm682 = vcmask 293888
      %v684 = vsel %vm682, %v678, %v579
      %v686 = vsel %vm682, %v679, %v581
      %v688 = vsel %vm682, %v680, %v583
      %v690 = vsel %vm682, %v681, %v585
      %vm691 = vcmask 326656
      %v693 = vsel %vm691, %v684, %v591
      %v695 = vsel %vm691, %v686, %v593
      %v697 = vsel %vm691, %v688, %v595
      %v699 = vsel %vm691, %v690, %v597
      %vm700 = vcmask 359424
      %v701 = vsel %vm700, %v693, %v591
      %v702 = vsel %vm700, %v695, %v593
      %v703 = vsel %vm700, %v697, %v595
      %v704 = vsel %vm700, %v699, %v597
      %vm705 = vcmask 392192
      %v707 = vsel %vm705, %v701, %v603
      %v709 = vsel %vm705, %v702, %v605
      %v711 = vsel %vm705, %v703, %v607
      %v713 = vsel %vm705, %v704, %v609
      %vm714 = vcmask 424960
      %v715 = vsel %vm714, %v707, %v603
      %v716 = vsel %vm714, %v709, %v605
      %v717 = vsel %vm714, %v711, %v607
      %v718 = vsel %vm714, %v713, %v609
      %vm719 = vcmask 457728
      %v721 = vsel %vm719, %v715, %v615
      %v723 = vsel %vm719, %v716, %v617
      %v725 = vsel %vm719, %v717, %v619
      %v727 = vsel %vm719, %v718, %v621
      %vm728 = vcmask 490496
      %v730 = vsel %vm728, %v721, %v623
      %v732 = vsel %vm728, %v723, %v625
      %v734 = vsel %vm728, %v725, %v627
      %v736 = vsel %vm728, %v727, %v629
      %737 = vrot.lane.b32.xlu0 %v425, 116
      %v738 = vpop.permute.xlu0 %737
      %739 = vrot.lane.b32.xlu0 %v428, 116
      %v740 = vpop.permute.xlu0 %739
      %741 = vrot.lane.b32.xlu0 %v431, 116
      %v742 = vpop.permute.xlu0 %741
      %743 = vrot.lane.b32.xlu0 %v434, 116
      %v744 = vpop.permute.xlu0 %743
      %745 = vrot.lane.b32.xlu0 %v466, 124
      %v746 = vpop.permute.xlu0 %745
      %747 = vrot.lane.b32.xlu0 %v469, 124
      %v748 = vpop.permute.xlu0 %747
      %749 = vrot.lane.b32.xlu0 %v472, 124
      %v750 = vpop.permute.xlu0 %749
      %751 = vrot.lane.b32.xlu0 %v475, 124
      %v752 = vpop.permute.xlu0 %751
      %753 = vrot.lane.b32.xlu0 %v490, 4
      %v754 = vpop.permute.xlu0 %753
      %755 = vrot.lane.b32.xlu0 %v493, 4
      %v756 = vpop.permute.xlu0 %755
      %757 = vrot.lane.b32.xlu0 %v496, 4
      %v758 = vpop.permute.xlu0 %757
      %759 = vrot.lane.b32.xlu0 %v499, 4
      %v760 = vpop.permute.xlu0 %759
      %762 = vrot.lane.b32.xlu0 %v244, 16
      %v763 = vpop.permute.xlu0 %762
      %764 = vrot.lane.b32.xlu0 %v247, 16
      %v765 = vpop.permute.xlu0 %764
      %766 = vrot.lane.b32.xlu0 %v250, 16
      %v767 = vpop.permute.xlu0 %766
      %768 = vrot.lane.b32.xlu0 %v507, 16
      %v769 = vpop.permute.xlu0 %768
      %771 = vrot.lane.b32.xlu0 %v356, 24
      %v772 = vpop.permute.xlu0 %771
      %773 = vrot.lane.b32.xlu0 %v359, 24
      %v774 = vpop.permute.xlu0 %773
      %775 = vrot.lane.b32.xlu0 %v362, 24
      %v776 = vpop.permute.xlu0 %775
      %777 = vrot.lane.b32.xlu0 %v524, 24
      %v778 = vpop.permute.xlu0 %777
      %780 = vrot.lane.b32.xlu0 %v408, 32
      %v781 = vpop.permute.xlu0 %780
      %782 = vrot.lane.b32.xlu0 %v411, 32
      %v783 = vpop.permute.xlu0 %782
      %784 = vrot.lane.b32.xlu0 %v414, 32
      %v785 = vpop.permute.xlu0 %784
      %786 = vrot.lane.b32.xlu0 %v533, 32
      %v787 = vpop.permute.xlu0 %786
      %v790 = vsel %vm630, %v738, %v746
      %v793 = vsel %vm630, %v740, %v748
      %v796 = vsel %vm630, %v742, %v750
      %v799 = vsel %vm630, %v744, %v752
      %v800 = vsel %vm631, %v790, %v746
      %v801 = vsel %vm631, %v793, %v748
      %v802 = vsel %vm631, %v796, %v750
      %v803 = vsel %vm631, %v799, %v752
      %v805 = vsel %vm640, %v800, %v754
      %v807 = vsel %vm640, %v801, %v756
      %v809 = vsel %vm640, %v802, %v758
      %v811 = vsel %vm640, %v803, %v760
      %v813 = vsel %vm645, %v805, %v763
      %v815 = vsel %vm645, %v807, %v765
      %v817 = vsel %vm645, %v809, %v767
      %v819 = vsel %vm645, %v811, %v769
      %v820 = vsel %vm654, %v813, %v763
      %v821 = vsel %vm654, %v815, %v765
      %v822 = vsel %vm654, %v817, %v767
      %v823 = vsel %vm654, %v819, %v769
      %v825 = vsel %vm663, %v820, %v772
      %v827 = vsel %vm663, %v821, %v774
      %v829 = vsel %vm663, %v822, %v776
      %v831 = vsel %vm663, %v823, %v778
      %v832 = vsel %vm668, %v825, %v772
      %v833 = vsel %vm668, %v827, %v774
      %v834 = vsel %vm668, %v829, %v776
      %v835 = vsel %vm668, %v831, %v778
      %v837 = vsel %vm677, %v832, %v781
      %v839 = vsel %vm677, %v833, %v783
      %v841 = vsel %vm677, %v834, %v785
      %v843 = vsel %vm677, %v835, %v787
      %v845 = vsel %vm682, %v837, 0
      %v846 = vsel %vm682, %v839, 0
      %v847 = vsel %vm682, %v841, 0
      %v848 = vsel %vm682, %v843, 0
      %853 = vrot.lane.b32.xlu0 %v845, 64
      %v854 = vpop.permute.xlu0 %853
      %855 = vrot.lane.b32.xlu0 %v846, 64
      %v856 = vpop.permute.xlu0 %855
      %857 = vrot.lane.b32.xlu0 %v847, 64
      %v858 = vpop.permute.xlu0 %857
      %859 = vrot.lane.b32.xlu0 %v848, 64
      %v860 = vpop.permute.xlu0 %859
      %vm861 = vcmask 523264
      %v863 = vsel %vm861, %v730, %v854
      %v866 = vsel %vm861, %v732, %v856
      %v869 = vsel %vm861, %v734, %v858
      %v872 = vsel %vm861, %v736, %v860
      %v874 = vld [vmem:[%s1] sm:$0xf]
      %v875 = vld [vmem:[%s1 + $0x4] sm:$0xf]
      %v876 = vld [vmem:[%s1 + $0x8] sm:$0xf]
      %v877 = vld [vmem:[%s1 + $0xc] sm:$0xf]
      %v878 = vld [vmem:[%s1 + $0x10] sm:$0xf]
      %v879 = vld [vmem:[%s1 + $0x14] sm:$0xf]
      %v880 = vld [vmem:[%s1 + $0x18] sm:$0xf]
      %v881 = vld [vmem:[%s1 + $0x1c] sm:$0xf]
      %v882 = vld [vmem:[%s1 + $0x20] sm:$0xf]
      %v883 = vld [vmem:[%s1 + $0x24] sm:$0xf]
      %v884 = vld [vmem:[%s1 + $0x28] sm:$0xf]
      %v885 = vld [vmem:[%s1 + $0x2c] sm:$0xf]
      %v886 = vld [vmem:[%s1 + $0x30] sm:$0xf]
      %v887 = vld [vmem:[%s1 + $0x34] sm:$0xf]
      %v888 = vld [vmem:[%s1 + $0x38] sm:$0xf]
      %v889 = vld [vmem:[%s1 + $0x3c] sm:$0xf]
      %v890 = vld [vmem:[%s2] sm:$0x1]
      %v892 = vlaneseq
      %v893 = vshrl.u32 %v892, 7
      %v894 = vsub.s32 0, %v893
      %v895 = vrot.slane %v890, %v894
      %v913 = vunpack.c.l.b16 %v874
      %v914 = vunpack.c.l.b16 %v875
      %v915 = vunpack.c.l.b16 %v876
      %v916 = vunpack.c.l.b16 %v877
      %v917 = vunpack.c.l.b16 %v878
      %v918 = vunpack.c.l.b16 %v879
      %v919 = vunpack.c.l.b16 %v880
      %v920 = vunpack.c.l.b16 %v881
      %v921 = vunpack.c.l.b16 %v882
      %v922 = vunpack.c.l.b16 %v883
      %v923 = vunpack.c.l.b16 %v884
      %v924 = vunpack.c.l.b16 %v885
      %v925 = vunpack.c.l.b16 %v886
      %v926 = vunpack.c.l.b16 %v887
      %v927 = vunpack.c.l.b16 %v888
      %v928 = vunpack.c.l.b16 %v889
      %v929 = vpack.c.b16 %v914, %v913
      %v930 = vpack.c.b16 %v916, %v915
      %v931 = vpack.c.b16 %v918, %v917
      %v932 = vpack.c.b16 %v920, %v919
      %v933 = vpack.c.b16 %v922, %v921
      %v934 = vpack.c.b16 %v924, %v923
      %v935 = vpack.c.b16 %v926, %v925
      %v936 = vpack.c.b16 %v928, %v927
      %945 = vmatprep.subr.bf16.mxu0 0
      %946 = vmatpush1.bf16.msra.mxu0 %v936
      %947 = vmatprep.subr.bf16.mxu0 0
      %948 = vmatpush1.bf16.msra.mxu0 %v935
      %949 = vmatprep.subr.bf16.mxu0 0
      %950 = vmatpush1.bf16.msra.mxu0 %v934
      %951 = vmatprep.subr.bf16.mxu0 0
      %952 = vmatpush1.bf16.msra.mxu0 %v933
      %953 = vmatprep.subr.bf16.mxu0 0
      %954 = vmatpush1.bf16.msra.mxu0 %v932
      %955 = vmatprep.subr.bf16.mxu0 0
      %956 = vmatpush1.bf16.msra.mxu0 %v931
      %957 = vmatprep.subr.bf16.mxu0 0
      %958 = vmatpush1.bf16.msra.mxu0 %v930
      %959 = vmatprep.subr.bf16.mxu0 0
      %960 = vmatpush1.bf16.msra.mxu0 %v929
      %961 = vmatprep.subr.bf16.mxu0 0
      %962 = vmatpush2.bf16.msra.mxu0 0
      %963 = vmatprep.subr.bf16.mxu0 0
      %964 = vmatpush2.bf16.msra.mxu0 0
      %965 = vmatprep.subr.bf16.mxu0 0
      %966 = vmatpush2.bf16.msra.mxu0 0
      %967 = vmatprep.subr.bf16.mxu0 0
      %968 = vmatpush2.bf16.msra.mxu0 0
      %969 = vmatprep.subr.bf16.mxu0 0
      %970 = vmatpush2.bf16.msra.mxu0 0
      %971 = vmatprep.subr.bf16.mxu0 0
      %972 = vmatpush2.bf16.msra.mxu0 0
      %973 = vmatprep.subr.bf16.mxu0 0
      %974 = vmatpush2.bf16.msra.mxu0 0
      %975 = vmatprep.subr.bf16.mxu0 0
      %976 = vmatpush2.bf16.msra.mxu0 0
      %977 = vmatprep.mubr.bf16.mxu0 0
      %978 = vmatmul.mubr.bf16.gmra.mxu0 %v863
      %v979 = vpop.f32.mrf.mxu0
      %v980 = vadd.f32 %v895, %v979
      %v981 = vpop.f32.mrf.mxu0
      %v982 = vpop.f32.mrf.mxu0
      %v983 = vadd.f32 %v895, %v982
      %v984 = vpop.f32.mrf.mxu0
      %985 = vmatprep.mubr.bf16.mxu0 0
      %986 = vmatmul.mubr.bf16.gmra.mxu0 %v866
      %v987 = vpop.f32.mrf.mxu0
      %v988 = vadd.f32 %v895, %v987
      %v989 = vpop.f32.mrf.mxu0
      %v990 = vpop.f32.mrf.mxu0
      %v991 = vadd.f32 %v895, %v990
      %v992 = vpop.f32.mrf.mxu0
      %993 = vmatprep.mubr.bf16.mxu0 0
      %994 = vmatmul.mubr.bf16.gmra.mxu0 %v869
      %v995 = vpop.f32.mrf.mxu0
      %v996 = vadd.f32 %v895, %v995
      %v997 = vpop.f32.mrf.mxu0
      %v998 = vpop.f32.mrf.mxu0
      %v999 = vadd.f32 %v895, %v998
      %v1000 = vpop.f32.mrf.mxu0
      %1001 = vmatprep.mubr.bf16.mxu0 0
      %1002 = vmatmul.mubr.bf16.gmra.mxu0 %v872
      %v1003 = vpop.f32.mrf.mxu0
      %v1004 = vadd.f32 %v895, %v1003
      %v1005 = vpop.f32.mrf.mxu0
      %v1006 = vpop.f32.mrf.mxu0
      %v1007 = vadd.f32 %v895, %v1006
      %v1008 = vpop.f32.mrf.mxu0
      %1009 = vdwg.mxu0
      %vm1010 = vcmp.ge.f32.partialorder %v980, 0.0
      %vm1011 = vcmp.ge.f32.partialorder %v983, 0.0
      %vm1012 = vcmp.ge.f32.partialorder %v988, 0.0
      %vm1013 = vcmp.ge.f32.partialorder %v991, 0.0
      %vm1014 = vcmp.ge.f32.partialorder %v996, 0.0
      %vm1015 = vcmp.ge.f32.partialorder %v999, 0.0
      %vm1016 = vcmp.ge.f32.partialorder %v1004, 0.0
      %vm1017 = vcmp.ge.f32.partialorder %v1007, 0.0
      %v1018 = vmul.f32 %v980, 0.1
      %v1019 = vmul.f32 %v983, 0.1
      %v1020 = vmul.f32 %v988, 0.1
      %v1021 = vmul.f32 %v991, 0.1
      %v1022 = vmul.f32 %v996, 0.1
      %v1023 = vmul.f32 %v999, 0.1
      %v1024 = vmul.f32 %v1004, 0.1
      %v1025 = vmul.f32 %v1007, 0.1
      %v1026 = vsel %vm1010, %v980, %v1018
      %v1027 = vsel %vm1011, %v983, %v1019
      %v1028 = vsel %vm1012, %v988, %v1020
      %v1029 = vsel %vm1013, %v991, %v1021
      %v1030 = vsel %vm1014, %v996, %v1022
      %v1031 = vsel %vm1015, %v999, %v1023
      %v1032 = vsel %vm1016, %v1004, %v1024
      %v1033 = vsel %vm1017, %v1007, %v1025
      %v1034 = vpack.c.bf16 %v1027, %v1026
      %v1035 = vpack.c.bf16 %v1029, %v1028
      %v1036 = vpack.c.bf16 %v1031, %v1030
      %v1037 = vpack.c.bf16 %v1033, %v1032
      %v1042 = vunpack.c.l.b16 %v1034
      %v1043 = vunpack.c.h.b16 %v1034
      %v1044 = vunpack.c.l.b16 %v1035
      %v1045 = vunpack.c.h.b16 %v1035
      %v1046 = vunpack.c.l.b16 %v1036
      %v1047 = vunpack.c.h.b16 %v1036
      %v1048 = vunpack.c.l.b16 %v1037
      %v1049 = vunpack.c.h.b16 %v1037
      %v1050 = vpack.c.b16 %v1042, %v1042
      %v1051 = vpack.c.b16 %v1043, %v1043
      %v1052 = vpack.c.b16 %v1044, %v1044
      %v1053 = vpack.c.b16 %v1045, %v1045
      %v1054 = vpack.c.b16 %v1046, %v1046
      %v1055 = vpack.c.b16 %v1047, %v1047
      %v1056 = vpack.c.b16 %v1048, %v1048
      %v1057 = vpack.c.b16 %v1049, %v1049
      %vm1066 = vcmask 60416
      %1067 = vst.msk [vmem:[%s204] sm:$0xf] %vm1066, %v1050
      %1068 = vst.msk [vmem:[%s204 + $0x4] sm:$0xf] %vm1066, %v1051
      %1069 = vst.msk [vmem:[%s204 + $0x8] sm:$0xf] %vm1066, %v1052
      %1070 = vst.msk [vmem:[%s204 + $0xc] sm:$0xf] %vm1066, %v1053
      %1071 = vst.msk [vmem:[%s204 + $0x10] sm:$0xf] %vm1066, %v1054
      %1072 = vst.msk [vmem:[%s204 + $0x14] sm:$0xf] %vm1066, %v1055
      %1073 = vst.msk [vmem:[%s204 + $0x18] sm:$0xf] %vm1066, %v1056
      %1074 = vst.msk [vmem:[%s204 + $0x1c] sm:$0xf] %vm1066, %v1057
      %v1075 = vsel %vm631, %v1026, 0.0
      %v1076 = vsel %vm631, %v1027, 0.0
      %v1077 = vadd.f32 %v1075, %v1076
      %v1078 = vsel %vm631, %v1028, 0.0
      %v1079 = vadd.f32 %v1077, %v1078
      %v1080 = vsel %vm631, %v1029, 0.0
      %v1081 = vadd.f32 %v1079, %v1080
      %v1082 = vsel %vm631, %v1030, 0.0
      %v1083 = vadd.f32 %v1081, %v1082
      %v1084 = vsel %vm631, %v1031, 0.0
      %v1085 = vadd.f32 %v1083, %v1084
      %v1086 = vsel %vm631, %v1032, 0.0
      %v1087 = vadd.f32 %v1085, %v1086
      %v1088 = vsel %vm631, %v1033, 0.0
      %v1089 = vadd.f32 %v1087, %v1088
      %v1090 = vrot.slane %v1089, 4
      %v1091 = vadd.f32 %v1089, %v1090
      %v1092 = vrot.slane %v1091, 2
      %v1093 = vadd.f32 %v1091, %v1092
      %v1094 = vrot.slane %v1093, 1
      %v1095 = vadd.f32 %v1093, %v1094
      %vm1096 = vcmask 57344
      %1097 = vst.msk [vmem:[%s209] sm:$0x1] %vm1096, %v1095
      %v1098 = vmul.f32 %v1026, %v1026
      %v1099 = vmul.f32 %v1027, %v1027
      %v1100 = vmul.f32 %v1028, %v1028
      %v1101 = vmul.f32 %v1029, %v1029
      %v1102 = vmul.f32 %v1030, %v1030
      %v1103 = vmul.f32 %v1031, %v1031
      %v1104 = vmul.f32 %v1032, %v1032
      %v1105 = vmul.f32 %v1033, %v1033
      %v1106 = vsel %vm631, %v1098, 0.0
      %v1107 = vsel %vm631, %v1099, 0.0
      %v1108 = vadd.f32 %v1106, %v1107
      %v1109 = vsel %vm631, %v1100, 0.0
      %v1110 = vadd.f32 %v1108, %v1109
      %v1111 = vsel %vm631, %v1101, 0.0
      %v1112 = vadd.f32 %v1110, %v1111
      %v1113 = vsel %vm631, %v1102, 0.0
      %v1114 = vadd.f32 %v1112, %v1113
      %v1115 = vsel %vm631, %v1103, 0.0
      %v1116 = vadd.f32 %v1114, %v1115
      %v1117 = vsel %vm631, %v1104, 0.0
      %v1118 = vadd.f32 %v1116, %v1117
      %v1119 = vsel %vm631, %v1105, 0.0
      %v1120 = vadd.f32 %v1118, %v1119
      %v1121 = vrot.slane %v1120, 4
      %v1122 = vadd.f32 %v1120, %v1121
      %v1123 = vrot.slane %v1122, 2
      %v1124 = vadd.f32 %v1122, %v1123
      %v1125 = vrot.slane %v1124, 1
      %v1126 = vadd.f32 %v1124, %v1125
      %1127 = vst.msk [vmem:[%s209 + $0x1] sm:$0x1] %vm1096, %v1126
      %s1128 = smul.u32 8, %s16
      %p1129 = scmp.lt.s32.totalorder %s1128, 15
      %s1130 = scalar_select %p1129, %s1128, 15
      %s1131 = smul.addr %s1130, 4
      %s1132 = scalar_lea.vmem %s3, %s1131
      %p1133 = scmp.lt.s32.totalorder %s16, 1
      %s1134 = scalar_select %p1133, %s16, 1
      %s1135 = smul.addr %s1134, 2
      %s1136 = scalar_lea.vmem %s4, %s1135
      // Predicated region
      $region33: #{downscale_forward.2} parent=31 // pred_check
        %p1137 = pneg %p102
      $region34: #{downscale_forward.2} parent=31 // pred_check_branch
        %1139 = sbr.rel (%p1137) target = $region36
      $region35: #{downscale_forward.2} parent=31 // pred_region
        %s1140 = smul.u32 8, %s16
      $region36: #{downscale_forward.2} parent=31 // pred_fallthru
        _
      // Predicated region
      $region37: #{downscale_forward.2} parent=31 // pred_check
        %p1141 = pneg %p128
      $region38: #{downscale_forward.2} parent=31 // pred_check_branch
        %1143 = sbr.rel (%p1141) target = $region40
      $region39: #{downscale_forward.2} parent=31 // pred_region
        _
      $region40: #{downscale_forward.2} parent=31 // pred_fallthru
        _
    $region32: #{downscale_forward.2} parent=5 // pred_fallthru
      _
    %p1144 = scmp.le.s32.totalorder 2, %s11
    // Predicated region
    $region41: #{downscale_forward.2} parent=5 // pred_check
      %p1145 = pneg %p1144
    $region42: #{downscale_forward.2} parent=5 // pred_check_branch
      %1147 = sbr.rel (%p1145) target = $region44
    $region43: #{downscale_forward.2} parent=5 // pred_region
      %s1148 = ssub.s32 %s11, 2
      // Predicated region
      $region45: #{downscale_forward.2} parent=43 // pred_check
        %p1149 = pneg %p108
      $region46: #{downscale_forward.2} parent=43 // pred_check_branch
        %1151 = sbr.rel (%p1149) target = $region48
      $region47: #{downscale_forward.2} parent=43 // pred_region
        %s1152 = smul.u32 8, %s17
        %p1153 = scmp.lt.s32.totalorder %s1152, 15
        %s1154 = scalar_select %p1153, %s1152, 15
        %s1155 = smul.addr %s1154, 4
        %s1156 = scalar_lea.vmem %s3, %s1155
      $region48: #{downscale_forward.2} parent=43 // pred_fallthru
        _
      // Predicated region
      $region49: #{downscale_forward.2} parent=43 // pred_check
        %p1157 = pneg %p134
      $region50: #{downscale_forward.2} parent=43 // pred_check_branch
        %1159 = sbr.rel (%p1157) target = $region52
      $region51: #{downscale_forward.2} parent=43 // pred_region
        %p1160 = scmp.lt.s32.totalorder %s17, 1
        %s1161 = scalar_select %p1160, %s17, 1
        %s1162 = smul.addr %s1161, 2
        %s1163 = scalar_lea.vmem %s4, %s1162
      $region52: #{downscale_forward.2} parent=43 // pred_fallthru
        _
    $region44: #{downscale_forward.2} parent=5 // pred_fallthru
      _
  $region6: #{downscale_forward.2} parent=0 // loop_footer
    %s15 = sadd.s32 1, %s11
  $region7: #{downscale_forward.2} parent=0 // loop_footer_branch
    %10 = sbr.rel target = $region3
  $region8: #{downscale_forward.2} parent=0 // loop_exit
    _

</llo_original>
